<compile_context>
chip_gen: v7x
topology: tpu7x:2x2x1
jax: 0.10.0
libtpu: 0.0.40
codegen_flags: <defaults>
</compile_context>

<pallas_src>
import functools

import jax
import jax.numpy as jnp
from jax.experimental import pallas as pl
from jax.experimental.pallas import tpu as pltpu

BN_EPS = 1e-5
TILE_ROWS = 1024  # target rows (of the flattened padded image) per tile


def _round_up(x, m):
    return (x + m - 1) // m * m


def _pick_halo_block(tm, halo_pad):
    """Smallest multiple of 16 that divides tm and is >= halo_pad."""
    d = halo_pad
    while d < tm:
        if tm % d == 0:
            return d
        d += 16
    return tm


def _conv_stats_kernel(xa_ref, xb_ref, w_ref, mask_ref,
                       y_ref, sum_ref, sq_ref,
                       xwin_ref, lhs_ref,
                       *, tm, halo_pad, wcols, cin_pad):
    """Conv(3x3) on one row tile via ONE folded MXU matmul + BN partial stats."""
    # Stage the (tile + halo) row window of the flattened padded image: the
    # current x block plus the first halo rows of the next block (f32 copies,
    # 8 lanes -> cheap).
    xwin_ref[0:tm, :] = xa_ref[...]
    xwin_ref[tm:tm + halo_pad, :] = xb_ref[0:halo_pad, :]

    # Keep the padded K columns of the LHS zeroed so the aligned K=kdim_pad
    # matmul never multiplies uninitialized VMEM (weight pad rows are zero).
    kdim = 9 * cin_pad
    kdim_pad = lhs_ref.shape[1]
    if kdim_pad > kdim:
        lhs_ref[:, kdim:kdim_pad] = jnp.zeros((tm, kdim_pad - kdim), jnp.bfloat16)

    # Assemble the folded im2col LHS: tap (dy,dx) of output row q is flattened
    # input row q + dy*wcols + dx -> a static row slice of the window stored
    # into its own lane slab (single f32->bf16 downcast, directly feeds MXU).
    for dy in range(3):
        for dx in range(3):
            d = dy * 3 + dx
            off = dy * wcols + dx
            lhs_ref[:, d * cin_pad:(d + 1) * cin_pad] = (
                xwin_ref[off:off + tm, :].astype(jnp.bfloat16))

    # Single MXU matmul (bf16 x bf16 -> f32 accumulation).
    acc = jnp.dot(lhs_ref[...], w_ref[...], preferred_element_type=jnp.float32)

    # BN partial statistics over the valid rows of this tile, taken in f32
    # before the bf16 downcast (junk flattening columns / tail rows masked).
    ym = acc * mask_ref[...]
    sum_ref[...] = jnp.sum(ym, axis=0, keepdims=True)
    sq_ref[...] = jnp.sum(ym * ym, axis=0, keepdims=True)

    # Conv tile written back once, lane-dense (128 channels), in bf16.
    y_ref[...] = acc.astype(y_ref.dtype)


def _bn_relu_kernel(y_ref, p_ref, o_ref):
    """In-place y*scale + shift then ReLU (scale/shift fold mean/var/gamma/beta)."""
    scale = p_ref[0:1, :]
    shift = p_ref[1:2, :]
    y = y_ref[...].astype(jnp.float32)
    o_ref[...] = jnp.maximum(y * scale + shift, 0.0).astype(o_ref.dtype)


@jax.jit
def conv_block_forward(x_nchw, conv_w, conv_b, gamma, beta):
    """Fused Conv2d(3x3, pad=1) + BatchNorm2d (batch stats) + ReLU, NCHW in/out."""
    # A per-channel conv bias shifts the batch mean identically, so it cancels
    # exactly inside training-mode BatchNorm and never reaches the output.
    del conv_b

    n, cin, h, w = x_nchw.shape
    cout, _, kh, kw = conv_w.shape
    assert (kh, kw) == (3, 3)

    wcols = w + 2                                   # padded row length
    q_valid = h * wcols                             # flattened output rows / image
    tm = _round_up(min(TILE_ROWS, _round_up(q_valid, 16)), 16)
    num_qt = (q_valid + tm - 1) // tm
    qp = num_qt * tm
    halo = 2 * wcols + 2                            # max tap row offset
    halo_pad = _round_up(halo, 16)
    assert halo_pad <= tm, "image width too large for TILE_ROWS"
    halo_blk = _pick_halo_block(tm, halo_pad)       # next-block halo fetch size
    l_pad = qp + halo_blk                           # flattened padded-input rows

    cin_pad = _round_up(cin, 8)
    kdim = 9 * cin_pad                              # folded contraction dim
    kdim_pad = _round_up(kdim, 128)                 # MXU-aligned K
    cout_pad = _round_up(cout, 128)                 # lane-dense output channels

    # ---------------- one-time layout prep (XLA side) ----------------
    x_nhwc = jnp.transpose(x_nchw, (0, 2, 3, 1))
    x_p = jnp.pad(x_nhwc, ((0, 0), (1, 1), (1, 1), (0, cin_pad - cin)))
    x_flat = x_p.reshape(n, (h + 2) * (w + 2), cin_pad).astype(jnp.float32)
    x_flat = jnp.pad(x_flat, ((0, 0), (0, l_pad - (h + 2) * (w + 2)), (0, 0)))

    # w_flat[(dy*3+dx)*cin_pad + c, o] = conv_w[o, c, dy, dx]; K padded with 0s.
    w9 = jnp.transpose(conv_w, (2, 3, 1, 0)).reshape(9, cin, cout)
    w9 = jnp.pad(w9, ((0, 0), (0, cin_pad - cin), (0, cout_pad - cout)))
    w_flat = w9.reshape(kdim, cout_pad)
    w_flat = jnp.pad(w_flat, ((0, kdim_pad - kdim), (0, 0))).astype(jnp.bfloat16)

    # Row q of the flattened output is a real pixel iff (q // wcols) < h and
    # (q % wcols) < w (the W+2-wide flattening leaves 2 junk columns per row).
    q_idx = jnp.arange(qp, dtype=jnp.int32)
    valid = ((q_idx % wcols) < w) & ((q_idx // wcols) < h)
    mask = valid.astype(jnp.float32).reshape(qp, 1)

    # -------- phase 1: conv (single folded matmul) + per-tile BN partials ----
    kern1 = functools.partial(_conv_stats_kernel, tm=tm, halo_pad=halo_pad,
                              wcols=wcols, cin_pad=cin_pad)
    nxt = tm // halo_blk
    y_flat, psum, psq = pl.pallas_call(
        kern1,
        grid=(n, num_qt),
        in_specs=[
            pl.BlockSpec((None, tm, cin_pad), lambda i, j: (i, j, 0)),
            pl.BlockSpec((None, halo_blk, cin_pad),
                         lambda i, j: (i, (j + 1) * nxt, 0)),
            pl.BlockSpec((kdim_pad, cout_pad), lambda i, j: (0, 0)),
            pl.BlockSpec((tm, 1), lambda i, j: (j, 0)),
        ],
        out_specs=(
            pl.BlockSpec((None, tm, cout_pad), lambda i, j: (i, j, 0)),
            pl.BlockSpec((None, None, 1, cout_pad), lambda i, j: (i, j, 0, 0)),
            pl.BlockSpec((None, None, 1, cout_pad), lambda i, j: (i, j, 0, 0)),
        ),
        out_shape=(
            jax.ShapeDtypeStruct((n, qp, cout_pad), jnp.bfloat16),
            jax.ShapeDtypeStruct((n, num_qt, 1, cout_pad), jnp.float32),
            jax.ShapeDtypeStruct((n, num_qt, 1, cout_pad), jnp.float32),
        ),
        scratch_shapes=[
            pltpu.VMEM((tm + halo_pad, cin_pad), jnp.float32),   # row window
            pltpu.VMEM((tm, kdim_pad), jnp.bfloat16),            # folded LHS
        ],
        compiler_params=pltpu.CompilerParams(
            dimension_semantics=("parallel", "parallel")),
    )(x_flat, x_flat, w_flat, mask)

    # -------- tiny cross-tile reduction + BN fold (O(Cout) work) --------
    cnt = jnp.float32(n * h * w)
    sum_c = jnp.sum(psum[:, :, 0, :], axis=(0, 1))           # (cout_pad,)
    sq_c = jnp.sum(psq[:, :, 0, :], axis=(0, 1))
    mean = sum_c / cnt
    var = jnp.maximum(sq_c / cnt - mean * mean, 0.0)          # biased (training) var
    inv = jax.lax.rsqrt(var + BN_EPS)
    g_pad = jnp.pad(gamma.astype(jnp.float32), (0, cout_pad - cout))
    be_pad = jnp.pad(beta.astype(jnp.float32), (0, cout_pad - cout))
    scale = g_pad * inv
    shift = be_pad - mean * scale
    params = jnp.stack([scale, shift], axis=0)                # (2, cout_pad)

    # -------- phase 2: affine + ReLU, lane-dense, in place over y_flat --------
    out_flat = pl.pallas_call(
        _bn_relu_kernel,
        grid=(n, num_qt),
        in_specs=[
            pl.BlockSpec((None, tm, cout_pad), lambda i, j: (i, j, 0)),
            pl.BlockSpec((2, cout_pad), lambda i, j: (0, 0)),
        ],
        out_specs=pl.BlockSpec((None, tm, cout_pad), lambda i, j: (i, j, 0)),
        out_shape=jax.ShapeDtypeStruct((n, qp, cout_pad), jnp.bfloat16),
        input_output_aliases={0: 0},
        compiler_params=pltpu.CompilerParams(
            dimension_semantics=("parallel", "parallel")),
    )(y_flat, params)

    # ---- strip padding and return NCHW f32 (module interface) ----
    out = out_flat[:, :q_valid, :].reshape(n, h, wcols, cout_pad)
    out = out[:, :, :w, :cout].astype(jnp.float32)
    return jnp.transpose(out, (0, 3, 1, 2))


def _reference(x, conv_w, conv_b, gamma, beta):
    """Pure-JAX reference: Conv2d(3x3,pad=1) + BatchNorm2d(train) + ReLU."""
    y = jax.lax.conv_general_dilated(
        x, conv_w, window_strides=(1, 1), padding=((1, 1), (1, 1)),
        dimension_numbers=("NCHW", "OIHW", "NCHW"))
    y = y + conv_b[None, :, None, None]
    mean = jnp.mean(y, axis=(0, 2, 3), keepdims=True)
    var = jnp.mean((y - mean) ** 2, axis=(0, 2, 3), keepdims=True)
    y = (y - mean) * jax.lax.rsqrt(var + BN_EPS)
    y = y * gamma[None, :, None, None] + beta[None, :, None, None]
    return jnp.maximum(y, 0.0)


if __name__ == "__main__":
    key = jax.random.PRNGKey(0)
    k_x, k_w, k_b, k_g, k_be = jax.random.split(key, 5)

    N, Cin, H, W = 2, 4, 16, 16
    Cout, K = 8, 3

    x = jax.random.normal(k_x, (N, Cin, H, W), dtype=jnp.float32)

    # Deterministic parameter init (Kaiming-uniform-like bound, synthetic).
    fan_in = Cin * K * K
    bound = 1.0 / (fan_in ** 0.5)
    conv_w = jax.random.uniform(k_w, (Cout, Cin, K, K), jnp.float32, -bound, bound)
    conv_b = jax.random.uniform(k_b, (Cout,), jnp.float32, -bound, bound)
    gamma = 1.0 + 0.1 * jax.random.normal(k_g, (Cout,), jnp.float32)
    beta = 0.1 * jax.random.normal(k_be, (Cout,), jnp.float32)

    out = conv_block_forward(x, conv_w, conv_b, gamma, beta)
    jax.block_until_ready(out)

    assert out.shape == (N, Cout, H, W)
    assert bool(jnp.all(out >= 0.0))            # ReLU output is non-negative
    assert bool(jnp.all(jnp.isfinite(out)))

    ref = _reference(x, conv_w, conv_b, gamma, beta)
    assert bool(jnp.allclose(out, ref, atol=5e-2, rtol=5e-2)), \
        float(jnp.max(jnp.abs(out - ref)))

    print("KERNEL_OK")
</pallas_src>

<mosaic_0001>
module attributes {stable_mosaic.version = 11 : i64} {
  func.func @_conv_stats_kernel(%arg0: i32, %arg1: i32, %arg2: memref<1x288x8xf32, #tpu.memory_space<vmem>>, %arg3: memref<1x48x8xf32, #tpu.memory_space<vmem>>, %arg4: memref<128x128xbf16, #tpu.memory_space<vmem>>, %arg5: memref<288x1xf32, #tpu.memory_space<vmem>>, %arg6: memref<1x288x128xbf16, #tpu.memory_space<vmem>>, %arg7: memref<1x1x1x128xf32, #tpu.memory_space<vmem>>, %arg8: memref<1x1x1x128xf32, #tpu.memory_space<vmem>>, %arg9: memref<336x8xf32, #tpu.memory_space<vmem>>, %arg10: memref<288x128xbf16, #tpu.memory_space<vmem>>) attributes {dimension_semantics = [#tpu.dimension_semantics<parallel>, #tpu.dimension_semantics<parallel>], iteration_bounds = array<i64: 2, 1>, scalar_prefetch = 0 : i64, scratch_operands = 2 : i64, tpu.core_type = #tpu.core_type<tc>, window_params = [{transform_indices = @transform_0, window_bounds = array<i64: 1, 288, 8>}, {transform_indices = @transform_1, window_bounds = array<i64: 1, 48, 8>}, {pipeline_mode = #tpu.pipeline_mode<synchronous>, transform_indices = @transform_2, window_bounds = array<i64: 128, 128>}, {transform_indices = @transform_3, window_bounds = array<i64: 288, 1>}, {transform_indices = @transform_4, window_bounds = array<i64: 1, 288, 128>}, {transform_indices = @transform_5, window_bounds = array<i64: 1, 1, 1, 128>}, {transform_indices = @transform_6, window_bounds = array<i64: 1, 1, 1, 128>}]} {
    %c0 = arith.constant 0 : index
    %c0_0 = arith.constant 0 : index
    %c0_1 = arith.constant 0 : index
    %0 = vector.load %arg2[%c0, %c0_0, %c0_1] : memref<1x288x8xf32, #tpu.memory_space<vmem>>, vector<1x288x8xf32>
    %1 = vector.shape_cast %0 : vector<1x288x8xf32> to vector<288x8xf32>
    %c0_2 = arith.constant 0 : index
    %c0_3 = arith.constant 0 : index
    %2 = vector.load %arg9[%c0_2, %c0_3] : memref<336x8xf32, #tpu.memory_space<vmem>>, vector<288x8xf32>
    tpu.vector_store %arg9[%c0_2, %c0_3], %1 {strides = array<i32>} : memref<336x8xf32, #tpu.memory_space<vmem>>, vector<288x8xf32>,
    %c0_4 = arith.constant 0 : index
    %c0_5 = arith.constant 0 : index
    %c0_6 = arith.constant 0 : index
    %3 = vector.load %arg3[%c0_4, %c0_5, %c0_6] : memref<1x48x8xf32, #tpu.memory_space<vmem>>, vector<1x48x8xf32>
    %4 = vector.shape_cast %3 : vector<1x48x8xf32> to vector<48x8xf32>
    %c288 = arith.constant 288 : index
    %c0_7 = arith.constant 0 : index
    %5 = vector.load %arg9[%c288, %c0_7] : memref<336x8xf32, #tpu.memory_space<vmem>>, vector<48x8xf32>
    tpu.vector_store %arg9[%c288, %c0_7], %4 {strides = array<i32>} : memref<336x8xf32, #tpu.memory_space<vmem>>, vector<48x8xf32>,
    %cst = arith.constant 0.000000e+00 : bf16
    %6 = vector.broadcast %cst : bf16 to vector<288x56xbf16>
    %c0_8 = arith.constant 0 : index
    %c72 = arith.constant 72 : index
    %7 = vector.load %arg10[%c0_8, %c72] : memref<288x128xbf16, #tpu.memory_space<vmem>>, vector<288x56xbf16>
    tpu.vector_store %arg10[%c0_8, %c72], %6 {strides = array<i32>} : memref<288x128xbf16, #tpu.memory_space<vmem>>, vector<288x56xbf16>,
    %c0_9 = arith.constant 0 : index
    %c0_10 = arith.constant 0 : index
    %8 = vector.load %arg9[%c0_9, %c0_10] : memref<336x8xf32, #tpu.memory_space<vmem>>, vector<288x8xf32>
    %9 = arith.truncf %8 : vector<288x8xf32> to vector<288x8xbf16>
    %c0_11 = arith.constant 0 : index
    %c0_12 = arith.constant 0 : index
    %10 = vector.load %arg10[%c0_11, %c0_12] : memref<288x128xbf16, #tpu.memory_space<vmem>>, vector<288x8xbf16>
    tpu.vector_store %arg10[%c0_11, %c0_12], %9 {strides = array<i32>} : memref<288x128xbf16, #tpu.memory_space<vmem>>, vector<288x8xbf16>,
    %c1 = arith.constant 1 : index
    %c0_13 = arith.constant 0 : index
    %11 = vector.load %arg9[%c1, %c0_13] : memref<336x8xf32, #tpu.memory_space<vmem>>, vector<288x8xf32>
    %12 = arith.truncf %11 : vector<288x8xf32> to vector<288x8xbf16>
    %c0_14 = arith.constant 0 : index
    %c8 = arith.constant 8 : index
    %13 = vector.load %arg10[%c0_14, %c8] : memref<288x128xbf16, #tpu.memory_space<vmem>>, vector<288x8xbf16>
    tpu.vector_store %arg10[%c0_14, %c8], %12 {strides = array<i32>} : memref<288x128xbf16, #tpu.memory_space<vmem>>, vector<288x8xbf16>,
    %c2 = arith.constant 2 : index
    %c0_15 = arith.constant 0 : index
    %14 = vector.load %arg9[%c2, %c0_15] : memref<336x8xf32, #tpu.memory_space<vmem>>, vector<288x8xf32>
    %15 = arith.truncf %14 : vector<288x8xf32> to vector<288x8xbf16>
    %c0_16 = arith.constant 0 : index
    %c16 = arith.constant 16 : index
    %16 = vector.load %arg10[%c0_16, %c16] : memref<288x128xbf16, #tpu.memory_space<vmem>>, vector<288x8xbf16>
    tpu.vector_store %arg10[%c0_16, %c16], %15 {strides = array<i32>} : memref<288x128xbf16, #tpu.memory_space<vmem>>, vector<288x8xbf16>,
    %c18 = arith.constant 18 : index
    %c0_17 = arith.constant 0 : index
    %17 = vector.load %arg9[%c18, %c0_17] : memref<336x8xf32, #tpu.memory_space<vmem>>, vector<288x8xf32>
    %18 = arith.truncf %17 : vector<288x8xf32> to vector<288x8xbf16>
    %c0_18 = arith.constant 0 : index
    %c24 = arith.constant 24 : index
    %19 = vector.load %arg10[%c0_18, %c24] : memref<288x128xbf16, #tpu.memory_space<vmem>>, vector<288x8xbf16>
    tpu.vector_store %arg10[%c0_18, %c24], %18 {strides = array<i32>} : memref<288x128xbf16, #tpu.memory_space<vmem>>, vector<288x8xbf16>,
    %c19 = arith.constant 19 : index
    %c0_19 = arith.constant 0 : index
    %20 = vector.load %arg9[%c19, %c0_19] : memref<336x8xf32, #tpu.memory_space<vmem>>, vector<288x8xf32>
    %21 = arith.truncf %20 : vector<288x8xf32> to vector<288x8xbf16>
    %c0_20 = arith.constant 0 : index
    %c32 = arith.constant 32 : index
    %22 = vector.load %arg10[%c0_20, %c32] : memref<288x128xbf16, #tpu.memory_space<vmem>>, vector<288x8xbf16>
    tpu.vector_store %arg10[%c0_20, %c32], %21 {strides = array<i32>} : memref<288x128xbf16, #tpu.memory_space<vmem>>, vector<288x8xbf16>,
    %c20 = arith.constant 20 : index
    %c0_21 = arith.constant 0 : index
    %23 = vector.load %arg9[%c20, %c0_21] : memref<336x8xf32, #tpu.memory_space<vmem>>, vector<288x8xf32>
    %24 = arith.truncf %23 : vector<288x8xf32> to vector<288x8xbf16>
    %c0_22 = arith.constant 0 : index
    %c40 = arith.constant 40 : index
    %25 = vector.load %arg10[%c0_22, %c40] : memref<288x128xbf16, #tpu.memory_space<vmem>>, vector<288x8xbf16>
    tpu.vector_store %arg10[%c0_22, %c40], %24 {strides = array<i32>} : memref<288x128xbf16, #tpu.memory_space<vmem>>, vector<288x8xbf16>,
    %c36 = arith.constant 36 : index
    %c0_23 = arith.constant 0 : index
    %26 = vector.load %arg9[%c36, %c0_23] : memref<336x8xf32, #tpu.memory_space<vmem>>, vector<288x8xf32>
    %27 = arith.truncf %26 : vector<288x8xf32> to vector<288x8xbf16>
    %c0_24 = arith.constant 0 : index
    %c48 = arith.constant 48 : index
    %28 = vector.load %arg10[%c0_24, %c48] : memref<288x128xbf16, #tpu.memory_space<vmem>>, vector<288x8xbf16>
    tpu.vector_store %arg10[%c0_24, %c48], %27 {strides = array<i32>} : memref<288x128xbf16, #tpu.memory_space<vmem>>, vector<288x8xbf16>,
    %c37 = arith.constant 37 : index
    %c0_25 = arith.constant 0 : index
    %29 = vector.load %arg9[%c37, %c0_25] : memref<336x8xf32, #tpu.memory_space<vmem>>, vector<288x8xf32>
    %30 = arith.truncf %29 : vector<288x8xf32> to vector<288x8xbf16>
    %c0_26 = arith.constant 0 : index
    %c56 = arith.constant 56 : index
    %31 = vector.load %arg10[%c0_26, %c56] : memref<288x128xbf16, #tpu.memory_space<vmem>>, vector<288x8xbf16>
    tpu.vector_store %arg10[%c0_26, %c56], %30 {strides = array<i32>} : memref<288x128xbf16, #tpu.memory_space<vmem>>, vector<288x8xbf16>,
    %c38 = arith.constant 38 : index
    %c0_27 = arith.constant 0 : index
    %32 = vector.load %arg9[%c38, %c0_27] : memref<336x8xf32, #tpu.memory_space<vmem>>, vector<288x8xf32>
    %33 = arith.truncf %32 : vector<288x8xf32> to vector<288x8xbf16>
    %c0_28 = arith.constant 0 : index
    %c64 = arith.constant 64 : index
    %34 = vector.load %arg10[%c0_28, %c64] : memref<288x128xbf16, #tpu.memory_space<vmem>>, vector<288x8xbf16>
    tpu.vector_store %arg10[%c0_28, %c64], %33 {strides = array<i32>} : memref<288x128xbf16, #tpu.memory_space<vmem>>, vector<288x8xbf16>,
    %c0_29 = arith.constant 0 : index
    %c0_30 = arith.constant 0 : index
    %35 = vector.load %arg10[%c0_29, %c0_30] : memref<288x128xbf16, #tpu.memory_space<vmem>>, vector<288x128xbf16>
    %c0_31 = arith.constant 0 : index
    %c0_32 = arith.constant 0 : index
    %36 = vector.load %arg4[%c0_31, %c0_32] : memref<128x128xbf16, #tpu.memory_space<vmem>>, vector<128x128xbf16>
    %cst_33 = arith.constant dense<0.000000e+00> : vector<288x128xf32>
    %37 = tpu.matmul %35, %36, %cst_33 {dimension_numbers = #tpu.dot_dimension_numbers<[1], [0], [0], [1], [0, 0, 1, 1], [], []>} : vector<288x128xbf16>, vector<128x128xbf16>, vector<288x128xf32> -> vector<288x128xf32>
    %c0_34 = arith.constant 0 : index
    %c0_35 = arith.constant 0 : index
    %38 = vector.load %arg5[%c0_34, %c0_35] : memref<288x1xf32, #tpu.memory_space<vmem>>, vector<288x1xf32>
    %39 = vector.broadcast %38 : vector<288x1xf32> to vector<288x128xf32>
    %40 = arith.mulf %37, %39 : vector<288x128xf32>
    %cst_36 = arith.constant dense<0.000000e+00> : vector<128xf32>
    %41 = vector.multi_reduction <add>, %40, %cst_36 [0] : vector<288x128xf32> to vector<128xf32>
    %42 = vector.shape_cast %41 : vector<128xf32> to vector<1x128xf32>
    %c0_37 = arith.constant 0 : index
    %c0_38 = arith.constant 0 : index
    %c0_39 = arith.constant 0 : index
    %c0_40 = arith.constant 0 : index
    %43 = vector.load %arg7[%c0_37, %c0_38, %c0_39, %c0_40] : memref<1x1x1x128xf32, #tpu.memory_space<vmem>>, vector<1x1x1x128xf32>
    %44 = vector.shape_cast %43 : vector<1x1x1x128xf32> to vector<1x128xf32>
    %45 = vector.shape_cast %42 : vector<1x128xf32> to vector<1x1x1x128xf32>
    tpu.vector_store %arg7[%c0_37, %c0_38, %c0_39, %c0_40], %45 {strides = array<i32>} : memref<1x1x1x128xf32, #tpu.memory_space<vmem>>, vector<1x1x1x128xf32>,
    %46 = arith.mulf %40, %40 : vector<288x128xf32>
    %cst_41 = arith.constant dense<0.000000e+00> : vector<128xf32>
    %47 = vector.multi_reduction <add>, %46, %cst_41 [0] : vector<288x128xf32> to vector<128xf32>
    %48 = vector.shape_cast %47 : vector<128xf32> to vector<1x128xf32>
    %c0_42 = arith.constant 0 : index
    %c0_43 = arith.constant 0 : index
    %c0_44 = arith.constant 0 : index
    %c0_45 = arith.constant 0 : index
    %49 = vector.load %arg8[%c0_42, %c0_43, %c0_44, %c0_45] : memref<1x1x1x128xf32, #tpu.memory_space<vmem>>, vector<1x1x1x128xf32>
    %50 = vector.shape_cast %49 : vector<1x1x1x128xf32> to vector<1x128xf32>
    %51 = vector.shape_cast %48 : vector<1x128xf32> to vector<1x1x1x128xf32>
    tpu.vector_store %arg8[%c0_42, %c0_43, %c0_44, %c0_45], %51 {strides = array<i32>} : memref<1x1x1x128xf32, #tpu.memory_space<vmem>>, vector<1x1x1x128xf32>,
    %52 = arith.truncf %37 : vector<288x128xf32> to vector<288x128xbf16>
    %c0_46 = arith.constant 0 : index
    %c0_47 = arith.constant 0 : index
    %c0_48 = arith.constant 0 : index
    %53 = vector.load %arg6[%c0_46, %c0_47, %c0_48] : memref<1x288x128xbf16, #tpu.memory_space<vmem>>, vector<1x288x128xbf16>
    %54 = vector.shape_cast %53 : vector<1x288x128xbf16> to vector<288x128xbf16>
    %55 = vector.shape_cast %52 : vector<288x128xbf16> to vector<1x288x128xbf16>
    tpu.vector_store %arg6[%c0_46, %c0_47, %c0_48], %55 {strides = array<i32>} : memref<1x288x128xbf16, #tpu.memory_space<vmem>>, vector<1x288x128xbf16>,
    return
  }
  func.func @transform_0(%arg0: i32, %arg1: i32) -> (i32, i32, i32) {
    %c0_i32 = arith.constant 0 : i32
    %c0_i32_0 = arith.constant 0 : i32
    return %arg0, %arg1, %c0_i32 : i32, i32, i32
  }
  func.func @transform_1(%arg0: i32, %arg1: i32) -> (i32, i32, i32) {
    %c1_i32 = arith.constant 1 : i32
    %0 = arith.addi %arg1, %c1_i32 : i32
    %c6_i32 = arith.constant 6 : i32
    %1 = arith.muli %0, %c6_i32 : i32
    %c0_i32 = arith.constant 0 : i32
    %c0_i32_0 = arith.constant 0 : i32
    return %arg0, %1, %c0_i32 : i32, i32, i32
  }
  func.func @transform_2(%arg0: i32, %arg1: i32) -> (i32, i32) {
    %c0_i32 = arith.constant 0 : i32
    %c0_i32_0 = arith.constant 0 : i32
    %c0_i32_1 = arith.constant 0 : i32
    return %c0_i32, %c0_i32_0 : i32, i32
  }
  func.func @transform_3(%arg0: i32, %arg1: i32) -> (i32, i32) {
    %c0_i32 = arith.constant 0 : i32
    %c0_i32_0 = arith.constant 0 : i32
    return %arg1, %c0_i32 : i32, i32
  }
  func.func @transform_4(%arg0: i32, %arg1: i32) -> (i32, i32, i32) {
    %c0_i32 = arith.constant 0 : i32
    %c0_i32_0 = arith.constant 0 : i32
    return %arg0, %arg1, %c0_i32 : i32, i32, i32
  }
  func.func @transform_5(%arg0: i32, %arg1: i32) -> (i32, i32, i32, i32) {
    %c0_i32 = arith.constant 0 : i32
    %c0_i32_0 = arith.constant 0 : i32
    %c0_i32_1 = arith.constant 0 : i32
    return %arg0, %arg1, %c0_i32, %c0_i32_0 : i32, i32, i32, i32
  }
  func.func @transform_6(%arg0: i32, %arg1: i32) -> (i32, i32, i32, i32) {
    %c0_i32 = arith.constant 0 : i32
    %c0_i32_0 = arith.constant 0 : i32
    %c0_i32_1 = arith.constant 0 : i32
    return %arg0, %arg1, %c0_i32, %c0_i32_0 : i32, i32, i32, i32
  }
}

module attributes {stable_mosaic.version = 11 : i64} {
  func.func @_bn_relu_kernel(%arg0: i32, %arg1: i32, %arg2: memref<1x288x128xbf16, #tpu.memory_space<vmem>>, %arg3: memref<2x128xf32, #tpu.memory_space<vmem>>, %arg4: memref<1x288x128xbf16, #tpu.memory_space<vmem>>) attributes {dimension_semantics = [#tpu.dimension_semantics<parallel>, #tpu.dimension_semantics<parallel>], iteration_bounds = array<i64: 2, 1>, scalar_prefetch = 0 : i64, scratch_operands = 0 : i64, tpu.core_type = #tpu.core_type<tc>, window_params = [{transform_indices = @transform_0, window_bounds = array<i64: 1, 288, 128>}, {pipeline_mode = #tpu.pipeline_mode<synchronous>, transform_indices = @transform_1, window_bounds = array<i64: 2, 128>}, {transform_indices = @transform_2, window_bounds = array<i64: 1, 288, 128>}]} {
    %c0 = arith.constant 0 : index
    %c0_0 = arith.constant 0 : index
    %0 = vector.load %arg3[%c0, %c0_0] : memref<2x128xf32, #tpu.memory_space<vmem>>, vector<1x128xf32>
    %c1 = arith.constant 1 : index
    %c0_1 = arith.constant 0 : index
    %1 = vector.load %arg3[%c1, %c0_1] : memref<2x128xf32, #tpu.memory_space<vmem>>, vector<1x128xf32>
    %c0_2 = arith.constant 0 : index
    %c0_3 = arith.constant 0 : index
    %c0_4 = arith.constant 0 : index
    %2 = vector.load %arg2[%c0_2, %c0_3, %c0_4] : memref<1x288x128xbf16, #tpu.memory_space<vmem>>, vector<1x288x128xbf16>
    %3 = vector.shape_cast %2 : vector<1x288x128xbf16> to vector<288x128xbf16>
    %4 = arith.extf %3 : vector<288x128xbf16> to vector<288x128xf32>
    %5 = vector.broadcast %0 : vector<1x128xf32> to vector<288x128xf32>
    %6 = arith.mulf %4, %5 : vector<288x128xf32>
    %7 = vector.broadcast %1 : vector<1x128xf32> to vector<288x128xf32>
    %8 = arith.addf %6, %7 : vector<288x128xf32>
    %cst = arith.constant 0.000000e+00 : f32
    %9 = vector.broadcast %cst : f32 to vector<288x128xf32>
    %10 = arith.maximumf %8, %9 : vector<288x128xf32>
    %11 = arith.truncf %10 : vector<288x128xf32> to vector<288x128xbf16>
    %c0_5 = arith.constant 0 : index
    %c0_6 = arith.constant 0 : index
    %c0_7 = arith.constant 0 : index
    %12 = vector.load %arg4[%c0_5, %c0_6, %c0_7] : memref<1x288x128xbf16, #tpu.memory_space<vmem>>, vector<1x288x128xbf16>
    %13 = vector.shape_cast %12 : vector<1x288x128xbf16> to vector<288x128xbf16>
    %14 = vector.shape_cast %11 : vector<288x128xbf16> to vector<1x288x128xbf16>
    tpu.vector_store %arg4[%c0_5, %c0_6, %c0_7], %14 {strides = array<i32>} : memref<1x288x128xbf16, #tpu.memory_space<vmem>>, vector<1x288x128xbf16>,
    return
  }
  func.func @transform_0(%arg0: i32, %arg1: i32) -> (i32, i32, i32) {
    %c0_i32 = arith.constant 0 : i32
    %c0_i32_0 = arith.constant 0 : i32
    return %arg0, %arg1, %c0_i32 : i32, i32, i32
  }
  func.func @transform_1(%arg0: i32, %arg1: i32) -> (i32, i32) {
    %c0_i32 = arith.constant 0 : i32
    %c0_i32_0 = arith.constant 0 : i32
    %c0_i32_1 = arith.constant 0 : i32
    return %c0_i32, %c0_i32_0 : i32, i32
  }
  func.func @transform_2(%arg0: i32, %arg1: i32) -> (i32, i32, i32) {
    %c0_i32 = arith.constant 0 : i32
    %c0_i32_0 = arith.constant 0 : i32
    return %arg0, %arg1, %c0_i32 : i32, i32, i32
  }
}

</mosaic_0001>

<llo_original>
// kernel: conv_block_forward.3
$region0: #{conv_block_forward.3}
  #allocation0 [shape = 'u32[]', space=smem, size = 0x4, offset = 0x4, fixed_abs, tag = 'smem constant byte address 0x4 - core index']
  #allocation1 [shape = 'u32[144,128]{1,0:T(1,128)}', space=vmem, size = 0x12000, scoped, tag = 'internal scratch']
  %s0 = inlined_call_operand.vmem [shape: bf16[2,288,128], index: 0, kind: input, shape index: {}, may-alias: {0,2}]
  %s1 = inlined_call_operand.vmem [shape: f32[2,128], index: 1, kind: input, shape index: {}]
  %s2 = inlined_call_operand.vmem [shape: bf16[2,288,128], index: 2, kind: output, shape index: {}, may-alias: {0,2}]
  %s3 = sld [smem:[#allocation0]]
  $region41: #{conv_block_forward.3} parent=0
    _
  %s5 = ssub.s32 1, %s3
  %s6 = scalar_select 0, %s5, %s3
  loop: start=0, step=1, limit=4
  $region2: #{conv_block_forward.3} parent=0 // loop_pre_header
    _
  $region3: #{conv_block_forward.3} parent=0 // loop_header
    %s8 = sphi 0, %s12
    %p9 = scmp.ge.s32.totalorder %s8, 4
    %s15 = sphi 0, %s27
    %s16 = sphi 0, %s23
    %s17 = sphi 0, %s15
    %s18 = sphi 0, %s16
    %s19 = sphi 0, %s17
    %s20 = sphi 0, %s18
    %s32 = sphi 0, %s34
    %s35 = sphi 0, %s32
    %s36 = sphi 0, %s35
    %s52 = sphi 0, %s36
    %s56 = sphi 0, %s56
    %s58 = sphi 0, %s56
    %s59 = sphi 0, %s58
    %s73 = sphi 0, %s59
    %s81 = sphi 0, %s83
    %s84 = sphi 0, %s81
    %s85 = sphi 0, %s84
    %s101 = sphi 0, %s85
  $region4: #{conv_block_forward.3} parent=0 // loop_header_branch
    %11 = sbr.rel (%p9) target = $region8
  $region5: #{conv_block_forward.3} parent=0 // loop_body
    %s13 = ssub.s32 %s8, 1
    %s14 = ssub.s32 %s8, 2
    %s21 = sadd.s32 1, %s16
    %p22 = scmp.ge.s32.totalorder %s21, 1
    %s23 = scalar_select %p22, 0, %s21
    %s24 = sadd.s32 1, %s15
    %s25 = scalar_select %p22, %s24, %s15
    %p26 = scmp.ge.s32.totalorder %s25, 2
    %s27 = scalar_select %p26, 0, %s25
    %s28 = ssub.s32 %s15, %s27
    %s29 = ssub.s32 %s16, %s23
    %s30 = sor.u32 %s28, %s29
    %p31 = scmp.eq.s32.totalorder %s30, 0
    %s33 = sadd.s32 %s32, 1
    %s34 = scalar_select %p31, %s32, %s33
    %p37 = pneg %p31
    %p38 = scmp.eq.s32.totalorder %s8, 1
    %p39 = por %p37, %p38
    %p40 = scmp.ne.s32.totalorder %s32, %s35
    %p41 = scmp.eq.s32.totalorder %s8, 0
    %p42 = por %p40, %p41
    %p43 = scmp.ne.s32.totalorder %s32, %s35
    %p44 = scmp.eq.s32.totalorder %s13, 1
    %p45 = por %p43, %p44
    %p46 = scmp.ne.s32.totalorder %s35, %s36
    %p47 = scmp.eq.s32.totalorder %s13, 0
    %p48 = por %p46, %p47
    %p49 = scmp.ne.s32.totalorder %s35, %s36
    %p50 = scmp.eq.s32.totalorder %s14, 1
    %p51 = por %p49, %p50
    %p53 = scmp.ne.s32.totalorder %s36, %s52
    %p54 = scmp.eq.s32.totalorder %s14, 0
    %p55 = por %p53, %p54
    %s57 = sadd.s32 %s56, 1
    %p60 = scmp.eq.s32.totalorder %s8, 1
    %p61 = scmp.ne.s32.totalorder %s56, %s58
    %p62 = scmp.eq.s32.totalorder %s8, 0
    %p63 = por %p61, %p62
    %p64 = scmp.ne.s32.totalorder %s56, %s58
    %p65 = scmp.eq.s32.totalorder %s13, 1
    %p66 = por %p64, %p65
    %p67 = scmp.ne.s32.totalorder %s58, %s59
    %p68 = scmp.eq.s32.totalorder %s13, 0
    %p69 = por %p67, %p68
    %p70 = scmp.ne.s32.totalorder %s58, %s59
    %p71 = scmp.eq.s32.totalorder %s14, 1
    %p72 = por %p70, %p71
    %p74 = scmp.ne.s32.totalorder %s59, %s73
    %p75 = scmp.eq.s32.totalorder %s14, 0
    %p76 = por %p74, %p75
    %s77 = ssub.s32 %s15, %s27
    %s78 = ssub.s32 %s16, %s23
    %s79 = sor.u32 %s77, %s78
    %p80 = scmp.eq.s32.totalorder %s79, 0
    %s82 = sadd.s32 %s81, 1
    %s83 = scalar_select %p80, %s81, %s82
    %p86 = pneg %p80
    %p87 = scmp.eq.s32.totalorder %s8, 1
    %p88 = por %p86, %p87
    %p89 = scmp.ne.s32.totalorder %s81, %s84
    %p90 = scmp.eq.s32.totalorder %s8, 0
    %p91 = por %p89, %p90
    %p92 = scmp.ne.s32.totalorder %s81, %s84
    %p93 = scmp.eq.s32.totalorder %s13, 1
    %p94 = por %p92, %p93
    %p95 = scmp.ne.s32.totalorder %s84, %s85
    %p96 = scmp.eq.s32.totalorder %s13, 0
    %p97 = por %p95, %p96
    %p98 = scmp.ne.s32.totalorder %s84, %s85
    %p99 = scmp.eq.s32.totalorder %s14, 1
    %p100 = por %p98, %p99
    %p102 = scmp.ne.s32.totalorder %s85, %s101
    %p103 = scmp.eq.s32.totalorder %s14, 0
    %p104 = por %p102, %p103
    %p105 = scmp.le.s32.totalorder 1, %s8
    %p106 = scmp.lt.s32.totalorder %s8, 3
    %p107 = pnand %p105, %p106
    %p108 = pneg %p107
    // Predicated region
    $region9: #{conv_block_forward.3} parent=5 // pred_check
      _
    $region10: #{conv_block_forward.3} parent=5 // pred_check_branch
      %110 = sbr.rel (%p107) target = $region12
    $region11: #{conv_block_forward.3} parent=5 // pred_region
      %s111 = ssub.s32 %s8, 1
      // Predicated region
      $region13: #{conv_block_forward.3} parent=11 // pred_check
        %p112 = pneg %p69
      $region14: #{conv_block_forward.3} parent=11 // pred_check_branch
        %114 = sbr.rel (%p112) target = $region16
      $region15: #{conv_block_forward.3} parent=11 // pred_region
        _
      $region16: #{conv_block_forward.3} parent=11 // pred_fallthru
        _
    $region12: #{conv_block_forward.3} parent=5 // pred_fallthru
      _
    %p115 = scmp.lt.s32.totalorder %s8, 2
    // Predicated region
    $region17: #{conv_block_forward.3} parent=5 // pred_check
      %p116 = pneg %p115
    $region18: #{conv_block_forward.3} parent=5 // pred_check_branch
      %118 = sbr.rel (%p116) target = $region20
    $region19: #{conv_block_forward.3} parent=5 // pred_region
      // Predicated region
      $region21: #{conv_block_forward.3} parent=19 // pred_check
        %p119 = pneg %p42
      $region22: #{conv_block_forward.3} parent=19 // pred_check_branch
        %121 = sbr.rel (%p119) target = $region24
      $region23: #{conv_block_forward.3} parent=19 // pred_region
        %s122 = smul.u32 36, %s16
        %p123 = scmp.lt.s32.totalorder %s15, 1
        %s124 = scalar_select %p123, %s15, 1
        %p125 = scmp.lt.s32.totalorder %s122, 35
        %s126 = scalar_select %p125, %s122, 35
        %s127 = smul.addr %s124, 36
        %s128 = sadd.s32 %s126, %s127
        %s129 = smul.addr %s128, 4
        %s130 = scalar_lea.vmem %s0, %s129
        %s131 = smul.u32 36, %s16
      $region24: #{conv_block_forward.3} parent=19 // pred_fallthru
        _
    $region20: #{conv_block_forward.3} parent=5 // pred_fallthru
      _
    %p132 = scmp.le.s32.totalorder 1, %s8
    %p133 = scmp.lt.s32.totalorder %s8, 3
    %p134 = pnand %p132, %p133
    %p135 = pneg %p134
    // Predicated region
    $region25: #{conv_block_forward.3} parent=5 // pred_check
      _
    $region26: #{conv_block_forward.3} parent=5 // pred_check_branch
      %137 = sbr.rel (%p134) target = $region28
    $region27: #{conv_block_forward.3} parent=5 // pred_region
      %s138 = ssub.s32 %s8, 1
      %s139 = smul.u32 36, %s18
      %p140 = scmp.lt.s32.totalorder %s17, 1
      %s141 = scalar_select %p140, %s17, 1
      %p142 = scmp.lt.s32.totalorder %s139, 35
      %s143 = scalar_select %p142, %s139, 35
      %s144 = smul.addr %s141, 36
      %s145 = sadd.s32 %s143, %s144
      %s146 = smul.addr %s145, 4
      %s147 = scalar_lea.vmem %s0, %s146
      %p148 = pneg %p48
      %p149 = pneg %p45
      %p150 = pneg %p69
      %p151 = pneg %p66
      %p152 = pneg %p97
      %p153 = pneg %p94
      %s154 = smul.u32 36, %s18
      %p155 = scmp.lt.s32.totalorder %s17, 1
      %s156 = scalar_select %p155, %s17, 1
      %p157 = scmp.lt.s32.totalorder %s154, 35
      %s158 = scalar_select %p157, %s154, 35
      %s159 = smul.addr %s156, 36
      %s160 = sadd.s32 %s158, %s159
      %s161 = smul.addr %s160, 4
      %s162 = scalar_lea.vmem %s2, %s161
      %s163 = smul.u32 36, %s18
      %p164 = scmp.lt.s32.totalorder %s17, 1
      %s165 = scalar_select %p164, %s17, 1
      %p166 = scmp.lt.s32.totalorder %s163, 35
      %s167 = scalar_select %p166, %s163, 35
      %s168 = smul.addr %s165, 36
      %s169 = sadd.s32 %s167, %s168
      %s170 = smul.addr %s169, 4
      %s171 = scalar_lea.vmem %s0, %s170
      %s172 = smul.u32 36, %s18
      %s173 = smul.u32 36, %s18
      %p174 = scmp.lt.s32.totalorder %s17, 1
      %s175 = scalar_select %p174, %s17, 1
      %p176 = scmp.lt.s32.totalorder %s173, 35
      %s177 = scalar_select %p176, %s173, 35
      %s178 = smul.addr %s175, 36
      %s179 = sadd.s32 %s177, %s178
      %s180 = smul.addr %s179, 4
      %s181 = scalar_lea.vmem %s2, %s180
      %s182 = smul.u32 36, %s18
      %v183 = vld [vmem:[%s1] sm:$0x1]
      %v184 = vld [vmem:[%s1 + $0x1] sm:$0x1]
      %v185 = vld [vmem:[%s171] sm:$0xf]
      %v186 = vld [vmem:[%s171 + $0x4] sm:$0xf]
      %v187 = vld [vmem:[%s171 + $0x8] sm:$0xf]
      %v188 = vld [vmem:[%s171 + $0xc] sm:$0xf]
      %v189 = vld [vmem:[%s171 + $0x10] sm:$0xf]
      %v190 = vld [vmem:[%s171 + $0x14] sm:$0xf]
      %v191 = vld [vmem:[%s171 + $0x18] sm:$0xf]
      %v192 = vld [vmem:[%s171 + $0x1c] sm:$0xf]
      %v193 = vld [vmem:[%s171 + $0x20] sm:$0xf]
      %v194 = vld [vmem:[%s171 + $0x24] sm:$0xf]
      %v195 = vld [vmem:[%s171 + $0x28] sm:$0xf]
      %v196 = vld [vmem:[%s171 + $0x2c] sm:$0xf]
      %v197 = vld [vmem:[%s171 + $0x30] sm:$0xf]
      %v198 = vld [vmem:[%s171 + $0x34] sm:$0xf]
      %v199 = vld [vmem:[%s171 + $0x38] sm:$0xf]
      %v200 = vld [vmem:[%s171 + $0x3c] sm:$0xf]
      %v201 = vld [vmem:[%s171 + $0x40] sm:$0xf]
      %v202 = vld [vmem:[%s171 + $0x44] sm:$0xf]
      %v203 = vld [vmem:[%s171 + $0x48] sm:$0xf]
      %v204 = vld [vmem:[%s171 + $0x4c] sm:$0xf]
      %v205 = vld [vmem:[%s171 + $0x50] sm:$0xf]
      %v206 = vld [vmem:[%s171 + $0x54] sm:$0xf]
      %v207 = vld [vmem:[%s171 + $0x58] sm:$0xf]
      %v208 = vld [vmem:[%s171 + $0x5c] sm:$0xf]
      %v209 = vld [vmem:[%s171 + $0x60] sm:$0xf]
      %v210 = vld [vmem:[%s171 + $0x64] sm:$0xf]
      %v211 = vld [vmem:[%s171 + $0x68] sm:$0xf]
      %v212 = vld [vmem:[%s171 + $0x6c] sm:$0xf]
      %v213 = vld [vmem:[%s171 + $0x70] sm:$0xf]
      %v214 = vld [vmem:[%s171 + $0x74] sm:$0xf]
      %v215 = vld [vmem:[%s171 + $0x78] sm:$0xf]
      %v216 = vld [vmem:[%s171 + $0x7c] sm:$0xf]
      %v217 = vld [vmem:[%s171 + $0x80] sm:$0xf]
      %v218 = vld [vmem:[%s171 + $0x84] sm:$0xf]
      %v219 = vld [vmem:[%s171 + $0x88] sm:$0xf]
      %v220 = vld [vmem:[%s171 + $0x8c] sm:$0xf]
      %v221 = vunpack.c.l.bf16 %v185
      %v222 = vunpack.c.l.bf16 %v186
      %v223 = vunpack.c.l.bf16 %v187
      %v224 = vunpack.c.l.bf16 %v188
      %v225 = vunpack.c.l.bf16 %v189
      %v226 = vunpack.c.l.bf16 %v190
      %v227 = vunpack.c.l.bf16 %v191
      %v228 = vunpack.c.l.bf16 %v192
      %v229 = vunpack.c.l.bf16 %v193
      %v230 = vunpack.c.l.bf16 %v194
      %v231 = vunpack.c.l.bf16 %v195
      %v232 = vunpack.c.l.bf16 %v196
      %v233 = vunpack.c.l.bf16 %v197
      %v234 = vunpack.c.l.bf16 %v198
      %v235 = vunpack.c.l.bf16 %v199
      %v236 = vunpack.c.l.bf16 %v200
      %v237 = vunpack.c.l.bf16 %v201
      %v238 = vunpack.c.l.bf16 %v202
      %v239 = vunpack.c.l.bf16 %v203
      %v240 = vunpack.c.l.bf16 %v204
      %v241 = vunpack.c.l.bf16 %v205
      %v242 = vunpack.c.l.bf16 %v206
      %v243 = vunpack.c.l.bf16 %v207
      %v244 = vunpack.c.l.bf16 %v208
      %v245 = vunpack.c.l.bf16 %v209
      %v246 = vunpack.c.l.bf16 %v210
      %v247 = vunpack.c.l.bf16 %v211
      %v248 = vunpack.c.l.bf16 %v212
      %v249 = vunpack.c.l.bf16 %v213
      %v250 = vunpack.c.l.bf16 %v214
      %v251 = vunpack.c.l.bf16 %v215
      %v252 = vunpack.c.l.bf16 %v216
      %v253 = vunpack.c.l.bf16 %v217
      %v254 = vunpack.c.l.bf16 %v218
      %v255 = vunpack.c.l.bf16 %v219
      %v256 = vunpack.c.l.bf16 %v220
      %v257 = vlaneseq
      %v258 = vshrl.u32 %v257, 7
      %v259 = vsub.s32 0, %v258
      %v260 = vrot.slane %v183, %v259
      %v261 = vmul.f32 %v221, %v260
      %v262 = vmul.f32 %v222, %v260
      %v263 = vmul.f32 %v223, %v260
      %v264 = vmul.f32 %v224, %v260
      %v265 = vmul.f32 %v225, %v260
      %v266 = vmul.f32 %v226, %v260
      %v267 = vmul.f32 %v227, %v260
      %v268 = vmul.f32 %v228, %v260
      %v269 = vmul.f32 %v229, %v260
      %v270 = vmul.f32 %v230, %v260
      %v271 = vmul.f32 %v231, %v260
      %v272 = vmul.f32 %v232, %v260
      %v273 = vmul.f32 %v233, %v260
      %v274 = vmul.f32 %v234, %v260
      %v275 = vmul.f32 %v235, %v260
      %v276 = vmul.f32 %v236, %v260
      %v277 = vmul.f32 %v237, %v260
      %v278 = vmul.f32 %v238, %v260
      %v279 = vmul.f32 %v239, %v260
      %v280 = vmul.f32 %v240, %v260
      %v281 = vmul.f32 %v241, %v260
      %v282 = vmul.f32 %v242, %v260
      %v283 = vmul.f32 %v243, %v260
      %v284 = vmul.f32 %v244, %v260
      %v285 = vmul.f32 %v245, %v260
      %v286 = vmul.f32 %v246, %v260
      %v287 = vmul.f32 %v247, %v260
      %v288 = vmul.f32 %v248, %v260
      %v289 = vmul.f32 %v249, %v260
      %v290 = vmul.f32 %v250, %v260
      %v291 = vmul.f32 %v251, %v260
      %v292 = vmul.f32 %v252, %v260
      %v293 = vmul.f32 %v253, %v260
      %v294 = vmul.f32 %v254, %v260
      %v295 = vmul.f32 %v255, %v260
      %v296 = vmul.f32 %v256, %v260
      %v297 = vlaneseq
      %v298 = vshrl.u32 %v297, 7
      %v299 = vsub.s32 0, %v298
      %v300 = vrot.slane %v184, %v299
      %v301 = vadd.f32 %v261, %v300
      %v302 = vadd.f32 %v262, %v300
      %v303 = vadd.f32 %v263, %v300
      %v304 = vadd.f32 %v264, %v300
      %v305 = vadd.f32 %v265, %v300
      %v306 = vadd.f32 %v266, %v300
      %v307 = vadd.f32 %v267, %v300
      %v308 = vadd.f32 %v268, %v300
      %v309 = vadd.f32 %v269, %v300
      %v310 = vadd.f32 %v270, %v300
      %v311 = vadd.f32 %v271, %v300
      %v312 = vadd.f32 %v272, %v300
      %v313 = vadd.f32 %v273, %v300
      %v314 = vadd.f32 %v274, %v300
      %v315 = vadd.f32 %v275, %v300
      %v316 = vadd.f32 %v276, %v300
      %v317 = vadd.f32 %v277, %v300
      %v318 = vadd.f32 %v278, %v300
      %v319 = vadd.f32 %v279, %v300
      %v320 = vadd.f32 %v280, %v300
      %v321 = vadd.f32 %v281, %v300
      %v322 = vadd.f32 %v282, %v300
      %v323 = vadd.f32 %v283, %v300
      %v324 = vadd.f32 %v284, %v300
      %v325 = vadd.f32 %v285, %v300
      %v326 = vadd.f32 %v286, %v300
      %v327 = vadd.f32 %v287, %v300
      %v328 = vadd.f32 %v288, %v300
      %v329 = vadd.f32 %v289, %v300
      %v330 = vadd.f32 %v290, %v300
      %v331 = vadd.f32 %v291, %v300
      %v332 = vadd.f32 %v292, %v300
      %v333 = vadd.f32 %v293, %v300
      %v334 = vadd.f32 %v294, %v300
      %v335 = vadd.f32 %v295, %v300
      %v336 = vadd.f32 %v296, %v300
      %v337 = vmax.f32 %v301, 0.0
      %v338 = vmax.f32 %v302, 0.0
      %v339 = vmax.f32 %v303, 0.0
      %v340 = vmax.f32 %v304, 0.0
      %v341 = vmax.f32 %v305, 0.0
      %v342 = vmax.f32 %v306, 0.0
      %v343 = vmax.f32 %v307, 0.0
      %v344 = vmax.f32 %v308, 0.0
      %v345 = vmax.f32 %v309, 0.0
      %v346 = vmax.f32 %v310, 0.0
      %v347 = vmax.f32 %v311, 0.0
      %v348 = vmax.f32 %v312, 0.0
      %v349 = vmax.f32 %v313, 0.0
      %v350 = vmax.f32 %v314, 0.0
      %v351 = vmax.f32 %v315, 0.0
      %v352 = vmax.f32 %v316, 0.0
      %v353 = vmax.f32 %v317, 0.0
      %v354 = vmax.f32 %v318, 0.0
      %v355 = vmax.f32 %v319, 0.0
      %v356 = vmax.f32 %v320, 0.0
      %v357 = vmax.f32 %v321, 0.0
      %v358 = vmax.f32 %v322, 0.0
      %v359 = vmax.f32 %v323, 0.0
      %v360 = vmax.f32 %v324, 0.0
      %v361 = vmax.f32 %v325, 0.0
      %v362 = vmax.f32 %v326, 0.0
      %v363 = vmax.f32 %v327, 0.0
      %v364 = vmax.f32 %v328, 0.0
      %v365 = vmax.f32 %v329, 0.0
      %v366 = vmax.f32 %v330, 0.0
      %v367 = vmax.f32 %v331, 0.0
      %v368 = vmax.f32 %v332, 0.0
      %v369 = vmax.f32 %v333, 0.0
      %v370 = vmax.f32 %v334, 0.0
      %v371 = vmax.f32 %v335, 0.0
      %v372 = vmax.f32 %v336, 0.0
      %v373 = vpack.c.bf16 %v338, %v337
      %v374 = vpack.c.bf16 %v340, %v339
      %v375 = vpack.c.bf16 %v342, %v341
      %v376 = vpack.c.bf16 %v344, %v343
      %v377 = vpack.c.bf16 %v346, %v345
      %v378 = vpack.c.bf16 %v348, %v347
      %v379 = vpack.c.bf16 %v350, %v349
      %v380 = vpack.c.bf16 %v352, %v351
      %v381 = vpack.c.bf16 %v354, %v353
      %v382 = vpack.c.bf16 %v356, %v355
      %v383 = vpack.c.bf16 %v358, %v357
      %v384 = vpack.c.bf16 %v360, %v359
      %v385 = vpack.c.bf16 %v362, %v361
      %v386 = vpack.c.bf16 %v364, %v363
      %v387 = vpack.c.bf16 %v366, %v365
      %v388 = vpack.c.bf16 %v368, %v367
      %v389 = vpack.c.bf16 %v370, %v369
      %v390 = vpack.c.bf16 %v372, %v371
      %v409 = vunpack.c.l.b16 %v373
      %v410 = vunpack.c.h.b16 %v373
      %v411 = vunpack.c.l.b16 %v374
      %v412 = vunpack.c.h.b16 %v374
      %v413 = vunpack.c.l.b16 %v375
      %v414 = vunpack.c.h.b16 %v375
      %v415 = vunpack.c.l.b16 %v376
      %v416 = vunpack.c.h.b16 %v376
      %v417 = vunpack.c.l.b16 %v377
      %v418 = vunpack.c.h.b16 %v377
      %v419 = vunpack.c.l.b16 %v378
      %v420 = vunpack.c.h.b16 %v378
      %v421 = vunpack.c.l.b16 %v379
      %v422 = vunpack.c.h.b16 %v379
      %v423 = vunpack.c.l.b16 %v380
      %v424 = vunpack.c.h.b16 %v380
      %v425 = vunpack.c.l.b16 %v381
      %v426 = vunpack.c.h.b16 %v381
      %v427 = vunpack.c.l.b16 %v382
      %v428 = vunpack.c.h.b16 %v382
      %v429 = vunpack.c.l.b16 %v383
      %v430 = vunpack.c.h.b16 %v383
      %v431 = vunpack.c.l.b16 %v384
      %v432 = vunpack.c.h.b16 %v384
      %v433 = vunpack.c.l.b16 %v385
      %v434 = vunpack.c.h.b16 %v385
      %v435 = vunpack.c.l.b16 %v386
      %v436 = vunpack.c.h.b16 %v386
      %v437 = vunpack.c.l.b16 %v387
      %v438 = vunpack.c.h.b16 %v387
      %v439 = vunpack.c.l.b16 %v388
      %v440 = vunpack.c.h.b16 %v388
      %v441 = vunpack.c.l.b16 %v389
      %v442 = vunpack.c.h.b16 %v389
      %v443 = vunpack.c.l.b16 %v390
      %v444 = vunpack.c.h.b16 %v390
      %v445 = vpack.c.b16 %v409, %v409
      %v446 = vpack.c.b16 %v410, %v410
      %v447 = vpack.c.b16 %v411, %v411
      %v448 = vpack.c.b16 %v412, %v412
      %v449 = vpack.c.b16 %v413, %v413
      %v450 = vpack.c.b16 %v414, %v414
      %v451 = vpack.c.b16 %v415, %v415
      %v452 = vpack.c.b16 %v416, %v416
      %v453 = vpack.c.b16 %v417, %v417
      %v454 = vpack.c.b16 %v418, %v418
      %v455 = vpack.c.b16 %v419, %v419
      %v456 = vpack.c.b16 %v420, %v420
      %v457 = vpack.c.b16 %v421, %v421
      %v458 = vpack.c.b16 %v422, %v422
      %v459 = vpack.c.b16 %v423, %v423
      %v460 = vpack.c.b16 %v424, %v424
      %v461 = vpack.c.b16 %v425, %v425
      %v462 = vpack.c.b16 %v426, %v426
      %v463 = vpack.c.b16 %v427, %v427
      %v464 = vpack.c.b16 %v428, %v428
      %v465 = vpack.c.b16 %v429, %v429
      %v466 = vpack.c.b16 %v430, %v430
      %v467 = vpack.c.b16 %v431, %v431
      %v468 = vpack.c.b16 %v432, %v432
      %v469 = vpack.c.b16 %v433, %v433
      %v470 = vpack.c.b16 %v434, %v434
      %v471 = vpack.c.b16 %v435, %v435
      %v472 = vpack.c.b16 %v436, %v436
      %v473 = vpack.c.b16 %v437, %v437
      %v474 = vpack.c.b16 %v438, %v438
      %v475 = vpack.c.b16 %v439, %v439
      %v476 = vpack.c.b16 %v440, %v440
      %v477 = vpack.c.b16 %v441, %v441
      %v478 = vpack.c.b16 %v442, %v442
      %v479 = vpack.c.b16 %v443, %v443
      %v480 = vpack.c.b16 %v444, %v444
      %517 = vst [vmem:[%s181] sm:$0xf] %v445
      %518 = vst [vmem:[%s181 + $0x4] sm:$0xf] %v446
      %519 = vst [vmem:[%s181 + $0x8] sm:$0xf] %v447
      %520 = vst [vmem:[%s181 + $0xc] sm:$0xf] %v448
      %521 = vst [vmem:[%s181 + $0x10] sm:$0xf] %v449
      %522 = vst [vmem:[%s181 + $0x14] sm:$0xf] %v450
      %523 = vst [vmem:[%s181 + $0x18] sm:$0xf] %v451
      %524 = vst [vmem:[%s181 + $0x1c] sm:$0xf] %v452
      %525 = vst [vmem:[%s181 + $0x20] sm:$0xf] %v453
      %526 = vst [vmem:[%s181 + $0x24] sm:$0xf] %v454
      %527 = vst [vmem:[%s181 + $0x28] sm:$0xf] %v455
      %528 = vst [vmem:[%s181 + $0x2c] sm:$0xf] %v456
      %529 = vst [vmem:[%s181 + $0x30] sm:$0xf] %v457
      %530 = vst [vmem:[%s181 + $0x34] sm:$0xf] %v458
      %531 = vst [vmem:[%s181 + $0x38] sm:$0xf] %v459
      %532 = vst [vmem:[%s181 + $0x3c] sm:$0xf] %v460
      %533 = vst [vmem:[%s181 + $0x40] sm:$0xf] %v461
      %534 = vst [vmem:[%s181 + $0x44] sm:$0xf] %v462
      %535 = vst [vmem:[%s181 + $0x48] sm:$0xf] %v463
      %536 = vst [vmem:[%s181 + $0x4c] sm:$0xf] %v464
      %537 = vst [vmem:[%s181 + $0x50] sm:$0xf] %v465
      %538 = vst [vmem:[%s181 + $0x54] sm:$0xf] %v466
      %539 = vst [vmem:[%s181 + $0x58] sm:$0xf] %v467
      %540 = vst [vmem:[%s181 + $0x5c] sm:$0xf] %v468
      %541 = vst [vmem:[%s181 + $0x60] sm:$0xf] %v469
      %542 = vst [vmem:[%s181 + $0x64] sm:$0xf] %v470
      %543 = vst [vmem:[%s181 + $0x68] sm:$0xf] %v471
      %544 = vst [vmem:[%s181 + $0x6c] sm:$0xf] %v472
      %545 = vst [vmem:[%s181 + $0x70] sm:$0xf] %v473
      %546 = vst [vmem:[%s181 + $0x74] sm:$0xf] %v474
      %547 = vst [vmem:[%s181 + $0x78] sm:$0xf] %v475
      %548 = vst [vmem:[%s181 + $0x7c] sm:$0xf] %v476
      %549 = vst [vmem:[%s181 + $0x80] sm:$0xf] %v477
      %550 = vst [vmem:[%s181 + $0x84] sm:$0xf] %v478
      %551 = vst [vmem:[%s181 + $0x88] sm:$0xf] %v479
      %552 = vst [vmem:[%s181 + $0x8c] sm:$0xf] %v480
      %s553 = smul.u32 36, %s18
      %p554 = scmp.lt.s32.totalorder %s17, 1
      %s555 = scalar_select %p554, %s17, 1
      %p556 = scmp.lt.s32.totalorder %s553, 35
      %s557 = scalar_select %p556, %s553, 35
      %s558 = smul.addr %s555, 36
      %s559 = sadd.s32 %s557, %s558
      %s560 = smul.addr %s559, 4
      %s561 = scalar_lea.vmem %s2, %s560
      // Predicated region
      $region29: #{conv_block_forward.3} parent=27 // pred_check
        %p562 = pneg %p94
      $region30: #{conv_block_forward.3} parent=27 // pred_check_branch
        %564 = sbr.rel (%p562) target = $region32
      $region31: #{conv_block_forward.3} parent=27 // pred_region
        %s565 = smul.u32 36, %s18
      $region32: #{conv_block_forward.3} parent=27 // pred_fallthru
        _
    $region28: #{conv_block_forward.3} parent=5 // pred_fallthru
      _
    %p566 = scmp.le.s32.totalorder 2, %s8
    // Predicated region
    $region33: #{conv_block_forward.3} parent=5 // pred_check
      %p567 = pneg %p566
    $region34: #{conv_block_forward.3} parent=5 // pred_check_branch
      %569 = sbr.rel (%p567) target = $region36
    $region35: #{conv_block_forward.3} parent=5 // pred_region
      %s570 = ssub.s32 %s8, 2
      // Predicated region
      $region37: #{conv_block_forward.3} parent=35 // pred_check
        %p571 = pneg %p100
      $region38: #{conv_block_forward.3} parent=35 // pred_check_branch
        %573 = sbr.rel (%p571) target = $region40
      $region39: #{conv_block_forward.3} parent=35 // pred_region
        %s574 = smul.u32 36, %s20
        %p575 = scmp.lt.s32.totalorder %s19, 1
        %s576 = scalar_select %p575, %s19, 1
        %p577 = scmp.lt.s32.totalorder %s574, 35
        %s578 = scalar_select %p577, %s574, 35
        %s579 = smul.addr %s576, 36
        %s580 = sadd.s32 %s578, %s579
        %s581 = smul.addr %s580, 4
        %s582 = scalar_lea.vmem %s2, %s581
      $region40: #{conv_block_forward.3} parent=35 // pred_fallthru
        _
    $region36: #{conv_block_forward.3} parent=5 // pred_fallthru
      _
  $region6: #{conv_block_forward.3} parent=0 // loop_footer
    %s12 = sadd.s32 1, %s8
  $region7: #{conv_block_forward.3} parent=0 // loop_footer_branch
    %7 = sbr.rel target = $region3
  $region8: #{conv_block_forward.3} parent=0 // loop_exit
    _

// kernel: conv_block_forward.2
$region0: #{conv_block_forward.2}
  #allocation0 [shape = 'u32[]', space=smem, size = 0x4, offset = 0x4, fixed_abs, tag = 'smem constant byte address 0x4 - core index']
  #allocation1 [shape = 'u32[144,128]{1,0:T(1,128)}', space=vmem, size = 0x12000, scoped, tag = 'internal scratch']
  #allocation2 [shape = 'f32[336,8]{1,0:T(8,128)}', space=vmem, size = 0x2a000, scoped, tag = 'scratch operand']
  #allocation3 [shape = 'bf16[288,128]{1,0:T(16,128)(2,1)}', space=vmem, size = 0x12000, scoped, tag = 'scratch operand']
  %s0 = inlined_call_operand.vmem [shape: f32[2,336,8], index: 0, kind: input, shape index: {}, may-alias: {0,1}]
  %s1 = inlined_call_operand.vmem [shape: f32[2,336,8], index: 1, kind: input, shape index: {}, may-alias: {0,1}]
  %s2 = inlined_call_operand.vmem [shape: bf16[128,128], index: 2, kind: input, shape index: {}]
  %s3 = inlined_call_operand.vmem [shape: f32[288,1], index: 3, kind: input, shape index: {}]
  %s4 = inlined_call_operand.vmem [shape: bf16[2,288,128], index: 4, kind: output, shape index: {0}]
  %s5 = inlined_call_operand.vmem [shape: f32[2,1,1,128], index: 5, kind: output, shape index: {1}]
  %s6 = inlined_call_operand.vmem [shape: f32[2,1,1,128], index: 6, kind: output, shape index: {2}]
  %7 = xla_tuple %s4, %s5, %s6
  %s8 = sld [smem:[#allocation0]]
  $region65: #{conv_block_forward.2} parent=0
    _
  %s10 = ssub.s32 1, %s8
  %s11 = scalar_select 0, %s10, %s8
  loop: start=0, step=1, limit=4
  $region2: #{conv_block_forward.2} parent=0 // loop_pre_header
    _
  $region3: #{conv_block_forward.2} parent=0 // loop_header
    %s13 = sphi 0, %s17
    %p14 = scmp.ge.s32.totalorder %s13, 4
    %s20 = sphi 0, %s32
    %s21 = sphi 0, %s28
    %s22 = sphi 0, %s20
    %s23 = sphi 0, %s21
    %s24 = sphi 0, %s22
    %s25 = sphi 0, %s23
    %s37 = sphi 0, %s39
    %s40 = sphi 0, %s37
    %s41 = sphi 0, %s40
    %s57 = sphi 0, %s41
    %s69 = sphi 0, %s71
    %s72 = sphi 0, %s69
    %s73 = sphi 0, %s72
    %s89 = sphi 0, %s73
    %s93 = sphi 0, %s93
    %s95 = sphi 0, %s93
    %s96 = sphi 0, %s95
    %s110 = sphi 0, %s96
    %s116 = sphi 0, %s118
    %s119 = sphi 0, %s116
    %s120 = sphi 0, %s119
    %s136 = sphi 0, %s120
    %s144 = sphi 0, %s146
    %s147 = sphi 0, %s144
    %s148 = sphi 0, %s147
    %s164 = sphi 0, %s148
    %s172 = sphi 0, %s174
    %s175 = sphi 0, %s172
    %s176 = sphi 0, %s175
    %s192 = sphi 0, %s176
    %s200 = sphi 0, %s202
    %s203 = sphi 0, %s200
    %s204 = sphi 0, %s203
    %s220 = sphi 0, %s204
  $region4: #{conv_block_forward.2} parent=0 // loop_header_branch
    %16 = sbr.rel (%p14) target = $region8
  $region5: #{conv_block_forward.2} parent=0 // loop_body
    %s18 = ssub.s32 %s13, 1
    %s19 = ssub.s32 %s13, 2
    %s26 = sadd.s32 1, %s21
    %p27 = scmp.ge.s32.totalorder %s26, 1
    %s28 = scalar_select %p27, 0, %s26
    %s29 = sadd.s32 1, %s20
    %s30 = scalar_select %p27, %s29, %s20
    %p31 = scmp.ge.s32.totalorder %s30, 2
    %s32 = scalar_select %p31, 0, %s30
    %s33 = ssub.s32 %s20, %s32
    %s34 = ssub.s32 %s21, %s28
    %s35 = sor.u32 %s33, %s34
    %p36 = scmp.eq.s32.totalorder %s35, 0
    %s38 = sadd.s32 %s37, 1
    %s39 = scalar_select %p36, %s37, %s38
    %p42 = pneg %p36
    %p43 = scmp.eq.s32.totalorder %s13, 1
    %p44 = por %p42, %p43
    %p45 = scmp.ne.s32.totalorder %s37, %s40
    %p46 = scmp.eq.s32.totalorder %s13, 0
    %p47 = por %p45, %p46
    %p48 = scmp.ne.s32.totalorder %s37, %s40
    %p49 = scmp.eq.s32.totalorder %s18, 1
    %p50 = por %p48, %p49
    %p51 = scmp.ne.s32.totalorder %s40, %s41
    %p52 = scmp.eq.s32.totalorder %s18, 0
    %p53 = por %p51, %p52
    %p54 = scmp.ne.s32.totalorder %s40, %s41
    %p55 = scmp.eq.s32.totalorder %s19, 1
    %p56 = por %p54, %p55
    %p58 = scmp.ne.s32.totalorder %s41, %s57
    %p59 = scmp.eq.s32.totalorder %s19, 0
    %p60 = por %p58, %p59
    %s61 = sadd.s32 %s21, 1
    %s62 = smul.u32 %s61, 6
    %s63 = sadd.s32 %s28, 1
    %s64 = smul.u32 %s63, 6
    %s65 = ssub.s32 %s20, %s32
    %s66 = ssub.s32 %s62, %s64
    %s67 = sor.u32 %s65, %s66
    %p68 = scmp.eq.s32.totalorder %s67, 0
    %s70 = sadd.s32 %s69, 1
    %s71 = scalar_select %p68, %s69, %s70
    %p74 = pneg %p68
    %p75 = scmp.eq.s32.totalorder %s13, 1
    %p76 = por %p74, %p75
    %p77 = scmp.ne.s32.totalorder %s69, %s72
    %p78 = scmp.eq.s32.totalorder %s13, 0
    %p79 = por %p77, %p78
    %p80 = scmp.ne.s32.totalorder %s69, %s72
    %p81 = scmp.eq.s32.totalorder %s18, 1
    %p82 = por %p80, %p81
    %p83 = scmp.ne.s32.totalorder %s72, %s73
    %p84 = scmp.eq.s32.totalorder %s18, 0
    %p85 = por %p83, %p84
    %p86 = scmp.ne.s32.totalorder %s72, %s73
    %p87 = scmp.eq.s32.totalorder %s19, 1
    %p88 = por %p86, %p87
    %p90 = scmp.ne.s32.totalorder %s73, %s89
    %p91 = scmp.eq.s32.totalorder %s19, 0
    %p92 = por %p90, %p91
    %s94 = sadd.s32 %s93, 1
    %p97 = scmp.eq.s32.totalorder %s13, 1
    %p98 = scmp.ne.s32.totalorder %s93, %s95
    %p99 = scmp.eq.s32.totalorder %s13, 0
    %p100 = por %p98, %p99
    %p101 = scmp.ne.s32.totalorder %s93, %s95
    %p102 = scmp.eq.s32.totalorder %s18, 1
    %p103 = por %p101, %p102
    %p104 = scmp.ne.s32.totalorder %s95, %s96
    %p105 = scmp.eq.s32.totalorder %s18, 0
    %p106 = por %p104, %p105
    %p107 = scmp.ne.s32.totalorder %s95, %s96
    %p108 = scmp.eq.s32.totalorder %s19, 1
    %p109 = por %p107, %p108
    %p111 = scmp.ne.s32.totalorder %s96, %s110
    %p112 = scmp.eq.s32.totalorder %s19, 0
    %p113 = por %p111, %p112
    %s114 = ssub.s32 %s21, %s28
    %p115 = scmp.eq.s32.totalorder %s114, 0
    %s117 = sadd.s32 %s116, 1
    %s118 = scalar_select %p115, %s116, %s117
    %p121 = pneg %p115
    %p122 = scmp.eq.s32.totalorder %s13, 1
    %p123 = por %p121, %p122
    %p124 = scmp.ne.s32.totalorder %s116, %s119
    %p125 = scmp.eq.s32.totalorder %s13, 0
    %p126 = por %p124, %p125
    %p127 = scmp.ne.s32.totalorder %s116, %s119
    %p128 = scmp.eq.s32.totalorder %s18, 1
    %p129 = por %p127, %p128
    %p130 = scmp.ne.s32.totalorder %s119, %s120
    %p131 = scmp.eq.s32.totalorder %s18, 0
    %p132 = por %p130, %p131
    %p133 = scmp.ne.s32.totalorder %s119, %s120
    %p134 = scmp.eq.s32.totalorder %s19, 1
    %p135 = por %p133, %p134
    %p137 = scmp.ne.s32.totalorder %s120, %s136
    %p138 = scmp.eq.s32.totalorder %s19, 0
    %p139 = por %p137, %p138
    %s140 = ssub.s32 %s20, %s32
    %s141 = ssub.s32 %s21, %s28
    %s142 = sor.u32 %s140, %s141
    %p143 = scmp.eq.s32.totalorder %s142, 0
    %s145 = sadd.s32 %s144, 1
    %s146 = scalar_select %p143, %s144, %s145
    %p149 = pneg %p143
    %p150 = scmp.eq.s32.totalorder %s13, 1
    %p151 = por %p149, %p150
    %p152 = scmp.ne.s32.totalorder %s144, %s147
    %p153 = scmp.eq.s32.totalorder %s13, 0
    %p154 = por %p152, %p153
    %p155 = scmp.ne.s32.totalorder %s144, %s147
    %p156 = scmp.eq.s32.totalorder %s18, 1
    %p157 = por %p155, %p156
    %p158 = scmp.ne.s32.totalorder %s147, %s148
    %p159 = scmp.eq.s32.totalorder %s18, 0
    %p160 = por %p158, %p159
    %p161 = scmp.ne.s32.totalorder %s147, %s148
    %p162 = scmp.eq.s32.totalorder %s19, 1
    %p163 = por %p161, %p162
    %p165 = scmp.ne.s32.totalorder %s148, %s164
    %p166 = scmp.eq.s32.totalorder %s19, 0
    %p167 = por %p165, %p166
    %s168 = ssub.s32 %s20, %s32
    %s169 = ssub.s32 %s21, %s28
    %s170 = sor.u32 %s168, %s169
    %p171 = scmp.eq.s32.totalorder %s170, 0
    %s173 = sadd.s32 %s172, 1
    %s174 = scalar_select %p171, %s172, %s173
    %p177 = pneg %p171
    %p178 = scmp.eq.s32.totalorder %s13, 1
    %p179 = por %p177, %p178
    %p180 = scmp.ne.s32.totalorder %s172, %s175
    %p181 = scmp.eq.s32.totalorder %s13, 0
    %p182 = por %p180, %p181
    %p183 = scmp.ne.s32.totalorder %s172, %s175
    %p184 = scmp.eq.s32.totalorder %s18, 1
    %p185 = por %p183, %p184
    %p186 = scmp.ne.s32.totalorder %s175, %s176
    %p187 = scmp.eq.s32.totalorder %s18, 0
    %p188 = por %p186, %p187
    %p189 = scmp.ne.s32.totalorder %s175, %s176
    %p190 = scmp.eq.s32.totalorder %s19, 1
    %p191 = por %p189, %p190
    %p193 = scmp.ne.s32.totalorder %s176, %s192
    %p194 = scmp.eq.s32.totalorder %s19, 0
    %p195 = por %p193, %p194
    %s196 = ssub.s32 %s20, %s32
    %s197 = ssub.s32 %s21, %s28
    %s198 = sor.u32 %s196, %s197
    %p199 = scmp.eq.s32.totalorder %s198, 0
    %s201 = sadd.s32 %s200, 1
    %s202 = scalar_select %p199, %s200, %s201
    %p205 = pneg %p199
    %p206 = scmp.eq.s32.totalorder %s13, 1
    %p207 = por %p205, %p206
    %p208 = scmp.ne.s32.totalorder %s200, %s203
    %p209 = scmp.eq.s32.totalorder %s13, 0
    %p210 = por %p208, %p209
    %p211 = scmp.ne.s32.totalorder %s200, %s203
    %p212 = scmp.eq.s32.totalorder %s18, 1
    %p213 = por %p211, %p212
    %p214 = scmp.ne.s32.totalorder %s203, %s204
    %p215 = scmp.eq.s32.totalorder %s18, 0
    %p216 = por %p214, %p215
    %p217 = scmp.ne.s32.totalorder %s203, %s204
    %p218 = scmp.eq.s32.totalorder %s19, 1
    %p219 = por %p217, %p218
    %p221 = scmp.ne.s32.totalorder %s204, %s220
    %p222 = scmp.eq.s32.totalorder %s19, 0
    %p223 = por %p221, %p222
    %p224 = scmp.le.s32.totalorder 1, %s13
    %p225 = scmp.lt.s32.totalorder %s13, 3
    %p226 = pnand %p224, %p225
    %p227 = pneg %p226
    // Predicated region
    $region9: #{conv_block_forward.2} parent=5 // pred_check
      _
    $region10: #{conv_block_forward.2} parent=5 // pred_check_branch
      %229 = sbr.rel (%p226) target = $region12
    $region11: #{conv_block_forward.2} parent=5 // pred_region
      %s230 = ssub.s32 %s13, 1
      // Predicated region
      $region13: #{conv_block_forward.2} parent=11 // pred_check
        %p231 = pneg %p106
      $region14: #{conv_block_forward.2} parent=11 // pred_check_branch
        %233 = sbr.rel (%p231) target = $region16
      $region15: #{conv_block_forward.2} parent=11 // pred_region
        _
      $region16: #{conv_block_forward.2} parent=11 // pred_fallthru
        _
      // Predicated region
      $region17: #{conv_block_forward.2} parent=11 // pred_check
        %p234 = pneg %p132
      $region18: #{conv_block_forward.2} parent=11 // pred_check_branch
        %236 = sbr.rel (%p234) target = $region20
      $region19: #{conv_block_forward.2} parent=11 // pred_region
        %s237 = smul.u32 36, %s23
        %p238 = scmp.lt.s32.totalorder %s237, 35
        %s239 = scalar_select %p238, %s237, 35
        %s240 = smul.addr %s239, 8
        %s241 = scalar_lea.vmem %s3, %s240
        %s242 = smul.u32 36, %s23
      $region20: #{conv_block_forward.2} parent=11 // pred_fallthru
        _
    $region12: #{conv_block_forward.2} parent=5 // pred_fallthru
      _
    %p243 = scmp.lt.s32.totalorder %s13, 2
    // Predicated region
    $region21: #{conv_block_forward.2} parent=5 // pred_check
      %p244 = pneg %p243
    $region22: #{conv_block_forward.2} parent=5 // pred_check_branch
      %246 = sbr.rel (%p244) target = $region24
    $region23: #{conv_block_forward.2} parent=5 // pred_region
      // Predicated region
      $region25: #{conv_block_forward.2} parent=23 // pred_check
        %p247 = pneg %p47
      $region26: #{conv_block_forward.2} parent=23 // pred_check_branch
        %249 = sbr.rel (%p247) target = $region28
      $region27: #{conv_block_forward.2} parent=23 // pred_region
        %s250 = smul.u32 36, %s21
        %s251 = ssub.s32 42, %s250
        %p252 = scmp.lt.s32.totalorder %s251, 36
        %s253 = scalar_select %p252, %s251, 36
        %s254 = smul.u32 128, %s253
        %p255 = scmp.lt.s32.totalorder %s20, 1
        %s256 = scalar_select %p255, %s20, 1
        %p257 = scmp.lt.s32.totalorder %s250, 41
        %s258 = scalar_select %p257, %s250, 41
        %s259 = smul.addr %s256, 42
        %s260 = sadd.s32 %s258, %s259
        %s261 = smul.addr %s260, 8
        %s262 = scalar_lea.vmem %s0, %s261
        %s263 = smul.u32 36, %s21
        %s264 = ssub.s32 42, %s263
        %p265 = scmp.lt.s32.totalorder %s264, 36
        %s266 = scalar_select %p265, %s264, 36
        %s267 = smul.u32 128, %s266
      $region28: #{conv_block_forward.2} parent=23 // pred_fallthru
        _
      // Predicated region
      $region29: #{conv_block_forward.2} parent=23 // pred_check
        %p268 = pneg %p79
      $region30: #{conv_block_forward.2} parent=23 // pred_check_branch
        %270 = sbr.rel (%p268) target = $region32
      $region31: #{conv_block_forward.2} parent=23 // pred_region
        %s271 = sadd.s32 %s21, 1
        %s272 = smul.u32 %s271, 6
        %s273 = smul.u32 6, %s272
        %p274 = scmp.lt.s32.totalorder %s20, 1
        %s275 = scalar_select %p274, %s20, 1
        %p276 = scmp.lt.s32.totalorder %s273, 41
        %s277 = scalar_select %p276, %s273, 41
        %s278 = smul.addr %s275, 42
        %s279 = sadd.s32 %s277, %s278
        %s280 = smul.addr %s279, 8
        %s281 = scalar_lea.vmem %s1, %s280
        %s282 = sadd.s32 %s21, 1
        %s283 = smul.u32 %s282, 6
        %s284 = smul.u32 6, %s283
      $region32: #{conv_block_forward.2} parent=23 // pred_fallthru
        _
    $region24: #{conv_block_forward.2} parent=5 // pred_fallthru
      _
    %p285 = scmp.le.s32.totalorder 1, %s13
    %p286 = scmp.lt.s32.totalorder %s13, 3
    %p287 = pnand %p285, %p286
    %p288 = pneg %p287
    // Predicated region
    $region33: #{conv_block_forward.2} parent=5 // pred_check
      _
    $region34: #{conv_block_forward.2} parent=5 // pred_check_branch
      %290 = sbr.rel (%p287) target = $region36
    $region35: #{conv_block_forward.2} parent=5 // pred_region
      %s291 = ssub.s32 %s13, 1
      %s292 = smul.u32 36, %s23
      %s293 = ssub.s32 42, %s292
      %p294 = scmp.lt.s32.totalorder %s293, 36
      %s295 = scalar_select %p294, %s293, 36
      %s296 = smul.u32 128, %s295
      %p297 = scmp.lt.s32.totalorder %s22, 1
      %s298 = scalar_select %p297, %s22, 1
      %p299 = scmp.lt.s32.totalorder %s292, 41
      %s300 = scalar_select %p299, %s292, 41
      %s301 = smul.addr %s298, 42
      %s302 = sadd.s32 %s300, %s301
      %s303 = smul.addr %s302, 8
      %s304 = scalar_lea.vmem %s0, %s303
      %p305 = pneg %p53
      %p306 = pneg %p50
      %s307 = sadd.s32 %s23, 1
      %s308 = smul.u32 %s307, 6
      %s309 = smul.u32 6, %s308
      %p310 = scmp.lt.s32.totalorder %s22, 1
      %s311 = scalar_select %p310, %s22, 1
      %p312 = scmp.lt.s32.totalorder %s309, 41
      %s313 = scalar_select %p312, %s309, 41
      %s314 = smul.addr %s311, 42
      %s315 = sadd.s32 %s313, %s314
      %s316 = smul.addr %s315, 8
      %s317 = scalar_lea.vmem %s1, %s316
      %p318 = pneg %p85
      %p319 = pneg %p82
      %p320 = pneg %p106
      %p321 = pneg %p103
      %s322 = smul.u32 36, %s23
      %p323 = scmp.lt.s32.totalorder %s322, 35
      %s324 = scalar_select %p323, %s322, 35
      %s325 = smul.addr %s324, 8
      %s326 = scalar_lea.vmem %s3, %s325
      %p327 = pneg %p132
      %p328 = pneg %p129
      %p329 = pneg %p160
      %p330 = pneg %p157
      %s331 = smul.u32 36, %s23
      %p332 = scmp.lt.s32.totalorder %s22, 1
      %s333 = scalar_select %p332, %s22, 1
      %p334 = scmp.lt.s32.totalorder %s331, 35
      %s335 = scalar_select %p334, %s331, 35
      %s336 = smul.addr %s333, 36
      %s337 = sadd.s32 %s335, %s336
      %s338 = smul.addr %s337, 4
      %s339 = scalar_lea.vmem %s4, %s338
      %p340 = pneg %p188
      %p341 = pneg %p185
      %p342 = scmp.lt.s32.totalorder %s22, 1
      %s343 = scalar_select %p342, %s22, 1
      %p344 = scmp.lt.s32.totalorder %s23, 0
      %s345 = scalar_select %p344, %s23, 0
      %s346 = sadd.s32 %s345, %s343
      %s347 = scalar_lea.vmem %s5, %s346
      %p348 = pneg %p216
      %p349 = pneg %p213
      %p350 = scmp.lt.s32.totalorder %s22, 1
      %s351 = scalar_select %p350, %s22, 1
      %p352 = scmp.lt.s32.totalorder %s23, 0
      %s353 = scalar_select %p352, %s23, 0
      %s354 = sadd.s32 %s353, %s351
      %s355 = scalar_lea.vmem %s6, %s354
      %s356 = smul.u32 36, %s23
      %s357 = ssub.s32 42, %s356
      %p358 = scmp.lt.s32.totalorder %s357, 36
      %s359 = scalar_select %p358, %s357, 36
      %s360 = smul.u32 128, %s359
      %p361 = scmp.lt.s32.totalorder %s22, 1
      %s362 = scalar_select %p361, %s22, 1
      %p363 = scmp.lt.s32.totalorder %s356, 41
      %s364 = scalar_select %p363, %s356, 41
      %s365 = smul.addr %s362, 42
      %s366 = sadd.s32 %s364, %s365
      %s367 = smul.addr %s366, 8
      %s368 = scalar_lea.vmem %s0, %s367
      %s369 = smul.u32 36, %s23
      %s370 = ssub.s32 42, %s369
      %p371 = scmp.lt.s32.totalorder %s370, 36
      %s372 = scalar_select %p371, %s370, 36
      %s373 = smul.u32 128, %s372
      %s374 = sadd.s32 %s23, 1
      %s375 = smul.u32 %s374, 6
      %s376 = smul.u32 6, %s375
      %p377 = scmp.lt.s32.totalorder %s22, 1
      %s378 = scalar_select %p377, %s22, 1
      %p379 = scmp.lt.s32.totalorder %s376, 41
      %s380 = scalar_select %p379, %s376, 41
      %s381 = smul.addr %s378, 42
      %s382 = sadd.s32 %s380, %s381
      %s383 = smul.addr %s382, 8
      %s384 = scalar_lea.vmem %s1, %s383
      %s385 = sadd.s32 %s23, 1
      %s386 = smul.u32 %s385, 6
      %s387 = smul.u32 6, %s386
      %s388 = smul.u32 36, %s23
      %p389 = scmp.lt.s32.totalorder %s388, 35
      %s390 = scalar_select %p389, %s388, 35
      %s391 = smul.addr %s390, 8
      %s392 = scalar_lea.vmem %s3, %s391
      %s393 = smul.u32 36, %s23
      %s394 = smul.u32 36, %s23
      %p395 = scmp.lt.s32.totalorder %s22, 1
      %s396 = scalar_select %p395, %s22, 1
      %p397 = scmp.lt.s32.totalorder %s394, 35
      %s398 = scalar_select %p397, %s394, 35
      %s399 = smul.addr %s396, 36
      %s400 = sadd.s32 %s398, %s399
      %s401 = smul.addr %s400, 4
      %s402 = scalar_lea.vmem %s4, %s401
      %s403 = smul.u32 36, %s23
      %p404 = scmp.lt.s32.totalorder %s22, 1
      %s405 = scalar_select %p404, %s22, 1
      %p406 = scmp.lt.s32.totalorder %s23, 0
      %s407 = scalar_select %p406, %s23, 0
      %s408 = sadd.s32 %s407, %s405
      %s409 = scalar_lea.vmem %s5, %s408
      %p410 = scmp.lt.s32.totalorder %s22, 1
      %s411 = scalar_select %p410, %s22, 1
      %p412 = scmp.lt.s32.totalorder %s23, 0
      %s413 = scalar_select %p412, %s23, 0
      %s414 = sadd.s32 %s413, %s411
      %s415 = scalar_lea.vmem %s6, %s414
      %v417 = vld [vmem:[%s368] sm:$0xff]
      %v418 = vld [vmem:[%s368 + $0x8] sm:$0xff]
      %v419 = vld [vmem:[%s368 + $0x10] sm:$0xff]
      %v420 = vld [vmem:[%s368 + $0x18] sm:$0xff]
      %v421 = vld [vmem:[%s368 + $0x20] sm:$0xff]
      %v422 = vld [vmem:[%s368 + $0x28] sm:$0xff]
      %v423 = vld [vmem:[%s368 + $0x30] sm:$0xff]
      %v424 = vld [vmem:[%s368 + $0x38] sm:$0xff]
      %v425 = vld [vmem:[%s368 + $0x40] sm:$0xff]
      %v426 = vld [vmem:[%s368 + $0x48] sm:$0xff]
      %v427 = vld [vmem:[%s368 + $0x50] sm:$0xff]
      %v428 = vld [vmem:[%s368 + $0x58] sm:$0xff]
      %v429 = vld [vmem:[%s368 + $0x60] sm:$0xff]
      %v430 = vld [vmem:[%s368 + $0x68] sm:$0xff]
      %v431 = vld [vmem:[%s368 + $0x70] sm:$0xff]
      %v432 = vld [vmem:[%s368 + $0x78] sm:$0xff]
      %v433 = vld [vmem:[%s368 + $0x80] sm:$0xff]
      %v434 = vld [vmem:[%s368 + $0x88] sm:$0xff]
      %v435 = vld [vmem:[%s368 + $0x90] sm:$0xff]
      %v436 = vld [vmem:[%s368 + $0x98] sm:$0xff]
      %v437 = vld [vmem:[%s368 + $0xa0] sm:$0xff]
      %v438 = vld [vmem:[%s368 + $0xa8] sm:$0xff]
      %v439 = vld [vmem:[%s368 + $0xb0] sm:$0xff]
      %v440 = vld [vmem:[%s368 + $0xb8] sm:$0xff]
      %v441 = vld [vmem:[%s368 + $0xc0] sm:$0xff]
      %v442 = vld [vmem:[%s368 + $0xc8] sm:$0xff]
      %v443 = vld [vmem:[%s368 + $0xd0] sm:$0xff]
      %v444 = vld [vmem:[%s368 + $0xd8] sm:$0xff]
      %v445 = vld [vmem:[%s368 + $0xe0] sm:$0xff]
      %v446 = vld [vmem:[%s368 + $0xe8] sm:$0xff]
      %v447 = vld [vmem:[%s368 + $0xf0] sm:$0xff]
      %v448 = vld [vmem:[%s368 + $0xf8] sm:$0xff]
      %v449 = vld [vmem:[%s368 + $0x100] sm:$0xff]
      %v450 = vld [vmem:[%s368 + $0x108] sm:$0xff]
      %v451 = vld [vmem:[%s368 + $0x110] sm:$0xff]
      %v452 = vld [vmem:[%s368 + $0x118] sm:$0xff]
      %vm453 = vcmask 64512
      %454 = vst.msk [vmem:[#allocation2] sm:$0xff] %vm453, %v417
      %455 = vst.msk [vmem:[#allocation2 + $0x8] sm:$0xff] %vm453, %v418
      %456 = vst.msk [vmem:[#allocation2 + $0x10] sm:$0xff] %vm453, %v419
      %457 = vst.msk [vmem:[#allocation2 + $0x18] sm:$0xff] %vm453, %v420
      %458 = vst.msk [vmem:[#allocation2 + $0x20] sm:$0xff] %vm453, %v421
      %459 = vst.msk [vmem:[#allocation2 + $0x28] sm:$0xff] %vm453, %v422
      %460 = vst.msk [vmem:[#allocation2 + $0x30] sm:$0xff] %vm453, %v423
      %461 = vst.msk [vmem:[#allocation2 + $0x38] sm:$0xff] %vm453, %v424
      %462 = vst.msk [vmem:[#allocation2 + $0x40] sm:$0xff] %vm453, %v425
      %463 = vst.msk [vmem:[#allocation2 + $0x48] sm:$0xff] %vm453, %v426
      %464 = vst.msk [vmem:[#allocation2 + $0x50] sm:$0xff] %vm453, %v427
      %465 = vst.msk [vmem:[#allocation2 + $0x58] sm:$0xff] %vm453, %v428
      %466 = vst.msk [vmem:[#allocation2 + $0x60] sm:$0xff] %vm453, %v429
      %467 = vst.msk [vmem:[#allocation2 + $0x68] sm:$0xff] %vm453, %v430
      %468 = vst.msk [vmem:[#allocation2 + $0x70] sm:$0xff] %vm453, %v431
      %469 = vst.msk [vmem:[#allocation2 + $0x78] sm:$0xff] %vm453, %v432
      %470 = vst.msk [vmem:[#allocation2 + $0x80] sm:$0xff] %vm453, %v433
      %471 = vst.msk [vmem:[#allocation2 + $0x88] sm:$0xff] %vm453, %v434
      %472 = vst.msk [vmem:[#allocation2 + $0x90] sm:$0xff] %vm453, %v435
      %473 = vst.msk [vmem:[#allocation2 + $0x98] sm:$0xff] %vm453, %v436
      %474 = vst.msk [vmem:[#allocation2 + $0xa0] sm:$0xff] %vm453, %v437
      %475 = vst.msk [vmem:[#allocation2 + $0xa8] sm:$0xff] %vm453, %v438
      %476 = vst.msk [vmem:[#allocation2 + $0xb0] sm:$0xff] %vm453, %v439
      %477 = vst.msk [vmem:[#allocation2 + $0xb8] sm:$0xff] %vm453, %v440
      %478 = vst.msk [vmem:[#allocation2 + $0xc0] sm:$0xff] %vm453, %v441
      %479 = vst.msk [vmem:[#allocation2 + $0xc8] sm:$0xff] %vm453, %v442
      %480 = vst.msk [vmem:[#allocation2 + $0xd0] sm:$0xff] %vm453, %v443
      %481 = vst.msk [vmem:[#allocation2 + $0xd8] sm:$0xff] %vm453, %v444
      %482 = vst.msk [vmem:[#allocation2 + $0xe0] sm:$0xff] %vm453, %v445
      %483 = vst.msk [vmem:[#allocation2 + $0xe8] sm:$0xff] %vm453, %v446
      %484 = vst.msk [vmem:[#allocation2 + $0xf0] sm:$0xff] %vm453, %v447
      %485 = vst.msk [vmem:[#allocation2 + $0xf8] sm:$0xff] %vm453, %v448
      %486 = vst.msk [vmem:[#allocation2 + $0x100] sm:$0xff] %vm453, %v449
      %487 = vst.msk [vmem:[#allocation2 + $0x108] sm:$0xff] %vm453, %v450
      %488 = vst.msk [vmem:[#allocation2 + $0x110] sm:$0xff] %vm453, %v451
      %489 = vst.msk [vmem:[#allocation2 + $0x118] sm:$0xff] %vm453, %v452
      %v490 = vld [vmem:[%s384] sm:$0xff]
      %v491 = vld [vmem:[%s384 + $0x8] sm:$0xff]
      %v492 = vld [vmem:[%s384 + $0x10] sm:$0xff]
      %v493 = vld [vmem:[%s384 + $0x18] sm:$0xff]
      %v494 = vld [vmem:[%s384 + $0x20] sm:$0xff]
      %v495 = vld [vmem:[%s384 + $0x28] sm:$0xff]
      %496 = vst.msk [vmem:[#allocation2 + $0x120] sm:$0xff] %vm453, %v490
      %497 = vst.msk [vmem:[#allocation2 + $0x128] sm:$0xff] %vm453, %v491
      %498 = vst.msk [vmem:[#allocation2 + $0x130] sm:$0xff] %vm453, %v492
      %499 = vst.msk [vmem:[#allocation2 + $0x138] sm:$0xff] %vm453, %v493
      %500 = vst.msk [vmem:[#allocation2 + $0x140] sm:$0xff] %vm453, %v494
      %501 = vst.msk [vmem:[#allocation2 + $0x148] sm:$0xff] %vm453, %v495
      %vm502 = vcmask 1048128
      %503 = vst.msk [vmem:[#allocation3] sm:$0xff] %vm502, 0
      %504 = vst.msk [vmem:[#allocation3 + $0x8] sm:$0xff] %vm502, 0
      %505 = vst.msk [vmem:[#allocation3 + $0x10] sm:$0xff] %vm502, 0
      %506 = vst.msk [vmem:[#allocation3 + $0x18] sm:$0xff] %vm502, 0
      %507 = vst.msk [vmem:[#allocation3 + $0x20] sm:$0xff] %vm502, 0
      %508 = vst.msk [vmem:[#allocation3 + $0x28] sm:$0xff] %vm502, 0
      %509 = vst.msk [vmem:[#allocation3 + $0x30] sm:$0xff] %vm502, 0
      %510 = vst.msk [vmem:[#allocation3 + $0x38] sm:$0xff] %vm502, 0
      %511 = vst.msk [vmem:[#allocation3 + $0x40] sm:$0xff] %vm502, 0
      %512 = vst.msk [vmem:[#allocation3 + $0x48] sm:$0xff] %vm502, 0
      %513 = vst.msk [vmem:[#allocation3 + $0x50] sm:$0xff] %vm502, 0
      %514 = vst.msk [vmem:[#allocation3 + $0x58] sm:$0xff] %vm502, 0
      %515 = vst.msk [vmem:[#allocation3 + $0x60] sm:$0xff] %vm502, 0
      %516 = vst.msk [vmem:[#allocation3 + $0x68] sm:$0xff] %vm502, 0
      %517 = vst.msk [vmem:[#allocation3 + $0x70] sm:$0xff] %vm502, 0
      %518 = vst.msk [vmem:[#allocation3 + $0x78] sm:$0xff] %vm502, 0
      %519 = vst.msk [vmem:[#allocation3 + $0x80] sm:$0xff] %vm502, 0
      %520 = vst.msk [vmem:[#allocation3 + $0x88] sm:$0xff] %vm502, 0
      %v521 = vld [vmem:[#allocation2] sm:$0xff]
      %v522 = vld [vmem:[#allocation2 + $0x8] sm:$0xff]
      %v523 = vld [vmem:[#allocation2 + $0x10] sm:$0xff]
      %v524 = vld [vmem:[#allocation2 + $0x18] sm:$0xff]
      %v525 = vld [vmem:[#allocation2 + $0x20] sm:$0xff]
      %v526 = vld [vmem:[#allocation2 + $0x28] sm:$0xff]
      %v527 = vld [vmem:[#allocation2 + $0x30] sm:$0xff]
      %v528 = vld [vmem:[#allocation2 + $0x38] sm:$0xff]
      %v529 = vld [vmem:[#allocation2 + $0x40] sm:$0xff]
      %v530 = vld [vmem:[#allocation2 + $0x48] sm:$0xff]
      %v531 = vld [vmem:[#allocation2 + $0x50] sm:$0xff]
      %v532 = vld [vmem:[#allocation2 + $0x58] sm:$0xff]
      %v533 = vld [vmem:[#allocation2 + $0x60] sm:$0xff]
      %v534 = vld [vmem:[#allocation2 + $0x68] sm:$0xff]
      %v535 = vld [vmem:[#allocation2 + $0x70] sm:$0xff]
      %v536 = vld [vmem:[#allocation2 + $0x78] sm:$0xff]
      %v537 = vld [vmem:[#allocation2 + $0x80] sm:$0xff]
      %v538 = vld [vmem:[#allocation2 + $0x88] sm:$0xff]
      %v539 = vld [vmem:[#allocation2 + $0x90] sm:$0xff]
      %v540 = vld [vmem:[#allocation2 + $0x98] sm:$0xff]
      %v541 = vld [vmem:[#allocation2 + $0xa0] sm:$0xff]
      %v542 = vld [vmem:[#allocation2 + $0xa8] sm:$0xff]
      %v543 = vld [vmem:[#allocation2 + $0xb0] sm:$0xff]
      %v544 = vld [vmem:[#allocation2 + $0xb8] sm:$0xff]
      %v545 = vld [vmem:[#allocation2 + $0xc0] sm:$0xff]
      %v546 = vld [vmem:[#allocation2 + $0xc8] sm:$0xff]
      %v547 = vld [vmem:[#allocation2 + $0xd0] sm:$0xff]
      %v548 = vld [vmem:[#allocation2 + $0xd8] sm:$0xff]
      %v549 = vld [vmem:[#allocation2 + $0xe0] sm:$0xff]
      %v550 = vld [vmem:[#allocation2 + $0xe8] sm:$0xff]
      %v551 = vld [vmem:[#allocation2 + $0xf0] sm:$0xff]
      %v552 = vld [vmem:[#allocation2 + $0xf8] sm:$0xff]
      %v553 = vld [vmem:[#allocation2 + $0x100] sm:$0xff]
      %v554 = vld [vmem:[#allocation2 + $0x108] sm:$0xff]
      %v555 = vld [vmem:[#allocation2 + $0x110] sm:$0xff]
      %v556 = vld [vmem:[#allocation2 + $0x118] sm:$0xff]
      %v557 = vpack.c.bf16 %v522, %v521
      %v558 = vpack.c.bf16 %v524, %v523
      %v559 = vpack.c.bf16 %v526, %v525
      %v560 = vpack.c.bf16 %v528, %v527
      %v561 = vpack.c.bf16 %v530, %v529
      %v562 = vpack.c.bf16 %v532, %v531
      %v563 = vpack.c.bf16 %v534, %v533
      %v564 = vpack.c.bf16 %v536, %v535
      %v565 = vpack.c.bf16 %v538, %v537
      %v566 = vpack.c.bf16 %v540, %v539
      %v567 = vpack.c.bf16 %v542, %v541
      %v568 = vpack.c.bf16 %v544, %v543
      %v569 = vpack.c.bf16 %v546, %v545
      %v570 = vpack.c.bf16 %v548, %v547
      %v571 = vpack.c.bf16 %v550, %v549
      %v572 = vpack.c.bf16 %v552, %v551
      %v573 = vpack.c.bf16 %v554, %v553
      %v574 = vpack.c.bf16 %v556, %v555
      %575 = vst.msk [vmem:[#allocation3] sm:$0xff] %vm453, %v557
      %576 = vst.msk [vmem:[#allocation3 + $0x8] sm:$0xff] %vm453, %v558
      %577 = vst.msk [vmem:[#allocation3 + $0x10] sm:$0xff] %vm453, %v559
      %578 = vst.msk [vmem:[#allocation3 + $0x18] sm:$0xff] %vm453, %v560
      %579 = vst.msk [vmem:[#allocation3 + $0x20] sm:$0xff] %vm453, %v561
      %580 = vst.msk [vmem:[#allocation3 + $0x28] sm:$0xff] %vm453, %v562
      %581 = vst.msk [vmem:[#allocation3 + $0x30] sm:$0xff] %vm453, %v563
      %582 = vst.msk [vmem:[#allocation3 + $0x38] sm:$0xff] %vm453, %v564
      %583 = vst.msk [vmem:[#allocation3 + $0x40] sm:$0xff] %vm453, %v565
      %584 = vst.msk [vmem:[#allocation3 + $0x48] sm:$0xff] %vm453, %v566
      %585 = vst.msk [vmem:[#allocation3 + $0x50] sm:$0xff] %vm453, %v567
      %586 = vst.msk [vmem:[#allocation3 + $0x58] sm:$0xff] %vm453, %v568
      %587 = vst.msk [vmem:[#allocation3 + $0x60] sm:$0xff] %vm453, %v569
      %588 = vst.msk [vmem:[#allocation3 + $0x68] sm:$0xff] %vm453, %v570
      %589 = vst.msk [vmem:[#allocation3 + $0x70] sm:$0xff] %vm453, %v571
      %590 = vst.msk [vmem:[#allocation3 + $0x78] sm:$0xff] %vm453, %v572
      %591 = vst.msk [vmem:[#allocation3 + $0x80] sm:$0xff] %vm453, %v573
      %592 = vst.msk [vmem:[#allocation3 + $0x88] sm:$0xff] %vm453, %v574
      %v593 = vld [vmem:[#allocation2 + $0x1] sm:$0xff]
      %v594 = vld [vmem:[#allocation2 + $0x9] sm:$0xff]
      %v595 = vld [vmem:[#allocation2 + $0x11] sm:$0xff]
      %v596 = vld [vmem:[#allocation2 + $0x19] sm:$0xff]
      %v597 = vld [vmem:[#allocation2 + $0x21] sm:$0xff]
      %v598 = vld [vmem:[#allocation2 + $0x29] sm:$0xff]
      %v599 = vld [vmem:[#allocation2 + $0x31] sm:$0xff]
      %v600 = vld [vmem:[#allocation2 + $0x39] sm:$0xff]
      %v601 = vld [vmem:[#allocation2 + $0x41] sm:$0xff]
      %v602 = vld [vmem:[#allocation2 + $0x49] sm:$0xff]
      %v603 = vld [vmem:[#allocation2 + $0x51] sm:$0xff]
      %v604 = vld [vmem:[#allocation2 + $0x59] sm:$0xff]
      %v605 = vld [vmem:[#allocation2 + $0x61] sm:$0xff]
      %v606 = vld [vmem:[#allocation2 + $0x69] sm:$0xff]
      %v607 = vld [vmem:[#allocation2 + $0x71] sm:$0xff]
      %v608 = vld [vmem:[#allocation2 + $0x79] sm:$0xff]
      %v609 = vld [vmem:[#allocation2 + $0x81] sm:$0xff]
      %v610 = vld [vmem:[#allocation2 + $0x89] sm:$0xff]
      %v611 = vld [vmem:[#allocation2 + $0x91] sm:$0xff]
      %v612 = vld [vmem:[#allocation2 + $0x99] sm:$0xff]
      %v613 = vld [vmem:[#allocation2 + $0xa1] sm:$0xff]
      %v614 = vld [vmem:[#allocation2 + $0xa9] sm:$0xff]
      %v615 = vld [vmem:[#allocation2 + $0xb1] sm:$0xff]
      %v616 = vld [vmem:[#allocation2 + $0xb9] sm:$0xff]
      %v617 = vld [vmem:[#allocation2 + $0xc1] sm:$0xff]
      %v618 = vld [vmem:[#allocation2 + $0xc9] sm:$0xff]
      %v619 = vld [vmem:[#allocation2 + $0xd1] sm:$0xff]
      %v620 = vld [vmem:[#allocation2 + $0xd9] sm:$0xff]
      %v621 = vld [vmem:[#allocation2 + $0xe1] sm:$0xff]
      %v622 = vld [vmem:[#allocation2 + $0xe9] sm:$0xff]
      %v623 = vld [vmem:[#allocation2 + $0xf1] sm:$0xff]
      %v624 = vld [vmem:[#allocation2 + $0xf9] sm:$0xff]
      %v625 = vld [vmem:[#allocation2 + $0x101] sm:$0xff]
      %v626 = vld [vmem:[#allocation2 + $0x109] sm:$0xff]
      %v627 = vld [vmem:[#allocation2 + $0x111] sm:$0xff]
      %v628 = vld [vmem:[#allocation2 + $0x119] sm:$0xff]
      %v629 = vpack.c.bf16 %v594, %v593
      %v630 = vpack.c.bf16 %v596, %v595
      %v631 = vpack.c.bf16 %v598, %v597
      %v632 = vpack.c.bf16 %v600, %v599
      %v633 = vpack.c.bf16 %v602, %v601
      %v634 = vpack.c.bf16 %v604, %v603
      %v635 = vpack.c.bf16 %v606, %v605
      %v636 = vpack.c.bf16 %v608, %v607
      %v637 = vpack.c.bf16 %v610, %v609
      %v638 = vpack.c.bf16 %v612, %v611
      %v639 = vpack.c.bf16 %v614, %v613
      %v640 = vpack.c.bf16 %v616, %v615
      %v641 = vpack.c.bf16 %v618, %v617
      %v642 = vpack.c.bf16 %v620, %v619
      %v643 = vpack.c.bf16 %v622, %v621
      %v644 = vpack.c.bf16 %v624, %v623
      %v645 = vpack.c.bf16 %v626, %v625
      %v646 = vpack.c.bf16 %v628, %v627
      %665 = vrot.lane.b32.xlu0 %v629, 8
      %v666 = vpop.permute.xlu0 %665
      %667 = vrot.lane.b32.xlu0 %v630, 8
      %v668 = vpop.permute.xlu0 %667
      %669 = vrot.lane.b32.xlu0 %v631, 8
      %v670 = vpop.permute.xlu0 %669
      %671 = vrot.lane.b32.xlu0 %v632, 8
      %v672 = vpop.permute.xlu0 %671
      %673 = vrot.lane.b32.xlu0 %v633, 8
      %v674 = vpop.permute.xlu0 %673
      %675 = vrot.lane.b32.xlu0 %v634, 8
      %v676 = vpop.permute.xlu0 %675
      %677 = vrot.lane.b32.xlu0 %v635, 8
      %v678 = vpop.permute.xlu0 %677
      %679 = vrot.lane.b32.xlu0 %v636, 8
      %v680 = vpop.permute.xlu0 %679
      %681 = vrot.lane.b32.xlu0 %v637, 8
      %v682 = vpop.permute.xlu0 %681
      %683 = vrot.lane.b32.xlu0 %v638, 8
      %v684 = vpop.permute.xlu0 %683
      %685 = vrot.lane.b32.xlu0 %v639, 8
      %v686 = vpop.permute.xlu0 %685
      %687 = vrot.lane.b32.xlu0 %v640, 8
      %v688 = vpop.permute.xlu0 %687
      %689 = vrot.lane.b32.xlu0 %v641, 8
      %v690 = vpop.permute.xlu0 %689
      %691 = vrot.lane.b32.xlu0 %v642, 8
      %v692 = vpop.permute.xlu0 %691
      %693 = vrot.lane.b32.xlu0 %v643, 8
      %v694 = vpop.permute.xlu0 %693
      %695 = vrot.lane.b32.xlu0 %v644, 8
      %v696 = vpop.permute.xlu0 %695
      %697 = vrot.lane.b32.xlu0 %v645, 8
      %v698 = vpop.permute.xlu0 %697
      %699 = vrot.lane.b32.xlu0 %v646, 8
      %v700 = vpop.permute.xlu0 %699
      %vm719 = vcmask 130112
      %720 = vst.msk [vmem:[#allocation3] sm:$0xff] %vm719, %v666
      %721 = vst.msk [vmem:[#allocation3 + $0x8] sm:$0xff] %vm719, %v668
      %722 = vst.msk [vmem:[#allocation3 + $0x10] sm:$0xff] %vm719, %v670
      %723 = vst.msk [vmem:[#allocation3 + $0x18] sm:$0xff] %vm719, %v672
      %724 = vst.msk [vmem:[#allocation3 + $0x20] sm:$0xff] %vm719, %v674
      %725 = vst.msk [vmem:[#allocation3 + $0x28] sm:$0xff] %vm719, %v676
      %726 = vst.msk [vmem:[#allocation3 + $0x30] sm:$0xff] %vm719, %v678
      %727 = vst.msk [vmem:[#allocation3 + $0x38] sm:$0xff] %vm719, %v680
      %728 = vst.msk [vmem:[#allocation3 + $0x40] sm:$0xff] %vm719, %v682
      %729 = vst.msk [vmem:[#allocation3 + $0x48] sm:$0xff] %vm719, %v684
      %730 = vst.msk [vmem:[#allocation3 + $0x50] sm:$0xff] %vm719, %v686
      %731 = vst.msk [vmem:[#allocation3 + $0x58] sm:$0xff] %vm719, %v688
      %732 = vst.msk [vmem:[#allocation3 + $0x60] sm:$0xff] %vm719, %v690
      %733 = vst.msk [vmem:[#allocation3 + $0x68] sm:$0xff] %vm719, %v692
      %734 = vst.msk [vmem:[#allocation3 + $0x70] sm:$0xff] %vm719, %v694
      %735 = vst.msk [vmem:[#allocation3 + $0x78] sm:$0xff] %vm719, %v696
      %736 = vst.msk [vmem:[#allocation3 + $0x80] sm:$0xff] %vm719, %v698
      %737 = vst.msk [vmem:[#allocation3 + $0x88] sm:$0xff] %vm719, %v700
      %v738 = vld [vmem:[#allocation2 + $0x2] sm:$0xff]
      %v739 = vld [vmem:[#allocation2 + $0xa] sm:$0xff]
      %v740 = vld [vmem:[#allocation2 + $0x12] sm:$0xff]
      %v741 = vld [vmem:[#allocation2 + $0x1a] sm:$0xff]
      %v742 = vld [vmem:[#allocation2 + $0x22] sm:$0xff]
      %v743 = vld [vmem:[#allocation2 + $0x2a] sm:$0xff]
      %v744 = vld [vmem:[#allocation2 + $0x32] sm:$0xff]
      %v745 = vld [vmem:[#allocation2 + $0x3a] sm:$0xff]
      %v746 = vld [vmem:[#allocation2 + $0x42] sm:$0xff]
      %v747 = vld [vmem:[#allocation2 + $0x4a] sm:$0xff]
      %v748 = vld [vmem:[#allocation2 + $0x52] sm:$0xff]
      %v749 = vld [vmem:[#allocation2 + $0x5a] sm:$0xff]
      %v750 = vld [vmem:[#allocation2 + $0x62] sm:$0xff]
      %v751 = vld [vmem:[#allocation2 + $0x6a] sm:$0xff]
      %v752 = vld [vmem:[#allocation2 + $0x72] sm:$0xff]
      %v753 = vld [vmem:[#allocation2 + $0x7a] sm:$0xff]
      %v754 = vld [vmem:[#allocation2 + $0x82] sm:$0xff]
      %v755 = vld [vmem:[#allocation2 + $0x8a] sm:$0xff]
      %v756 = vld [vmem:[#allocation2 + $0x92] sm:$0xff]
      %v757 = vld [vmem:[#allocation2 + $0x9a] sm:$0xff]
      %v758 = vld [vmem:[#allocation2 + $0xa2] sm:$0xff]
      %v759 = vld [vmem:[#allocation2 + $0xaa] sm:$0xff]
      %v760 = vld [vmem:[#allocation2 + $0xb2] sm:$0xff]
      %v761 = vld [vmem:[#allocation2 + $0xba] sm:$0xff]
      %v762 = vld [vmem:[#allocation2 + $0xc2] sm:$0xff]
      %v763 = vld [vmem:[#allocation2 + $0xca] sm:$0xff]
      %v764 = vld [vmem:[#allocation2 + $0xd2] sm:$0xff]
      %v765 = vld [vmem:[#allocation2 + $0xda] sm:$0xff]
      %v766 = vld [vmem:[#allocation2 + $0xe2] sm:$0xff]
      %v767 = vld [vmem:[#allocation2 + $0xea] sm:$0xff]
      %v768 = vld [vmem:[#allocation2 + $0xf2] sm:$0xff]
      %v769 = vld [vmem:[#allocation2 + $0xfa] sm:$0xff]
      %v770 = vld [vmem:[#allocation2 + $0x102] sm:$0xff]
      %v771 = vld [vmem:[#allocation2 + $0x10a] sm:$0xff]
      %v772 = vld [vmem:[#allocation2 + $0x112] sm:$0xff]
      %v773 = vld [vmem:[#allocation2 + $0x11a] sm:$0xff]
      %v774 = vpack.c.bf16 %v739, %v738
      %v775 = vpack.c.bf16 %v741, %v740
      %v776 = vpack.c.bf16 %v743, %v742
      %v777 = vpack.c.bf16 %v745, %v744
      %v778 = vpack.c.bf16 %v747, %v746
      %v779 = vpack.c.bf16 %v749, %v748
      %v780 = vpack.c.bf16 %v751, %v750
      %v781 = vpack.c.bf16 %v753, %v752
      %v782 = vpack.c.bf16 %v755, %v754
      %v783 = vpack.c.bf16 %v757, %v756
      %v784 = vpack.c.bf16 %v759, %v758
      %v785 = vpack.c.bf16 %v761, %v760
      %v786 = vpack.c.bf16 %v763, %v762
      %v787 = vpack.c.bf16 %v765, %v764
      %v788 = vpack.c.bf16 %v767, %v766
      %v789 = vpack.c.bf16 %v769, %v768
      %v790 = vpack.c.bf16 %v771, %v770
      %v791 = vpack.c.bf16 %v773, %v772
      %810 = vrot.lane.b32.xlu0 %v774, 16
      %v811 = vpop.permute.xlu0 %810
      %812 = vrot.lane.b32.xlu0 %v775, 16
      %v813 = vpop.permute.xlu0 %812
      %814 = vrot.lane.b32.xlu0 %v776, 16
      %v815 = vpop.permute.xlu0 %814
      %816 = vrot.lane.b32.xlu0 %v777, 16
      %v817 = vpop.permute.xlu0 %816
      %818 = vrot.lane.b32.xlu0 %v778, 16
      %v819 = vpop.permute.xlu0 %818
      %820 = vrot.lane.b32.xlu0 %v779, 16
      %v821 = vpop.permute.xlu0 %820
      %822 = vrot.lane.b32.xlu0 %v780, 16
      %v823 = vpop.permute.xlu0 %822
      %824 = vrot.lane.b32.xlu0 %v781, 16
      %v825 = vpop.permute.xlu0 %824
      %826 = vrot.lane.b32.xlu0 %v782, 16
      %v827 = vpop.permute.xlu0 %826
      %828 = vrot.lane.b32.xlu0 %v783, 16
      %v829 = vpop.permute.xlu0 %828
      %830 = vrot.lane.b32.xlu0 %v784, 16
      %v831 = vpop.permute.xlu0 %830
      %832 = vrot.lane.b32.xlu0 %v785, 16
      %v833 = vpop.permute.xlu0 %832
      %834 = vrot.lane.b32.xlu0 %v786, 16
      %v835 = vpop.permute.xlu0 %834
      %836 = vrot.lane.b32.xlu0 %v787, 16
      %v837 = vpop.permute.xlu0 %836
      %838 = vrot.lane.b32.xlu0 %v788, 16
      %v839 = vpop.permute.xlu0 %838
      %840 = vrot.lane.b32.xlu0 %v789, 16
      %v841 = vpop.permute.xlu0 %840
      %842 = vrot.lane.b32.xlu0 %v790, 16
      %v843 = vpop.permute.xlu0 %842
      %844 = vrot.lane.b32.xlu0 %v791, 16
      %v845 = vpop.permute.xlu0 %844
      %vm864 = vcmask 195712
      %865 = vst.msk [vmem:[#allocation3] sm:$0xff] %vm864, %v811
      %866 = vst.msk [vmem:[#allocation3 + $0x8] sm:$0xff] %vm864, %v813
      %867 = vst.msk [vmem:[#allocation3 + $0x10] sm:$0xff] %vm864, %v815
      %868 = vst.msk [vmem:[#allocation3 + $0x18] sm:$0xff] %vm864, %v817
      %869 = vst.msk [vmem:[#allocation3 + $0x20] sm:$0xff] %vm864, %v819
      %870 = vst.msk [vmem:[#allocation3 + $0x28] sm:$0xff] %vm864, %v821
      %871 = vst.msk [vmem:[#allocation3 + $0x30] sm:$0xff] %vm864, %v823
      %872 = vst.msk [vmem:[#allocation3 + $0x38] sm:$0xff] %vm864, %v825
      %873 = vst.msk [vmem:[#allocation3 + $0x40] sm:$0xff] %vm864, %v827
      %874 = vst.msk [vmem:[#allocation3 + $0x48] sm:$0xff] %vm864, %v829
      %875 = vst.msk [vmem:[#allocation3 + $0x50] sm:$0xff] %vm864, %v831
      %876 = vst.msk [vmem:[#allocation3 + $0x58] sm:$0xff] %vm864, %v833
      %877 = vst.msk [vmem:[#allocation3 + $0x60] sm:$0xff] %vm864, %v835
      %878 = vst.msk [vmem:[#allocation3 + $0x68] sm:$0xff] %vm864, %v837
      %879 = vst.msk [vmem:[#allocation3 + $0x70] sm:$0xff] %vm864, %v839
      %880 = vst.msk [vmem:[#allocation3 + $0x78] sm:$0xff] %vm864, %v841
      %881 = vst.msk [vmem:[#allocation3 + $0x80] sm:$0xff] %vm864, %v843
      %882 = vst.msk [vmem:[#allocation3 + $0x88] sm:$0xff] %vm864, %v845
      %v883 = vld [vmem:[#allocation2 + $0x12] sm:$0xff]
      %v884 = vld [vmem:[#allocation2 + $0x1a] sm:$0xff]
      %v885 = vld [vmem:[#allocation2 + $0x22] sm:$0xff]
      %v886 = vld [vmem:[#allocation2 + $0x2a] sm:$0xff]
      %v887 = vld [vmem:[#allocation2 + $0x32] sm:$0xff]
      %v888 = vld [vmem:[#allocation2 + $0x3a] sm:$0xff]
      %v889 = vld [vmem:[#allocation2 + $0x42] sm:$0xff]
      %v890 = vld [vmem:[#allocation2 + $0x4a] sm:$0xff]
      %v891 = vld [vmem:[#allocation2 + $0x52] sm:$0xff]
      %v892 = vld [vmem:[#allocation2 + $0x5a] sm:$0xff]
      %v893 = vld [vmem:[#allocation2 + $0x62] sm:$0xff]
      %v894 = vld [vmem:[#allocation2 + $0x6a] sm:$0xff]
      %v895 = vld [vmem:[#allocation2 + $0x72] sm:$0xff]
      %v896 = vld [vmem:[#allocation2 + $0x7a] sm:$0xff]
      %v897 = vld [vmem:[#allocation2 + $0x82] sm:$0xff]
      %v898 = vld [vmem:[#allocation2 + $0x8a] sm:$0xff]
      %v899 = vld [vmem:[#allocation2 + $0x92] sm:$0xff]
      %v900 = vld [vmem:[#allocation2 + $0x9a] sm:$0xff]
      %v901 = vld [vmem:[#allocation2 + $0xa2] sm:$0xff]
      %v902 = vld [vmem:[#allocation2 + $0xaa] sm:$0xff]
      %v903 = vld [vmem:[#allocation2 + $0xb2] sm:$0xff]
      %v904 = vld [vmem:[#allocation2 + $0xba] sm:$0xff]
      %v905 = vld [vmem:[#allocation2 + $0xc2] sm:$0xff]
      %v906 = vld [vmem:[#allocation2 + $0xca] sm:$0xff]
      %v907 = vld [vmem:[#allocation2 + $0xd2] sm:$0xff]
      %v908 = vld [vmem:[#allocation2 + $0xda] sm:$0xff]
      %v909 = vld [vmem:[#allocation2 + $0xe2] sm:$0xff]
      %v910 = vld [vmem:[#allocation2 + $0xea] sm:$0xff]
      %v911 = vld [vmem:[#allocation2 + $0xf2] sm:$0xff]
      %v912 = vld [vmem:[#allocation2 + $0xfa] sm:$0xff]
      %v913 = vld [vmem:[#allocation2 + $0x102] sm:$0xff]
      %v914 = vld [vmem:[#allocation2 + $0x10a] sm:$0xff]
      %v915 = vld [vmem:[#allocation2 + $0x112] sm:$0xff]
      %v916 = vld [vmem:[#allocation2 + $0x11a] sm:$0xff]
      %v917 = vld [vmem:[#allocation2 + $0x122] sm:$0xff]
      %v918 = vld [vmem:[#allocation2 + $0x12a] sm:$0xff]
      %v919 = vpack.c.bf16 %v884, %v883
      %v920 = vpack.c.bf16 %v886, %v885
      %v921 = vpack.c.bf16 %v888, %v887
      %v922 = vpack.c.bf16 %v890, %v889
      %v923 = vpack.c.bf16 %v892, %v891
      %v924 = vpack.c.bf16 %v894, %v893
      %v925 = vpack.c.bf16 %v896, %v895
      %v926 = vpack.c.bf16 %v898, %v897
      %v927 = vpack.c.bf16 %v900, %v899
      %v928 = vpack.c.bf16 %v902, %v901
      %v929 = vpack.c.bf16 %v904, %v903
      %v930 = vpack.c.bf16 %v906, %v905
      %v931 = vpack.c.bf16 %v908, %v907
      %v932 = vpack.c.bf16 %v910, %v909
      %v933 = vpack.c.bf16 %v912, %v911
      %v934 = vpack.c.bf16 %v914, %v913
      %v935 = vpack.c.bf16 %v916, %v915
      %v936 = vpack.c.bf16 %v918, %v917
      %955 = vrot.lane.b32.xlu0 %v919, 24
      %v956 = vpop.permute.xlu0 %955
      %957 = vrot.lane.b32.xlu0 %v920, 24
      %v958 = vpop.permute.xlu0 %957
      %959 = vrot.lane.b32.xlu0 %v921, 24
      %v960 = vpop.permute.xlu0 %959
      %961 = vrot.lane.b32.xlu0 %v922, 24
      %v962 = vpop.permute.xlu0 %961
      %963 = vrot.lane.b32.xlu0 %v923, 24
      %v964 = vpop.permute.xlu0 %963
      %965 = vrot.lane.b32.xlu0 %v924, 24
      %v966 = vpop.permute.xlu0 %965
      %967 = vrot.lane.b32.xlu0 %v925, 24
      %v968 = vpop.permute.xlu0 %967
      %969 = vrot.lane.b32.xlu0 %v926, 24
      %v970 = vpop.permute.xlu0 %969
      %971 = vrot.lane.b32.xlu0 %v927, 24
      %v972 = vpop.permute.xlu0 %971
      %973 = vrot.lane.b32.xlu0 %v928, 24
      %v974 = vpop.permute.xlu0 %973
      %975 = vrot.lane.b32.xlu0 %v929, 24
      %v976 = vpop.permute.xlu0 %975
      %977 = vrot.lane.b32.xlu0 %v930, 24
      %v978 = vpop.permute.xlu0 %977
      %979 = vrot.lane.b32.xlu0 %v931, 24
      %v980 = vpop.permute.xlu0 %979
      %981 = vrot.lane.b32.xlu0 %v932, 24
      %v982 = vpop.permute.xlu0 %981
      %983 = vrot.lane.b32.xlu0 %v933, 24
      %v984 = vpop.permute.xlu0 %983
      %985 = vrot.lane.b32.xlu0 %v934, 24
      %v986 = vpop.permute.xlu0 %985
      %987 = vrot.lane.b32.xlu0 %v935, 24
      %v988 = vpop.permute.xlu0 %987
      %989 = vrot.lane.b32.xlu0 %v936, 24
      %v990 = vpop.permute.xlu0 %989
      %vm1009 = vcmask 261312
      %1010 = vst.msk [vmem:[#allocation3] sm:$0xff] %vm1009, %v956
      %1011 = vst.msk [vmem:[#allocation3 + $0x8] sm:$0xff] %vm1009, %v958
      %1012 = vst.msk [vmem:[#allocation3 + $0x10] sm:$0xff] %vm1009, %v960
      %1013 = vst.msk [vmem:[#allocation3 + $0x18] sm:$0xff] %vm1009, %v962
      %1014 = vst.msk [vmem:[#allocation3 + $0x20] sm:$0xff] %vm1009, %v964
      %1015 = vst.msk [vmem:[#allocation3 + $0x28] sm:$0xff] %vm1009, %v966
      %1016 = vst.msk [vmem:[#allocation3 + $0x30] sm:$0xff] %vm1009, %v968
      %1017 = vst.msk [vmem:[#allocation3 + $0x38] sm:$0xff] %vm1009, %v970
      %1018 = vst.msk [vmem:[#allocation3 + $0x40] sm:$0xff] %vm1009, %v972
      %1019 = vst.msk [vmem:[#allocation3 + $0x48] sm:$0xff] %vm1009, %v974
      %1020 = vst.msk [vmem:[#allocation3 + $0x50] sm:$0xff] %vm1009, %v976
      %1021 = vst.msk [vmem:[#allocation3 + $0x58] sm:$0xff] %vm1009, %v978
      %1022 = vst.msk [vmem:[#allocation3 + $0x60] sm:$0xff] %vm1009, %v980
      %1023 = vst.msk [vmem:[#allocation3 + $0x68] sm:$0xff] %vm1009, %v982
      %1024 = vst.msk [vmem:[#allocation3 + $0x70] sm:$0xff] %vm1009, %v984
      %1025 = vst.msk [vmem:[#allocation3 + $0x78] sm:$0xff] %vm1009, %v986
      %1026 = vst.msk [vmem:[#allocation3 + $0x80] sm:$0xff] %vm1009, %v988
      %1027 = vst.msk [vmem:[#allocation3 + $0x88] sm:$0xff] %vm1009, %v990
      %v1028 = vld [vmem:[#allocation2 + $0x13] sm:$0xff]
      %v1029 = vld [vmem:[#allocation2 + $0x1b] sm:$0xff]
      %v1030 = vld [vmem:[#allocation2 + $0x23] sm:$0xff]
      %v1031 = vld [vmem:[#allocation2 + $0x2b] sm:$0xff]
      %v1032 = vld [vmem:[#allocation2 + $0x33] sm:$0xff]
      %v1033 = vld [vmem:[#allocation2 + $0x3b] sm:$0xff]
      %v1034 = vld [vmem:[#allocation2 + $0x43] sm:$0xff]
      %v1035 = vld [vmem:[#allocation2 + $0x4b] sm:$0xff]
      %v1036 = vld [vmem:[#allocation2 + $0x53] sm:$0xff]
      %v1037 = vld [vmem:[#allocation2 + $0x5b] sm:$0xff]
      %v1038 = vld [vmem:[#allocation2 + $0x63] sm:$0xff]
      %v1039 = vld [vmem:[#allocation2 + $0x6b] sm:$0xff]
      %v1040 = vld [vmem:[#allocation2 + $0x73] sm:$0xff]
      %v1041 = vld [vmem:[#allocation2 + $0x7b] sm:$0xff]
      %v1042 = vld [vmem:[#allocation2 + $0x83] sm:$0xff]
      %v1043 = vld [vmem:[#allocation2 + $0x8b] sm:$0xff]
      %v1044 = vld [vmem:[#allocation2 + $0x93] sm:$0xff]
      %v1045 = vld [vmem:[#allocation2 + $0x9b] sm:$0xff]
      %v1046 = vld [vmem:[#allocation2 + $0xa3] sm:$0xff]
      %v1047 = vld [vmem:[#allocation2 + $0xab] sm:$0xff]
      %v1048 = vld [vmem:[#allocation2 + $0xb3] sm:$0xff]
      %v1049 = vld [vmem:[#allocation2 + $0xbb] sm:$0xff]
      %v1050 = vld [vmem:[#allocation2 + $0xc3] sm:$0xff]
      %v1051 = vld [vmem:[#allocation2 + $0xcb] sm:$0xff]
      %v1052 = vld [vmem:[#allocation2 + $0xd3] sm:$0xff]
      %v1053 = vld [vmem:[#allocation2 + $0xdb] sm:$0xff]
      %v1054 = vld [vmem:[#allocation2 + $0xe3] sm:$0xff]
      %v1055 = vld [vmem:[#allocation2 + $0xeb] sm:$0xff]
      %v1056 = vld [vmem:[#allocation2 + $0xf3] sm:$0xff]
      %v1057 = vld [vmem:[#allocation2 + $0xfb] sm:$0xff]
      %v1058 = vld [vmem:[#allocation2 + $0x103] sm:$0xff]
      %v1059 = vld [vmem:[#allocation2 + $0x10b] sm:$0xff]
      %v1060 = vld [vmem:[#allocation2 + $0x113] sm:$0xff]
      %v1061 = vld [vmem:[#allocation2 + $0x11b] sm:$0xff]
      %v1062 = vld [vmem:[#allocation2 + $0x123] sm:$0xff]
      %v1063 = vld [vmem:[#allocation2 + $0x12b] sm:$0xff]
      %v1064 = vpack.c.bf16 %v1029, %v1028
      %v1065 = vpack.c.bf16 %v1031, %v1030
      %v1066 = vpack.c.bf16 %v1033, %v1032
      %v1067 = vpack.c.bf16 %v1035, %v1034
      %v1068 = vpack.c.bf16 %v1037, %v1036
      %v1069 = vpack.c.bf16 %v1039, %v1038
      %v1070 = vpack.c.bf16 %v1041, %v1040
      %v1071 = vpack.c.bf16 %v1043, %v1042
      %v1072 = vpack.c.bf16 %v1045, %v1044
      %v1073 = vpack.c.bf16 %v1047, %v1046
      %v1074 = vpack.c.bf16 %v1049, %v1048
      %v1075 = vpack.c.bf16 %v1051, %v1050
      %v1076 = vpack.c.bf16 %v1053, %v1052
      %v1077 = vpack.c.bf16 %v1055, %v1054
      %v1078 = vpack.c.bf16 %v1057, %v1056
      %v1079 = vpack.c.bf16 %v1059, %v1058
      %v1080 = vpack.c.bf16 %v1061, %v1060
      %v1081 = vpack.c.bf16 %v1063, %v1062
      %1100 = vrot.lane.b32.xlu0 %v1064, 32
      %v1101 = vpop.permute.xlu0 %1100
      %1102 = vrot.lane.b32.xlu0 %v1065, 32
      %v1103 = vpop.permute.xlu0 %1102
      %1104 = vrot.lane.b32.xlu0 %v1066, 32
      %v1105 = vpop.permute.xlu0 %1104
      %1106 = vrot.lane.b32.xlu0 %v1067, 32
      %v1107 = vpop.permute.xlu0 %1106
      %1108 = vrot.lane.b32.xlu0 %v1068, 32
      %v1109 = vpop.permute.xlu0 %1108
      %1110 = vrot.lane.b32.xlu0 %v1069, 32
      %v1111 = vpop.permute.xlu0 %1110
      %1112 = vrot.lane.b32.xlu0 %v1070, 32
      %v1113 = vpop.permute.xlu0 %1112
      %1114 = vrot.lane.b32.xlu0 %v1071, 32
      %v1115 = vpop.permute.xlu0 %1114
      %1116 = vrot.lane.b32.xlu0 %v1072, 32
      %v1117 = vpop.permute.xlu0 %1116
      %1118 = vrot.lane.b32.xlu0 %v1073, 32
      %v1119 = vpop.permute.xlu0 %1118
      %1120 = vrot.lane.b32.xlu0 %v1074, 32
      %v1121 = vpop.permute.xlu0 %1120
      %1122 = vrot.lane.b32.xlu0 %v1075, 32
      %v1123 = vpop.permute.xlu0 %1122
      %1124 = vrot.lane.b32.xlu0 %v1076, 32
      %v1125 = vpop.permute.xlu0 %1124
      %1126 = vrot.lane.b32.xlu0 %v1077, 32
      %v1127 = vpop.permute.xlu0 %1126
      %1128 = vrot.lane.b32.xlu0 %v1078, 32
      %v1129 = vpop.permute.xlu0 %1128
      %1130 = vrot.lane.b32.xlu0 %v1079, 32
      %v1131 = vpop.permute.xlu0 %1130
      %1132 = vrot.lane.b32.xlu0 %v1080, 32
      %v1133 = vpop.permute.xlu0 %1132
      %1134 = vrot.lane.b32.xlu0 %v1081, 32
      %v1135 = vpop.permute.xlu0 %1134
      %vm1154 = vcmask 326912
      %1155 = vst.msk [vmem:[#allocation3] sm:$0xff] %vm1154, %v1101
      %1156 = vst.msk [vmem:[#allocation3 + $0x8] sm:$0xff] %vm1154, %v1103
      %1157 = vst.msk [vmem:[#allocation3 + $0x10] sm:$0xff] %vm1154, %v1105
      %1158 = vst.msk [vmem:[#allocation3 + $0x18] sm:$0xff] %vm1154, %v1107
      %1159 = vst.msk [vmem:[#allocation3 + $0x20] sm:$0xff] %vm1154, %v1109
      %1160 = vst.msk [vmem:[#allocation3 + $0x28] sm:$0xff] %vm1154, %v1111
      %1161 = vst.msk [vmem:[#allocation3 + $0x30] sm:$0xff] %vm1154, %v1113
      %1162 = vst.msk [vmem:[#allocation3 + $0x38] sm:$0xff] %vm1154, %v1115
      %1163 = vst.msk [vmem:[#allocation3 + $0x40] sm:$0xff] %vm1154, %v1117
      %1164 = vst.msk [vmem:[#allocation3 + $0x48] sm:$0xff] %vm1154, %v1119
      %1165 = vst.msk [vmem:[#allocation3 + $0x50] sm:$0xff] %vm1154, %v1121
      %1166 = vst.msk [vmem:[#allocation3 + $0x58] sm:$0xff] %vm1154, %v1123
      %1167 = vst.msk [vmem:[#allocation3 + $0x60] sm:$0xff] %vm1154, %v1125
      %1168 = vst.msk [vmem:[#allocation3 + $0x68] sm:$0xff] %vm1154, %v1127
      %1169 = vst.msk [vmem:[#allocation3 + $0x70] sm:$0xff] %vm1154, %v1129
      %1170 = vst.msk [vmem:[#allocation3 + $0x78] sm:$0xff] %vm1154, %v1131
      %1171 = vst.msk [vmem:[#allocation3 + $0x80] sm:$0xff] %vm1154, %v1133
      %1172 = vst.msk [vmem:[#allocation3 + $0x88] sm:$0xff] %vm1154, %v1135
      %v1173 = vld [vmem:[#allocation2 + $0x14] sm:$0xff]
      %v1174 = vld [vmem:[#allocation2 + $0x1c] sm:$0xff]
      %v1175 = vld [vmem:[#allocation2 + $0x24] sm:$0xff]
      %v1176 = vld [vmem:[#allocation2 + $0x2c] sm:$0xff]
      %v1177 = vld [vmem:[#allocation2 + $0x34] sm:$0xff]
      %v1178 = vld [vmem:[#allocation2 + $0x3c] sm:$0xff]
      %v1179 = vld [vmem:[#allocation2 + $0x44] sm:$0xff]
      %v1180 = vld [vmem:[#allocation2 + $0x4c] sm:$0xff]
      %v1181 = vld [vmem:[#allocation2 + $0x54] sm:$0xff]
      %v1182 = vld [vmem:[#allocation2 + $0x5c] sm:$0xff]
      %v1183 = vld [vmem:[#allocation2 + $0x64] sm:$0xff]
      %v1184 = vld [vmem:[#allocation2 + $0x6c] sm:$0xff]
      %v1185 = vld [vmem:[#allocation2 + $0x74] sm:$0xff]
      %v1186 = vld [vmem:[#allocation2 + $0x7c] sm:$0xff]
      %v1187 = vld [vmem:[#allocation2 + $0x84] sm:$0xff]
      %v1188 = vld [vmem:[#allocation2 + $0x8c] sm:$0xff]
      %v1189 = vld [vmem:[#allocation2 + $0x94] sm:$0xff]
      %v1190 = vld [vmem:[#allocation2 + $0x9c] sm:$0xff]
      %v1191 = vld [vmem:[#allocation2 + $0xa4] sm:$0xff]
      %v1192 = vld [vmem:[#allocation2 + $0xac] sm:$0xff]
      %v1193 = vld [vmem:[#allocation2 + $0xb4] sm:$0xff]
      %v1194 = vld [vmem:[#allocation2 + $0xbc] sm:$0xff]
      %v1195 = vld [vmem:[#allocation2 + $0xc4] sm:$0xff]
      %v1196 = vld [vmem:[#allocation2 + $0xcc] sm:$0xff]
      %v1197 = vld [vmem:[#allocation2 + $0xd4] sm:$0xff]
      %v1198 = vld [vmem:[#allocation2 + $0xdc] sm:$0xff]
      %v1199 = vld [vmem:[#allocation2 + $0xe4] sm:$0xff]
      %v1200 = vld [vmem:[#allocation2 + $0xec] sm:$0xff]
      %v1201 = vld [vmem:[#allocation2 + $0xf4] sm:$0xff]
      %v1202 = vld [vmem:[#allocation2 + $0xfc] sm:$0xff]
      %v1203 = vld [vmem:[#allocation2 + $0x104] sm:$0xff]
      %v1204 = vld [vmem:[#allocation2 + $0x10c] sm:$0xff]
      %v1205 = vld [vmem:[#allocation2 + $0x114] sm:$0xff]
      %v1206 = vld [vmem:[#allocation2 + $0x11c] sm:$0xff]
      %v1207 = vld [vmem:[#allocation2 + $0x124] sm:$0xff]
      %v1208 = vld [vmem:[#allocation2 + $0x12c] sm:$0xff]
      %v1209 = vpack.c.bf16 %v1174, %v1173
      %v1210 = vpack.c.bf16 %v1176, %v1175
      %v1211 = vpack.c.bf16 %v1178, %v1177
      %v1212 = vpack.c.bf16 %v1180, %v1179
      %v1213 = vpack.c.bf16 %v1182, %v1181
      %v1214 = vpack.c.bf16 %v1184, %v1183
      %v1215 = vpack.c.bf16 %v1186, %v1185
      %v1216 = vpack.c.bf16 %v1188, %v1187
      %v1217 = vpack.c.bf16 %v1190, %v1189
      %v1218 = vpack.c.bf16 %v1192, %v1191
      %v1219 = vpack.c.bf16 %v1194, %v1193
      %v1220 = vpack.c.bf16 %v1196, %v1195
      %v1221 = vpack.c.bf16 %v1198, %v1197
      %v1222 = vpack.c.bf16 %v1200, %v1199
      %v1223 = vpack.c.bf16 %v1202, %v1201
      %v1224 = vpack.c.bf16 %v1204, %v1203
      %v1225 = vpack.c.bf16 %v1206, %v1205
      %v1226 = vpack.c.bf16 %v1208, %v1207
      %1245 = vrot.lane.b32.xlu0 %v1209, 40
      %v1246 = vpop.permute.xlu0 %1245
      %1247 = vrot.lane.b32.xlu0 %v1210, 40
      %v1248 = vpop.permute.xlu0 %1247
      %1249 = vrot.lane.b32.xlu0 %v1211, 40
      %v1250 = vpop.permute.xlu0 %1249
      %1251 = vrot.lane.b32.xlu0 %v1212, 40
      %v1252 = vpop.permute.xlu0 %1251
      %1253 = vrot.lane.b32.xlu0 %v1213, 40
      %v1254 = vpop.permute.xlu0 %1253
      %1255 = vrot.lane.b32.xlu0 %v1214, 40
      %v1256 = vpop.permute.xlu0 %1255
      %1257 = vrot.lane.b32.xlu0 %v1215, 40
      %v1258 = vpop.permute.xlu0 %1257
      %1259 = vrot.lane.b32.xlu0 %v1216, 40
      %v1260 = vpop.permute.xlu0 %1259
      %1261 = vrot.lane.b32.xlu0 %v1217, 40
      %v1262 = vpop.permute.xlu0 %1261
      %1263 = vrot.lane.b32.xlu0 %v1218, 40
      %v1264 = vpop.permute.xlu0 %1263
      %1265 = vrot.lane.b32.xlu0 %v1219, 40
      %v1266 = vpop.permute.xlu0 %1265
      %1267 = vrot.lane.b32.xlu0 %v1220, 40
      %v1268 = vpop.permute.xlu0 %1267
      %1269 = vrot.lane.b32.xlu0 %v1221, 40
      %v1270 = vpop.permute.xlu0 %1269
      %1271 = vrot.lane.b32.xlu0 %v1222, 40
      %v1272 = vpop.permute.xlu0 %1271
      %1273 = vrot.lane.b32.xlu0 %v1223, 40
      %v1274 = vpop.permute.xlu0 %1273
      %1275 = vrot.lane.b32.xlu0 %v1224, 40
      %v1276 = vpop.permute.xlu0 %1275
      %1277 = vrot.lane.b32.xlu0 %v1225, 40
      %v1278 = vpop.permute.xlu0 %1277
      %1279 = vrot.lane.b32.xlu0 %v1226, 40
      %v1280 = vpop.permute.xlu0 %1279
      %vm1299 = vcmask 392512
      %1300 = vst.msk [vmem:[#allocation3] sm:$0xff] %vm1299, %v1246
      %1301 = vst.msk [vmem:[#allocation3 + $0x8] sm:$0xff] %vm1299, %v1248
      %1302 = vst.msk [vmem:[#allocation3 + $0x10] sm:$0xff] %vm1299, %v1250
      %1303 = vst.msk [vmem:[#allocation3 + $0x18] sm:$0xff] %vm1299, %v1252
      %1304 = vst.msk [vmem:[#allocation3 + $0x20] sm:$0xff] %vm1299, %v1254
      %1305 = vst.msk [vmem:[#allocation3 + $0x28] sm:$0xff] %vm1299, %v1256
      %1306 = vst.msk [vmem:[#allocation3 + $0x30] sm:$0xff] %vm1299, %v1258
      %1307 = vst.msk [vmem:[#allocation3 + $0x38] sm:$0xff] %vm1299, %v1260
      %1308 = vst.msk [vmem:[#allocation3 + $0x40] sm:$0xff] %vm1299, %v1262
      %1309 = vst.msk [vmem:[#allocation3 + $0x48] sm:$0xff] %vm1299, %v1264
      %1310 = vst.msk [vmem:[#allocation3 + $0x50] sm:$0xff] %vm1299, %v1266
      %1311 = vst.msk [vmem:[#allocation3 + $0x58] sm:$0xff] %vm1299, %v1268
      %1312 = vst.msk [vmem:[#allocation3 + $0x60] sm:$0xff] %vm1299, %v1270
      %1313 = vst.msk [vmem:[#allocation3 + $0x68] sm:$0xff] %vm1299, %v1272
      %1314 = vst.msk [vmem:[#allocation3 + $0x70] sm:$0xff] %vm1299, %v1274
      %1315 = vst.msk [vmem:[#allocation3 + $0x78] sm:$0xff] %vm1299, %v1276
      %1316 = vst.msk [vmem:[#allocation3 + $0x80] sm:$0xff] %vm1299, %v1278
      %1317 = vst.msk [vmem:[#allocation3 + $0x88] sm:$0xff] %vm1299, %v1280
      %v1318 = vld [vmem:[#allocation2 + $0x24] sm:$0xff]
      %v1319 = vld [vmem:[#allocation2 + $0x2c] sm:$0xff]
      %v1320 = vld [vmem:[#allocation2 + $0x34] sm:$0xff]
      %v1321 = vld [vmem:[#allocation2 + $0x3c] sm:$0xff]
      %v1322 = vld [vmem:[#allocation2 + $0x44] sm:$0xff]
      %v1323 = vld [vmem:[#allocation2 + $0x4c] sm:$0xff]
      %v1324 = vld [vmem:[#allocation2 + $0x54] sm:$0xff]
      %v1325 = vld [vmem:[#allocation2 + $0x5c] sm:$0xff]
      %v1326 = vld [vmem:[#allocation2 + $0x64] sm:$0xff]
      %v1327 = vld [vmem:[#allocation2 + $0x6c] sm:$0xff]
      %v1328 = vld [vmem:[#allocation2 + $0x74] sm:$0xff]
      %v1329 = vld [vmem:[#allocation2 + $0x7c] sm:$0xff]
      %v1330 = vld [vmem:[#allocation2 + $0x84] sm:$0xff]
      %v1331 = vld [vmem:[#allocation2 + $0x8c] sm:$0xff]
      %v1332 = vld [vmem:[#allocation2 + $0x94] sm:$0xff]
      %v1333 = vld [vmem:[#allocation2 + $0x9c] sm:$0xff]
      %v1334 = vld [vmem:[#allocation2 + $0xa4] sm:$0xff]
      %v1335 = vld [vmem:[#allocation2 + $0xac] sm:$0xff]
      %v1336 = vld [vmem:[#allocation2 + $0xb4] sm:$0xff]
      %v1337 = vld [vmem:[#allocation2 + $0xbc] sm:$0xff]
      %v1338 = vld [vmem:[#allocation2 + $0xc4] sm:$0xff]
      %v1339 = vld [vmem:[#allocation2 + $0xcc] sm:$0xff]
      %v1340 = vld [vmem:[#allocation2 + $0xd4] sm:$0xff]
      %v1341 = vld [vmem:[#allocation2 + $0xdc] sm:$0xff]
      %v1342 = vld [vmem:[#allocation2 + $0xe4] sm:$0xff]
      %v1343 = vld [vmem:[#allocation2 + $0xec] sm:$0xff]
      %v1344 = vld [vmem:[#allocation2 + $0xf4] sm:$0xff]
      %v1345 = vld [vmem:[#allocation2 + $0xfc] sm:$0xff]
      %v1346 = vld [vmem:[#allocation2 + $0x104] sm:$0xff]
      %v1347 = vld [vmem:[#allocation2 + $0x10c] sm:$0xff]
      %v1348 = vld [vmem:[#allocation2 + $0x114] sm:$0xff]
      %v1349 = vld [vmem:[#allocation2 + $0x11c] sm:$0xff]
      %v1350 = vld [vmem:[#allocation2 + $0x124] sm:$0xff]
      %v1351 = vld [vmem:[#allocation2 + $0x12c] sm:$0xff]
      %v1352 = vld [vmem:[#allocation2 + $0x134] sm:$0xff]
      %v1353 = vld [vmem:[#allocation2 + $0x13c] sm:$0xff]
      %v1354 = vpack.c.bf16 %v1319, %v1318
      %v1355 = vpack.c.bf16 %v1321, %v1320
      %v1356 = vpack.c.bf16 %v1323, %v1322
      %v1357 = vpack.c.bf16 %v1325, %v1324
      %v1358 = vpack.c.bf16 %v1327, %v1326
      %v1359 = vpack.c.bf16 %v1329, %v1328
      %v1360 = vpack.c.bf16 %v1331, %v1330
      %v1361 = vpack.c.bf16 %v1333, %v1332
      %v1362 = vpack.c.bf16 %v1335, %v1334
      %v1363 = vpack.c.bf16 %v1337, %v1336
      %v1364 = vpack.c.bf16 %v1339, %v1338
      %v1365 = vpack.c.bf16 %v1341, %v1340
      %v1366 = vpack.c.bf16 %v1343, %v1342
      %v1367 = vpack.c.bf16 %v1345, %v1344
      %v1368 = vpack.c.bf16 %v1347, %v1346
      %v1369 = vpack.c.bf16 %v1349, %v1348
      %v1370 = vpack.c.bf16 %v1351, %v1350
      %v1371 = vpack.c.bf16 %v1353, %v1352
      %1390 = vrot.lane.b32.xlu0 %v1354, 48
      %v1391 = vpop.permute.xlu0 %1390
      %1392 = vrot.lane.b32.xlu0 %v1355, 48
      %v1393 = vpop.permute.xlu0 %1392
      %1394 = vrot.lane.b32.xlu0 %v1356, 48
      %v1395 = vpop.permute.xlu0 %1394
      %1396 = vrot.lane.b32.xlu0 %v1357, 48
      %v1397 = vpop.permute.xlu0 %1396
      %1398 = vrot.lane.b32.xlu0 %v1358, 48
      %v1399 = vpop.permute.xlu0 %1398
      %1400 = vrot.lane.b32.xlu0 %v1359, 48
      %v1401 = vpop.permute.xlu0 %1400
      %1402 = vrot.lane.b32.xlu0 %v1360, 48
      %v1403 = vpop.permute.xlu0 %1402
      %1404 = vrot.lane.b32.xlu0 %v1361, 48
      %v1405 = vpop.permute.xlu0 %1404
      %1406 = vrot.lane.b32.xlu0 %v1362, 48
      %v1407 = vpop.permute.xlu0 %1406
      %1408 = vrot.lane.b32.xlu0 %v1363, 48
      %v1409 = vpop.permute.xlu0 %1408
      %1410 = vrot.lane.b32.xlu0 %v1364, 48
      %v1411 = vpop.permute.xlu0 %1410
      %1412 = vrot.lane.b32.xlu0 %v1365, 48
      %v1413 = vpop.permute.xlu0 %1412
      %1414 = vrot.lane.b32.xlu0 %v1366, 48
      %v1415 = vpop.permute.xlu0 %1414
      %1416 = vrot.lane.b32.xlu0 %v1367, 48
      %v1417 = vpop.permute.xlu0 %1416
      %1418 = vrot.lane.b32.xlu0 %v1368, 48
      %v1419 = vpop.permute.xlu0 %1418
      %1420 = vrot.lane.b32.xlu0 %v1369, 48
      %v1421 = vpop.permute.xlu0 %1420
      %1422 = vrot.lane.b32.xlu0 %v1370, 48
      %v1423 = vpop.permute.xlu0 %1422
      %1424 = vrot.lane.b32.xlu0 %v1371, 48
      %v1425 = vpop.permute.xlu0 %1424
      %vm1444 = vcmask 458112
      %1445 = vst.msk [vmem:[#allocation3] sm:$0xff] %vm1444, %v1391
      %1446 = vst.msk [vmem:[#allocation3 + $0x8] sm:$0xff] %vm1444, %v1393
      %1447 = vst.msk [vmem:[#allocation3 + $0x10] sm:$0xff] %vm1444, %v1395
      %1448 = vst.msk [vmem:[#allocation3 + $0x18] sm:$0xff] %vm1444, %v1397
      %1449 = vst.msk [vmem:[#allocation3 + $0x20] sm:$0xff] %vm1444, %v1399
      %1450 = vst.msk [vmem:[#allocation3 + $0x28] sm:$0xff] %vm1444, %v1401
      %1451 = vst.msk [vmem:[#allocation3 + $0x30] sm:$0xff] %vm1444, %v1403
      %1452 = vst.msk [vmem:[#allocation3 + $0x38] sm:$0xff] %vm1444, %v1405
      %1453 = vst.msk [vmem:[#allocation3 + $0x40] sm:$0xff] %vm1444, %v1407
      %1454 = vst.msk [vmem:[#allocation3 + $0x48] sm:$0xff] %vm1444, %v1409
      %1455 = vst.msk [vmem:[#allocation3 + $0x50] sm:$0xff] %vm1444, %v1411
      %1456 = vst.msk [vmem:[#allocation3 + $0x58] sm:$0xff] %vm1444, %v1413
      %1457 = vst.msk [vmem:[#allocation3 + $0x60] sm:$0xff] %vm1444, %v1415
      %1458 = vst.msk [vmem:[#allocation3 + $0x68] sm:$0xff] %vm1444, %v1417
      %1459 = vst.msk [vmem:[#allocation3 + $0x70] sm:$0xff] %vm1444, %v1419
      %1460 = vst.msk [vmem:[#allocation3 + $0x78] sm:$0xff] %vm1444, %v1421
      %1461 = vst.msk [vmem:[#allocation3 + $0x80] sm:$0xff] %vm1444, %v1423
      %1462 = vst.msk [vmem:[#allocation3 + $0x88] sm:$0xff] %vm1444, %v1425
      %v1463 = vld [vmem:[#allocation2 + $0x25] sm:$0xff]
      %v1464 = vld [vmem:[#allocation2 + $0x2d] sm:$0xff]
      %v1465 = vld [vmem:[#allocation2 + $0x35] sm:$0xff]
      %v1466 = vld [vmem:[#allocation2 + $0x3d] sm:$0xff]
      %v1467 = vld [vmem:[#allocation2 + $0x45] sm:$0xff]
      %v1468 = vld [vmem:[#allocation2 + $0x4d] sm:$0xff]
      %v1469 = vld [vmem:[#allocation2 + $0x55] sm:$0xff]
      %v1470 = vld [vmem:[#allocation2 + $0x5d] sm:$0xff]
      %v1471 = vld [vmem:[#allocation2 + $0x65] sm:$0xff]
      %v1472 = vld [vmem:[#allocation2 + $0x6d] sm:$0xff]
      %v1473 = vld [vmem:[#allocation2 + $0x75] sm:$0xff]
      %v1474 = vld [vmem:[#allocation2 + $0x7d] sm:$0xff]
      %v1475 = vld [vmem:[#allocation2 + $0x85] sm:$0xff]
      %v1476 = vld [vmem:[#allocation2 + $0x8d] sm:$0xff]
      %v1477 = vld [vmem:[#allocation2 + $0x95] sm:$0xff]
      %v1478 = vld [vmem:[#allocation2 + $0x9d] sm:$0xff]
      %v1479 = vld [vmem:[#allocation2 + $0xa5] sm:$0xff]
      %v1480 = vld [vmem:[#allocation2 + $0xad] sm:$0xff]
      %v1481 = vld [vmem:[#allocation2 + $0xb5] sm:$0xff]
      %v1482 = vld [vmem:[#allocation2 + $0xbd] sm:$0xff]
      %v1483 = vld [vmem:[#allocation2 + $0xc5] sm:$0xff]
      %v1484 = vld [vmem:[#allocation2 + $0xcd] sm:$0xff]
      %v1485 = vld [vmem:[#allocation2 + $0xd5] sm:$0xff]
      %v1486 = vld [vmem:[#allocation2 + $0xdd] sm:$0xff]
      %v1487 = vld [vmem:[#allocation2 + $0xe5] sm:$0xff]
      %v1488 = vld [vmem:[#allocation2 + $0xed] sm:$0xff]
      %v1489 = vld [vmem:[#allocation2 + $0xf5] sm:$0xff]
      %v1490 = vld [vmem:[#allocation2 + $0xfd] sm:$0xff]
      %v1491 = vld [vmem:[#allocation2 + $0x105] sm:$0xff]
      %v1492 = vld [vmem:[#allocation2 + $0x10d] sm:$0xff]
      %v1493 = vld [vmem:[#allocation2 + $0x115] sm:$0xff]
      %v1494 = vld [vmem:[#allocation2 + $0x11d] sm:$0xff]
      %v1495 = vld [vmem:[#allocation2 + $0x125] sm:$0xff]
      %v1496 = vld [vmem:[#allocation2 + $0x12d] sm:$0xff]
      %v1497 = vld [vmem:[#allocation2 + $0x135] sm:$0xff]
      %v1498 = vld [vmem:[#allocation2 + $0x13d] sm:$0xff]
      %v1499 = vpack.c.bf16 %v1464, %v1463
      %v1500 = vpack.c.bf16 %v1466, %v1465
      %v1501 = vpack.c.bf16 %v1468, %v1467
      %v1502 = vpack.c.bf16 %v1470, %v1469
      %v1503 = vpack.c.bf16 %v1472, %v1471
      %v1504 = vpack.c.bf16 %v1474, %v1473
      %v1505 = vpack.c.bf16 %v1476, %v1475
      %v1506 = vpack.c.bf16 %v1478, %v1477
      %v1507 = vpack.c.bf16 %v1480, %v1479
      %v1508 = vpack.c.bf16 %v1482, %v1481
      %v1509 = vpack.c.bf16 %v1484, %v1483
      %v1510 = vpack.c.bf16 %v1486, %v1485
      %v1511 = vpack.c.bf16 %v1488, %v1487
      %v1512 = vpack.c.bf16 %v1490, %v1489
      %v1513 = vpack.c.bf16 %v1492, %v1491
      %v1514 = vpack.c.bf16 %v1494, %v1493
      %v1515 = vpack.c.bf16 %v1496, %v1495
      %v1516 = vpack.c.bf16 %v1498, %v1497
      %1535 = vrot.lane.b32.xlu0 %v1499, 56
      %v1536 = vpop.permute.xlu0 %1535
      %1537 = vrot.lane.b32.xlu0 %v1500, 56
      %v1538 = vpop.permute.xlu0 %1537
      %1539 = vrot.lane.b32.xlu0 %v1501, 56
      %v1540 = vpop.permute.xlu0 %1539
      %1541 = vrot.lane.b32.xlu0 %v1502, 56
      %v1542 = vpop.permute.xlu0 %1541
      %1543 = vrot.lane.b32.xlu0 %v1503, 56
      %v1544 = vpop.permute.xlu0 %1543
      %1545 = vrot.lane.b32.xlu0 %v1504, 56
      %v1546 = vpop.permute.xlu0 %1545
      %1547 = vrot.lane.b32.xlu0 %v1505, 56
      %v1548 = vpop.permute.xlu0 %1547
      %1549 = vrot.lane.b32.xlu0 %v1506, 56
      %v1550 = vpop.permute.xlu0 %1549
      %1551 = vrot.lane.b32.xlu0 %v1507, 56
      %v1552 = vpop.permute.xlu0 %1551
      %1553 = vrot.lane.b32.xlu0 %v1508, 56
      %v1554 = vpop.permute.xlu0 %1553
      %1555 = vrot.lane.b32.xlu0 %v1509, 56
      %v1556 = vpop.permute.xlu0 %1555
      %1557 = vrot.lane.b32.xlu0 %v1510, 56
      %v1558 = vpop.permute.xlu0 %1557
      %1559 = vrot.lane.b32.xlu0 %v1511, 56
      %v1560 = vpop.permute.xlu0 %1559
      %1561 = vrot.lane.b32.xlu0 %v1512, 56
      %v1562 = vpop.permute.xlu0 %1561
      %1563 = vrot.lane.b32.xlu0 %v1513, 56
      %v1564 = vpop.permute.xlu0 %1563
      %1565 = vrot.lane.b32.xlu0 %v1514, 56
      %v1566 = vpop.permute.xlu0 %1565
      %1567 = vrot.lane.b32.xlu0 %v1515, 56
      %v1568 = vpop.permute.xlu0 %1567
      %1569 = vrot.lane.b32.xlu0 %v1516, 56
      %v1570 = vpop.permute.xlu0 %1569
      %vm1589 = vcmask 523712
      %1590 = vst.msk [vmem:[#allocation3] sm:$0xff] %vm1589, %v1536
      %1591 = vst.msk [vmem:[#allocation3 + $0x8] sm:$0xff] %vm1589, %v1538
      %1592 = vst.msk [vmem:[#allocation3 + $0x10] sm:$0xff] %vm1589, %v1540
      %1593 = vst.msk [vmem:[#allocation3 + $0x18] sm:$0xff] %vm1589, %v1542
      %1594 = vst.msk [vmem:[#allocation3 + $0x20] sm:$0xff] %vm1589, %v1544
      %1595 = vst.msk [vmem:[#allocation3 + $0x28] sm:$0xff] %vm1589, %v1546
      %1596 = vst.msk [vmem:[#allocation3 + $0x30] sm:$0xff] %vm1589, %v1548
      %1597 = vst.msk [vmem:[#allocation3 + $0x38] sm:$0xff] %vm1589, %v1550
      %1598 = vst.msk [vmem:[#allocation3 + $0x40] sm:$0xff] %vm1589, %v1552
      %1599 = vst.msk [vmem:[#allocation3 + $0x48] sm:$0xff] %vm1589, %v1554
      %1600 = vst.msk [vmem:[#allocation3 + $0x50] sm:$0xff] %vm1589, %v1556
      %1601 = vst.msk [vmem:[#allocation3 + $0x58] sm:$0xff] %vm1589, %v1558
      %1602 = vst.msk [vmem:[#allocation3 + $0x60] sm:$0xff] %vm1589, %v1560
      %1603 = vst.msk [vmem:[#allocation3 + $0x68] sm:$0xff] %vm1589, %v1562
      %1604 = vst.msk [vmem:[#allocation3 + $0x70] sm:$0xff] %vm1589, %v1564
      %1605 = vst.msk [vmem:[#allocation3 + $0x78] sm:$0xff] %vm1589, %v1566
      %1606 = vst.msk [vmem:[#allocation3 + $0x80] sm:$0xff] %vm1589, %v1568
      %1607 = vst.msk [vmem:[#allocation3 + $0x88] sm:$0xff] %vm1589, %v1570
      %v1608 = vld [vmem:[#allocation2 + $0x26] sm:$0xff]
      %v1609 = vld [vmem:[#allocation2 + $0x2e] sm:$0xff]
      %v1610 = vld [vmem:[#allocation2 + $0x36] sm:$0xff]
      %v1611 = vld [vmem:[#allocation2 + $0x3e] sm:$0xff]
      %v1612 = vld [vmem:[#allocation2 + $0x46] sm:$0xff]
      %v1613 = vld [vmem:[#allocation2 + $0x4e] sm:$0xff]
      %v1614 = vld [vmem:[#allocation2 + $0x56] sm:$0xff]
      %v1615 = vld [vmem:[#allocation2 + $0x5e] sm:$0xff]
      %v1616 = vld [vmem:[#allocation2 + $0x66] sm:$0xff]
      %v1617 = vld [vmem:[#allocation2 + $0x6e] sm:$0xff]
      %v1618 = vld [vmem:[#allocation2 + $0x76] sm:$0xff]
      %v1619 = vld [vmem:[#allocation2 + $0x7e] sm:$0xff]
      %v1620 = vld [vmem:[#allocation2 + $0x86] sm:$0xff]
      %v1621 = vld [vmem:[#allocation2 + $0x8e] sm:$0xff]
      %v1622 = vld [vmem:[#allocation2 + $0x96] sm:$0xff]
      %v1623 = vld [vmem:[#allocation2 + $0x9e] sm:$0xff]
      %v1624 = vld [vmem:[#allocation2 + $0xa6] sm:$0xff]
      %v1625 = vld [vmem:[#allocation2 + $0xae] sm:$0xff]
      %v1626 = vld [vmem:[#allocation2 + $0xb6] sm:$0xff]
      %v1627 = vld [vmem:[#allocation2 + $0xbe] sm:$0xff]
      %v1628 = vld [vmem:[#allocation2 + $0xc6] sm:$0xff]
      %v1629 = vld [vmem:[#allocation2 + $0xce] sm:$0xff]
      %v1630 = vld [vmem:[#allocation2 + $0xd6] sm:$0xff]
      %v1631 = vld [vmem:[#allocation2 + $0xde] sm:$0xff]
      %v1632 = vld [vmem:[#allocation2 + $0xe6] sm:$0xff]
      %v1633 = vld [vmem:[#allocation2 + $0xee] sm:$0xff]
      %v1634 = vld [vmem:[#allocation2 + $0xf6] sm:$0xff]
      %v1635 = vld [vmem:[#allocation2 + $0xfe] sm:$0xff]
      %v1636 = vld [vmem:[#allocation2 + $0x106] sm:$0xff]
      %v1637 = vld [vmem:[#allocation2 + $0x10e] sm:$0xff]
      %v1638 = vld [vmem:[#allocation2 + $0x116] sm:$0xff]
      %v1639 = vld [vmem:[#allocation2 + $0x11e] sm:$0xff]
      %v1640 = vld [vmem:[#allocation2 + $0x126] sm:$0xff]
      %v1641 = vld [vmem:[#allocation2 + $0x12e] sm:$0xff]
      %v1642 = vld [vmem:[#allocation2 + $0x136] sm:$0xff]
      %v1643 = vld [vmem:[#allocation2 + $0x13e] sm:$0xff]
      %v1644 = vpack.c.bf16 %v1609, %v1608
      %v1645 = vpack.c.bf16 %v1611, %v1610
      %v1646 = vpack.c.bf16 %v1613, %v1612
      %v1647 = vpack.c.bf16 %v1615, %v1614
      %v1648 = vpack.c.bf16 %v1617, %v1616
      %v1649 = vpack.c.bf16 %v1619, %v1618
      %v1650 = vpack.c.bf16 %v1621, %v1620
      %v1651 = vpack.c.bf16 %v1623, %v1622
      %v1652 = vpack.c.bf16 %v1625, %v1624
      %v1653 = vpack.c.bf16 %v1627, %v1626
      %v1654 = vpack.c.bf16 %v1629, %v1628
      %v1655 = vpack.c.bf16 %v1631, %v1630
      %v1656 = vpack.c.bf16 %v1633, %v1632
      %v1657 = vpack.c.bf16 %v1635, %v1634
      %v1658 = vpack.c.bf16 %v1637, %v1636
      %v1659 = vpack.c.bf16 %v1639, %v1638
      %v1660 = vpack.c.bf16 %v1641, %v1640
      %v1661 = vpack.c.bf16 %v1643, %v1642
      %1680 = vrot.lane.b32.xlu0 %v1644, 64
      %v1681 = vpop.permute.xlu0 %1680
      %1682 = vrot.lane.b32.xlu0 %v1645, 64
      %v1683 = vpop.permute.xlu0 %1682
      %1684 = vrot.lane.b32.xlu0 %v1646, 64
      %v1685 = vpop.permute.xlu0 %1684
      %1686 = vrot.lane.b32.xlu0 %v1647, 64
      %v1687 = vpop.permute.xlu0 %1686
      %1688 = vrot.lane.b32.xlu0 %v1648, 64
      %v1689 = vpop.permute.xlu0 %1688
      %1690 = vrot.lane.b32.xlu0 %v1649, 64
      %v1691 = vpop.permute.xlu0 %1690
      %1692 = vrot.lane.b32.xlu0 %v1650, 64
      %v1693 = vpop.permute.xlu0 %1692
      %1694 = vrot.lane.b32.xlu0 %v1651, 64
      %v1695 = vpop.permute.xlu0 %1694
      %1696 = vrot.lane.b32.xlu0 %v1652, 64
      %v1697 = vpop.permute.xlu0 %1696
      %1698 = vrot.lane.b32.xlu0 %v1653, 64
      %v1699 = vpop.permute.xlu0 %1698
      %1700 = vrot.lane.b32.xlu0 %v1654, 64
      %v1701 = vpop.permute.xlu0 %1700
      %1702 = vrot.lane.b32.xlu0 %v1655, 64
      %v1703 = vpop.permute.xlu0 %1702
      %1704 = vrot.lane.b32.xlu0 %v1656, 64
      %v1705 = vpop.permute.xlu0 %1704
      %1706 = vrot.lane.b32.xlu0 %v1657, 64
      %v1707 = vpop.permute.xlu0 %1706
      %1708 = vrot.lane.b32.xlu0 %v1658, 64
      %v1709 = vpop.permute.xlu0 %1708
      %1710 = vrot.lane.b32.xlu0 %v1659, 64
      %v1711 = vpop.permute.xlu0 %1710
      %1712 = vrot.lane.b32.xlu0 %v1660, 64
      %v1713 = vpop.permute.xlu0 %1712
      %1714 = vrot.lane.b32.xlu0 %v1661, 64
      %v1715 = vpop.permute.xlu0 %1714
      %vm1734 = vcmask 589312
      %1735 = vst.msk [vmem:[#allocation3] sm:$0xff] %vm1734, %v1681
      %1736 = vst.msk [vmem:[#allocation3 + $0x8] sm:$0xff] %vm1734, %v1683
      %1737 = vst.msk [vmem:[#allocation3 + $0x10] sm:$0xff] %vm1734, %v1685
      %1738 = vst.msk [vmem:[#allocation3 + $0x18] sm:$0xff] %vm1734, %v1687
      %1739 = vst.msk [vmem:[#allocation3 + $0x20] sm:$0xff] %vm1734, %v1689
      %1740 = vst.msk [vmem:[#allocation3 + $0x28] sm:$0xff] %vm1734, %v1691
      %1741 = vst.msk [vmem:[#allocation3 + $0x30] sm:$0xff] %vm1734, %v1693
      %1742 = vst.msk [vmem:[#allocation3 + $0x38] sm:$0xff] %vm1734, %v1695
      %1743 = vst.msk [vmem:[#allocation3 + $0x40] sm:$0xff] %vm1734, %v1697
      %1744 = vst.msk [vmem:[#allocation3 + $0x48] sm:$0xff] %vm1734, %v1699
      %1745 = vst.msk [vmem:[#allocation3 + $0x50] sm:$0xff] %vm1734, %v1701
      %1746 = vst.msk [vmem:[#allocation3 + $0x58] sm:$0xff] %vm1734, %v1703
      %1747 = vst.msk [vmem:[#allocation3 + $0x60] sm:$0xff] %vm1734, %v1705
      %1748 = vst.msk [vmem:[#allocation3 + $0x68] sm:$0xff] %vm1734, %v1707
      %1749 = vst.msk [vmem:[#allocation3 + $0x70] sm:$0xff] %vm1734, %v1709
      %1750 = vst.msk [vmem:[#allocation3 + $0x78] sm:$0xff] %vm1734, %v1711
      %1751 = vst.msk [vmem:[#allocation3 + $0x80] sm:$0xff] %vm1734, %v1713
      %1752 = vst.msk [vmem:[#allocation3 + $0x88] sm:$0xff] %vm1734, %v1715
      %v1753 = vld [vmem:[#allocation3] sm:$0xff]
      %v1754 = vld [vmem:[#allocation3 + $0x8] sm:$0xff]
      %v1755 = vld [vmem:[#allocation3 + $0x10] sm:$0xff]
      %v1756 = vld [vmem:[#allocation3 + $0x18] sm:$0xff]
      %v1757 = vld [vmem:[#allocation3 + $0x20] sm:$0xff]
      %v1758 = vld [vmem:[#allocation3 + $0x28] sm:$0xff]
      %v1759 = vld [vmem:[#allocation3 + $0x30] sm:$0xff]
      %v1760 = vld [vmem:[#allocation3 + $0x38] sm:$0xff]
      %v1761 = vld [vmem:[#allocation3 + $0x40] sm:$0xff]
      %v1762 = vld [vmem:[#allocation3 + $0x48] sm:$0xff]
      %v1763 = vld [vmem:[#allocation3 + $0x50] sm:$0xff]
      %v1764 = vld [vmem:[#allocation3 + $0x58] sm:$0xff]
      %v1765 = vld [vmem:[#allocation3 + $0x60] sm:$0xff]
      %v1766 = vld [vmem:[#allocation3 + $0x68] sm:$0xff]
      %v1767 = vld [vmem:[#allocation3 + $0x70] sm:$0xff]
      %v1768 = vld [vmem:[#allocation3 + $0x78] sm:$0xff]
      %v1769 = vld [vmem:[#allocation3 + $0x80] sm:$0xff]
      %v1770 = vld [vmem:[#allocation3 + $0x88] sm:$0xff]
      %v1771 = vld [vmem:[%s2] sm:$0xf]
      %v1772 = vld [vmem:[%s2 + $0x4] sm:$0xf]
      %v1773 = vld [vmem:[%s2 + $0x8] sm:$0xf]
      %v1774 = vld [vmem:[%s2 + $0xc] sm:$0xf]
      %v1775 = vld [vmem:[%s2 + $0x10] sm:$0xf]
      %v1776 = vld [vmem:[%s2 + $0x14] sm:$0xf]
      %v1777 = vld [vmem:[%s2 + $0x18] sm:$0xf]
      %v1778 = vld [vmem:[%s2 + $0x1c] sm:$0xf]
      %v1779 = vld [vmem:[%s2 + $0x20] sm:$0xf]
      %v1780 = vld [vmem:[%s2 + $0x24] sm:$0xf]
      %v1781 = vld [vmem:[%s2 + $0x28] sm:$0xf]
      %v1782 = vld [vmem:[%s2 + $0x2c] sm:$0xf]
      %v1783 = vld [vmem:[%s2 + $0x30] sm:$0xf]
      %v1784 = vld [vmem:[%s2 + $0x34] sm:$0xf]
      %v1785 = vld [vmem:[%s2 + $0x38] sm:$0xf]
      %v1786 = vld [vmem:[%s2 + $0x3c] sm:$0xf]
      %v1803 = vunpack.c.l.b16 %v1771
      %v1804 = vunpack.c.l.b16 %v1772
      %v1805 = vunpack.c.l.b16 %v1773
      %v1806 = vunpack.c.l.b16 %v1774
      %v1807 = vunpack.c.l.b16 %v1775
      %v1808 = vunpack.c.l.b16 %v1776
      %v1809 = vunpack.c.l.b16 %v1777
      %v1810 = vunpack.c.l.b16 %v1778
      %v1811 = vunpack.c.l.b16 %v1779
      %v1812 = vunpack.c.l.b16 %v1780
      %v1813 = vunpack.c.l.b16 %v1781
      %v1814 = vunpack.c.l.b16 %v1782
      %v1815 = vunpack.c.l.b16 %v1783
      %v1816 = vunpack.c.l.b16 %v1784
      %v1817 = vunpack.c.l.b16 %v1785
      %v1818 = vunpack.c.l.b16 %v1786
      %v1819 = vpack.c.b16 %v1804, %v1803
      %v1820 = vpack.c.b16 %v1806, %v1805
      %v1821 = vpack.c.b16 %v1808, %v1807
      %v1822 = vpack.c.b16 %v1810, %v1809
      %v1823 = vpack.c.b16 %v1812, %v1811
      %v1824 = vpack.c.b16 %v1814, %v1813
      %v1825 = vpack.c.b16 %v1816, %v1815
      %v1826 = vpack.c.b16 %v1818, %v1817
      %1835 = vmatprep.subr.bf16.mxu0 0
      %1836 = vmatpush1.bf16.msra.mxu0 %v1819
      %1837 = vmatprep.subr.bf16.mxu0 0
      %1838 = vmatpush1.bf16.msra.mxu0 %v1820
      %1839 = vmatprep.subr.bf16.mxu0 0
      %1840 = vmatpush1.bf16.msra.mxu0 %v1821
      %1841 = vmatprep.subr.bf16.mxu0 0
      %1842 = vmatpush1.bf16.msra.mxu0 %v1822
      %1843 = vmatprep.subr.bf16.mxu0 0
      %1844 = vmatpush1.bf16.msra.mxu0 %v1823
      %1845 = vmatprep.subr.bf16.mxu0 0
      %1846 = vmatpush1.bf16.msra.mxu0 %v1824
      %1847 = vmatprep.subr.bf16.mxu0 0
      %1848 = vmatpush1.bf16.msra.mxu0 %v1825
      %1849 = vmatprep.subr.bf16.mxu0 0
      %1850 = vmatpush1.bf16.msra.mxu0 %v1826
      %1851 = vmatprep.subr.bf16.mxu0 0
      %1852 = vmatpush1.bf16.msra.mxu0 0
      %1853 = vmatprep.subr.bf16.mxu0 0
      %1854 = vmatpush1.bf16.msra.mxu0 0
      %1855 = vmatprep.subr.bf16.mxu0 0
      %1856 = vmatpush1.bf16.msra.mxu0 0
      %1857 = vmatprep.subr.bf16.mxu0 0
      %1858 = vmatpush1.bf16.msra.mxu0 0
      %1859 = vmatprep.subr.bf16.mxu0 0
      %1860 = vmatpush1.bf16.msra.mxu0 0
      %1861 = vmatprep.subr.bf16.mxu0 0
      %1862 = vmatpush1.bf16.msra.mxu0 0
      %1863 = vmatprep.subr.bf16.mxu0 0
      %1864 = vmatpush1.bf16.msra.mxu0 0
      %1865 = vmatprep.subr.bf16.mxu0 0
      %1866 = vmatpush1.bf16.msra.mxu0 0
      %1867 = vmatprep.mubr.bf16.mxu0 0
      %1868 = vmatmul.mubr.bf16.gmra.mrb[0].mxu0 %v1753
      %v1869 = vpop.f32.mrb[0].mxu0
      %v1870 = vadd.f32 0.0, %v1869
      %v1871 = vpop.f32.mrb[0].mxu0
      %v1872 = vpop.f32.mrb[0].mxu0
      %v1873 = vadd.f32 0.0, %v1872
      %v1874 = vpop.f32.mrb[0].mxu0
      %1875 = vmatprep.mubr.bf16.mxu0 0
      %1876 = vmatmul.mubr.bf16.gmra.mrb[0].mxu0 %v1754
      %v1877 = vpop.f32.mrb[0].mxu0
      %v1878 = vadd.f32 0.0, %v1877
      %v1879 = vpop.f32.mrb[0].mxu0
      %v1880 = vpop.f32.mrb[0].mxu0
      %v1881 = vadd.f32 0.0, %v1880
      %v1882 = vpop.f32.mrb[0].mxu0
      %1883 = vmatprep.mubr.bf16.mxu0 0
      %1884 = vmatmul.mubr.bf16.gmra.mrb[0].mxu0 %v1755
      %v1885 = vpop.f32.mrb[0].mxu0
      %v1886 = vadd.f32 0.0, %v1885
      %v1887 = vpop.f32.mrb[0].mxu0
      %v1888 = vpop.f32.mrb[0].mxu0
      %v1889 = vadd.f32 0.0, %v1888
      %v1890 = vpop.f32.mrb[0].mxu0
      %1891 = vmatprep.mubr.bf16.mxu0 0
      %1892 = vmatmul.mubr.bf16.gmra.mrb[0].mxu0 %v1756
      %v1893 = vpop.f32.mrb[0].mxu0
      %v1894 = vadd.f32 0.0, %v1893
      %v1895 = vpop.f32.mrb[0].mxu0
      %v1896 = vpop.f32.mrb[0].mxu0
      %v1897 = vadd.f32 0.0, %v1896
      %v1898 = vpop.f32.mrb[0].mxu0
      %1899 = vmatprep.mubr.bf16.mxu0 0
      %1900 = vmatmul.mubr.bf16.gmra.mrb[0].mxu0 %v1757
      %v1901 = vpop.f32.mrb[0].mxu0
      %v1902 = vadd.f32 0.0, %v1901
      %v1903 = vpop.f32.mrb[0].mxu0
      %v1904 = vpop.f32.mrb[0].mxu0
      %v1905 = vadd.f32 0.0, %v1904
      %v1906 = vpop.f32.mrb[0].mxu0
      %1907 = vmatprep.mubr.bf16.mxu0 0
      %1908 = vmatmul.mubr.bf16.gmra.mrb[0].mxu0 %v1758
      %v1909 = vpop.f32.mrb[0].mxu0
      %v1910 = vadd.f32 0.0, %v1909
      %v1911 = vpop.f32.mrb[0].mxu0
      %v1912 = vpop.f32.mrb[0].mxu0
      %v1913 = vadd.f32 0.0, %v1912
      %v1914 = vpop.f32.mrb[0].mxu0
      %1915 = vmatprep.mubr.bf16.mxu0 0
      %1916 = vmatmul.mubr.bf16.gmra.mrb[0].mxu0 %v1759
      %v1917 = vpop.f32.mrb[0].mxu0
      %v1918 = vadd.f32 0.0, %v1917
      %v1919 = vpop.f32.mrb[0].mxu0
      %v1920 = vpop.f32.mrb[0].mxu0
      %v1921 = vadd.f32 0.0, %v1920
      %v1922 = vpop.f32.mrb[0].mxu0
      %1923 = vmatprep.mubr.bf16.mxu0 0
      %1924 = vmatmul.mubr.bf16.gmra.mrb[0].mxu0 %v1760
      %v1925 = vpop.f32.mrb[0].mxu0
      %v1926 = vadd.f32 0.0, %v1925
      %v1927 = vpop.f32.mrb[0].mxu0
      %v1928 = vpop.f32.mrb[0].mxu0
      %v1929 = vadd.f32 0.0, %v1928
      %v1930 = vpop.f32.mrb[0].mxu0
      %1931 = vmatprep.mubr.bf16.mxu0 0
      %1932 = vmatmul.mubr.bf16.gmra.mrb[0].mxu0 %v1761
      %v1933 = vpop.f32.mrb[0].mxu0
      %v1934 = vadd.f32 0.0, %v1933
      %v1935 = vpop.f32.mrb[0].mxu0
      %v1936 = vpop.f32.mrb[0].mxu0
      %v1937 = vadd.f32 0.0, %v1936
      %v1938 = vpop.f32.mrb[0].mxu0
      %1939 = vmatprep.mubr.bf16.mxu0 0
      %1940 = vmatmul.mubr.bf16.gmra.mrb[0].mxu0 %v1762
      %v1941 = vpop.f32.mrb[0].mxu0
      %v1942 = vadd.f32 0.0, %v1941
      %v1943 = vpop.f32.mrb[0].mxu0
      %v1944 = vpop.f32.mrb[0].mxu0
      %v1945 = vadd.f32 0.0, %v1944
      %v1946 = vpop.f32.mrb[0].mxu0
      %1947 = vmatprep.mubr.bf16.mxu0 0
      %1948 = vmatmul.mubr.bf16.gmra.mrb[0].mxu0 %v1763
      %v1949 = vpop.f32.mrb[0].mxu0
      %v1950 = vadd.f32 0.0, %v1949
      %v1951 = vpop.f32.mrb[0].mxu0
      %v1952 = vpop.f32.mrb[0].mxu0
      %v1953 = vadd.f32 0.0, %v1952
      %v1954 = vpop.f32.mrb[0].mxu0
      %1955 = vmatprep.mubr.bf16.mxu0 0
      %1956 = vmatmul.mubr.bf16.gmra.mrb[0].mxu0 %v1764
      %v1957 = vpop.f32.mrb[0].mxu0
      %v1958 = vadd.f32 0.0, %v1957
      %v1959 = vpop.f32.mrb[0].mxu0
      %v1960 = vpop.f32.mrb[0].mxu0
      %v1961 = vadd.f32 0.0, %v1960
      %v1962 = vpop.f32.mrb[0].mxu0
      %1963 = vmatprep.mubr.bf16.mxu0 0
      %1964 = vmatmul.mubr.bf16.gmra.mrb[0].mxu0 %v1765
      %v1965 = vpop.f32.mrb[0].mxu0
      %v1966 = vadd.f32 0.0, %v1965
      %v1967 = vpop.f32.mrb[0].mxu0
      %v1968 = vpop.f32.mrb[0].mxu0
      %v1969 = vadd.f32 0.0, %v1968
      %v1970 = vpop.f32.mrb[0].mxu0
      %1971 = vmatprep.mubr.bf16.mxu0 0
      %1972 = vmatmul.mubr.bf16.gmra.mrb[0].mxu0 %v1766
      %v1973 = vpop.f32.mrb[0].mxu0
      %v1974 = vadd.f32 0.0, %v1973
      %v1975 = vpop.f32.mrb[0].mxu0
      %v1976 = vpop.f32.mrb[0].mxu0
      %v1977 = vadd.f32 0.0, %v1976
      %v1978 = vpop.f32.mrb[0].mxu0
      %1979 = vmatprep.mubr.bf16.mxu0 0
      %1980 = vmatmul.mubr.bf16.gmra.mrb[0].mxu0 %v1767
      %v1981 = vpop.f32.mrb[0].mxu0
      %v1982 = vadd.f32 0.0, %v1981
      %v1983 = vpop.f32.mrb[0].mxu0
      %v1984 = vpop.f32.mrb[0].mxu0
      %v1985 = vadd.f32 0.0, %v1984
      %v1986 = vpop.f32.mrb[0].mxu0
      %1987 = vmatprep.mubr.bf16.mxu0 0
      %1988 = vmatmul.mubr.bf16.gmra.mrb[0].mxu0 %v1768
      %v1989 = vpop.f32.mrb[0].mxu0
      %v1990 = vadd.f32 0.0, %v1989
      %v1991 = vpop.f32.mrb[0].mxu0
      %v1992 = vpop.f32.mrb[0].mxu0
      %v1993 = vadd.f32 0.0, %v1992
      %v1994 = vpop.f32.mrb[0].mxu0
      %1995 = vmatprep.mubr.bf16.mxu0 0
      %1996 = vmatmul.mubr.bf16.gmra.mrb[0].mxu0 %v1769
      %v1997 = vpop.f32.mrb[0].mxu0
      %v1998 = vadd.f32 0.0, %v1997
      %v1999 = vpop.f32.mrb[0].mxu0
      %v2000 = vpop.f32.mrb[0].mxu0
      %v2001 = vadd.f32 0.0, %v2000
      %v2002 = vpop.f32.mrb[0].mxu0
      %2003 = vmatprep.mubr.bf16.mxu0 0
      %2004 = vmatmul.mubr.bf16.gmra.mrb[0].mxu0 %v1770
      %v2005 = vpop.f32.mrb[0].mxu0
      %v2006 = vadd.f32 0.0, %v2005
      %v2007 = vpop.f32.mrb[0].mxu0
      %v2008 = vpop.f32.mrb[0].mxu0
      %v2009 = vadd.f32 0.0, %v2008
      %v2010 = vpop.f32.mrb[0].mxu0
      %2011 = vdwg.mxu0
      %v2012 = vld [vmem:[%s392] sm:$0xff]
      %v2013 = vld [vmem:[%s392 + $0x8] sm:$0xff]
      %v2014 = vld [vmem:[%s392 + $0x10] sm:$0xff]
      %v2015 = vld [vmem:[%s392 + $0x18] sm:$0xff]
      %v2016 = vld [vmem:[%s392 + $0x20] sm:$0xff]
      %v2017 = vld [vmem:[%s392 + $0x28] sm:$0xff]
      %v2018 = vld [vmem:[%s392 + $0x30] sm:$0xff]
      %v2019 = vld [vmem:[%s392 + $0x38] sm:$0xff]
      %v2020 = vld [vmem:[%s392 + $0x40] sm:$0xff]
      %v2021 = vld [vmem:[%s392 + $0x48] sm:$0xff]
      %v2022 = vld [vmem:[%s392 + $0x50] sm:$0xff]
      %v2023 = vld [vmem:[%s392 + $0x58] sm:$0xff]
      %v2024 = vld [vmem:[%s392 + $0x60] sm:$0xff]
      %v2025 = vld [vmem:[%s392 + $0x68] sm:$0xff]
      %v2026 = vld [vmem:[%s392 + $0x70] sm:$0xff]
      %v2027 = vld [vmem:[%s392 + $0x78] sm:$0xff]
      %v2028 = vld [vmem:[%s392 + $0x80] sm:$0xff]
      %v2029 = vld [vmem:[%s392 + $0x88] sm:$0xff]
      %v2030 = vld [vmem:[%s392 + $0x90] sm:$0xff]
      %v2031 = vld [vmem:[%s392 + $0x98] sm:$0xff]
      %v2032 = vld [vmem:[%s392 + $0xa0] sm:$0xff]
      %v2033 = vld [vmem:[%s392 + $0xa8] sm:$0xff]
      %v2034 = vld [vmem:[%s392 + $0xb0] sm:$0xff]
      %v2035 = vld [vmem:[%s392 + $0xb8] sm:$0xff]
      %v2036 = vld [vmem:[%s392 + $0xc0] sm:$0xff]
      %v2037 = vld [vmem:[%s392 + $0xc8] sm:$0xff]
      %v2038 = vld [vmem:[%s392 + $0xd0] sm:$0xff]
      %v2039 = vld [vmem:[%s392 + $0xd8] sm:$0xff]
      %v2040 = vld [vmem:[%s392 + $0xe0] sm:$0xff]
      %v2041 = vld [vmem:[%s392 + $0xe8] sm:$0xff]
      %v2042 = vld [vmem:[%s392 + $0xf0] sm:$0xff]
      %v2043 = vld [vmem:[%s392 + $0xf8] sm:$0xff]
      %v2044 = vld [vmem:[%s392 + $0x100] sm:$0xff]
      %v2045 = vld [vmem:[%s392 + $0x108] sm:$0xff]
      %v2046 = vld [vmem:[%s392 + $0x110] sm:$0xff]
      %v2047 = vld [vmem:[%s392 + $0x118] sm:$0xff]
      %2049 = vset.pattern.permute.xlu0 0
      %2050 = vperm.xlu0 %2049, %v2012
      %v2051 = vpop.permute.xlu0 %2050
      %2054 = vset.pattern.permute.xlu0 0
      %2055 = vperm.xlu0 %2054, %v2013
      %v2056 = vpop.permute.xlu0 %2055
      %2059 = vset.pattern.permute.xlu0 0
      %2060 = vperm.xlu0 %2059, %v2014
      %v2061 = vpop.permute.xlu0 %2060
      %2064 = vset.pattern.permute.xlu0 0
      %2065 = vperm.xlu0 %2064, %v2015
      %v2066 = vpop.permute.xlu0 %2065
      %2069 = vset.pattern.permute.xlu0 0
      %2070 = vperm.xlu0 %2069, %v2016
      %v2071 = vpop.permute.xlu0 %2070
      %2074 = vset.pattern.permute.xlu0 0
      %2075 = vperm.xlu0 %2074, %v2017
      %v2076 = vpop.permute.xlu0 %2075
      %2079 = vset.pattern.permute.xlu0 0
      %2080 = vperm.xlu0 %2079, %v2018
      %v2081 = vpop.permute.xlu0 %2080
      %2084 = vset.pattern.permute.xlu0 0
      %2085 = vperm.xlu0 %2084, %v2019
      %v2086 = vpop.permute.xlu0 %2085
      %2089 = vset.pattern.permute.xlu0 0
      %2090 = vperm.xlu0 %2089, %v2020
      %v2091 = vpop.permute.xlu0 %2090
      %2094 = vset.pattern.permute.xlu0 0
      %2095 = vperm.xlu0 %2094, %v2021
      %v2096 = vpop.permute.xlu0 %2095
      %2099 = vset.pattern.permute.xlu0 0
      %2100 = vperm.xlu0 %2099, %v2022
      %v2101 = vpop.permute.xlu0 %2100
      %2104 = vset.pattern.permute.xlu0 0
      %2105 = vperm.xlu0 %2104, %v2023
      %v2106 = vpop.permute.xlu0 %2105
      %2109 = vset.pattern.permute.xlu0 0
      %2110 = vperm.xlu0 %2109, %v2024
      %v2111 = vpop.permute.xlu0 %2110
      %2114 = vset.pattern.permute.xlu0 0
      %2115 = vperm.xlu0 %2114, %v2025
      %v2116 = vpop.permute.xlu0 %2115
      %2119 = vset.pattern.permute.xlu0 0
      %2120 = vperm.xlu0 %2119, %v2026
      %v2121 = vpop.permute.xlu0 %2120
      %2124 = vset.pattern.permute.xlu0 0
      %2125 = vperm.xlu0 %2124, %v2027
      %v2126 = vpop.permute.xlu0 %2125
      %2129 = vset.pattern.permute.xlu0 0
      %2130 = vperm.xlu0 %2129, %v2028
      %v2131 = vpop.permute.xlu0 %2130
      %2134 = vset.pattern.permute.xlu0 0
      %2135 = vperm.xlu0 %2134, %v2029
      %v2136 = vpop.permute.xlu0 %2135
      %2139 = vset.pattern.permute.xlu0 0
      %2140 = vperm.xlu0 %2139, %v2030
      %v2141 = vpop.permute.xlu0 %2140
      %2144 = vset.pattern.permute.xlu0 0
      %2145 = vperm.xlu0 %2144, %v2031
      %v2146 = vpop.permute.xlu0 %2145
      %2149 = vset.pattern.permute.xlu0 0
      %2150 = vperm.xlu0 %2149, %v2032
      %v2151 = vpop.permute.xlu0 %2150
      %2154 = vset.pattern.permute.xlu0 0
      %2155 = vperm.xlu0 %2154, %v2033
      %v2156 = vpop.permute.xlu0 %2155
      %2159 = vset.pattern.permute.xlu0 0
      %2160 = vperm.xlu0 %2159, %v2034
      %v2161 = vpop.permute.xlu0 %2160
      %2164 = vset.pattern.permute.xlu0 0
      %2165 = vperm.xlu0 %2164, %v2035
      %v2166 = vpop.permute.xlu0 %2165
      %2169 = vset.pattern.permute.xlu0 0
      %2170 = vperm.xlu0 %2169, %v2036
      %v2171 = vpop.permute.xlu0 %2170
      %2174 = vset.pattern.permute.xlu0 0
      %2175 = vperm.xlu0 %2174, %v2037
      %v2176 = vpop.permute.xlu0 %2175
      %2179 = vset.pattern.permute.xlu0 0
      %2180 = vperm.xlu0 %2179, %v2038
      %v2181 = vpop.permute.xlu0 %2180
      %2184 = vset.pattern.permute.xlu0 0
      %2185 = vperm.xlu0 %2184, %v2039
      %v2186 = vpop.permute.xlu0 %2185
      %2189 = vset.pattern.permute.xlu0 0
      %2190 = vperm.xlu0 %2189, %v2040
      %v2191 = vpop.permute.xlu0 %2190
      %2194 = vset.pattern.permute.xlu0 0
      %2195 = vperm.xlu0 %2194, %v2041
      %v2196 = vpop.permute.xlu0 %2195
      %2199 = vset.pattern.permute.xlu0 0
      %2200 = vperm.xlu0 %2199, %v2042
      %v2201 = vpop.permute.xlu0 %2200
      %2204 = vset.pattern.permute.xlu0 0
      %2205 = vperm.xlu0 %2204, %v2043
      %v2206 = vpop.permute.xlu0 %2205
      %2209 = vset.pattern.permute.xlu0 0
      %2210 = vperm.xlu0 %2209, %v2044
      %v2211 = vpop.permute.xlu0 %2210
      %2214 = vset.pattern.permute.xlu0 0
      %2215 = vperm.xlu0 %2214, %v2045
      %v2216 = vpop.permute.xlu0 %2215
      %2219 = vset.pattern.permute.xlu0 0
      %2220 = vperm.xlu0 %2219, %v2046
      %v2221 = vpop.permute.xlu0 %2220
      %2224 = vset.pattern.permute.xlu0 0
      %2225 = vperm.xlu0 %2224, %v2047
      %v2226 = vpop.permute.xlu0 %2225
      %v2228 = vmul.f32 %v1870, %v2051
      %v2229 = vmul.f32 %v1873, %v2056
      %v2230 = vmul.f32 %v1878, %v2061
      %v2231 = vmul.f32 %v1881, %v2066
      %v2232 = vmul.f32 %v1886, %v2071
      %v2233 = vmul.f32 %v1889, %v2076
      %v2234 = vmul.f32 %v1894, %v2081
      %v2235 = vmul.f32 %v1897, %v2086
      %v2236 = vmul.f32 %v1902, %v2091
      %v2237 = vmul.f32 %v1905, %v2096
      %v2238 = vmul.f32 %v1910, %v2101
      %v2239 = vmul.f32 %v1913, %v2106
      %v2240 = vmul.f32 %v1918, %v2111
      %v2241 = vmul.f32 %v1921, %v2116
      %v2242 = vmul.f32 %v1926, %v2121
      %v2243 = vmul.f32 %v1929, %v2126
      %v2244 = vmul.f32 %v1934, %v2131
      %v2245 = vmul.f32 %v1937, %v2136
      %v2246 = vmul.f32 %v1942, %v2141
      %v2247 = vmul.f32 %v1945, %v2146
      %v2248 = vmul.f32 %v1950, %v2151
      %v2249 = vmul.f32 %v1953, %v2156
      %v2250 = vmul.f32 %v1958, %v2161
      %v2251 = vmul.f32 %v1961, %v2166
      %v2252 = vmul.f32 %v1966, %v2171
      %v2253 = vmul.f32 %v1969, %v2176
      %v2254 = vmul.f32 %v1974, %v2181
      %v2255 = vmul.f32 %v1977, %v2186
      %v2256 = vmul.f32 %v1982, %v2191
      %v2257 = vmul.f32 %v1985, %v2196
      %v2258 = vmul.f32 %v1990, %v2201
      %v2259 = vmul.f32 %v1993, %v2206
      %v2260 = vmul.f32 %v1998, %v2211
      %v2261 = vmul.f32 %v2001, %v2216
      %v2262 = vmul.f32 %v2006, %v2221
      %v2263 = vmul.f32 %v2009, %v2226
      %v2264 = vadd.f32 %v2228, %v2229
      %v2265 = vadd.f32 %v2264, %v2230
      %v2266 = vadd.f32 %v2265, %v2231
      %v2267 = vadd.f32 %v2266, %v2232
      %v2268 = vadd.f32 %v2267, %v2233
      %v2269 = vadd.f32 %v2268, %v2234
      %v2270 = vadd.f32 %v2269, %v2235
      %v2271 = vadd.f32 %v2270, %v2236
      %v2272 = vadd.f32 %v2271, %v2237
      %v2273 = vadd.f32 %v2272, %v2238
      %v2274 = vadd.f32 %v2273, %v2239
      %v2275 = vadd.f32 %v2274, %v2240
      %v2276 = vadd.f32 %v2275, %v2241
      %v2277 = vadd.f32 %v2276, %v2242
      %v2278 = vadd.f32 %v2277, %v2243
      %v2279 = vadd.f32 %v2278, %v2244
      %v2280 = vadd.f32 %v2279, %v2245
      %v2281 = vadd.f32 %v2280, %v2246
      %v2282 = vadd.f32 %v2281, %v2247
      %v2283 = vadd.f32 %v2282, %v2248
      %v2284 = vadd.f32 %v2283, %v2249
      %v2285 = vadd.f32 %v2284, %v2250
      %v2286 = vadd.f32 %v2285, %v2251
      %v2287 = vadd.f32 %v2286, %v2252
      %v2288 = vadd.f32 %v2287, %v2253
      %v2289 = vadd.f32 %v2288, %v2254
      %v2290 = vadd.f32 %v2289, %v2255
      %v2291 = vadd.f32 %v2290, %v2256
      %v2292 = vadd.f32 %v2291, %v2257
      %v2293 = vadd.f32 %v2292, %v2258
      %v2294 = vadd.f32 %v2293, %v2259
      %v2295 = vadd.f32 %v2294, %v2260
      %v2296 = vadd.f32 %v2295, %v2261
      %v2297 = vadd.f32 %v2296, %v2262
      %v2298 = vadd.f32 %v2297, %v2263
      %v2299 = vrot.slane %v2298, 4
      %v2300 = vadd.f32 %v2298, %v2299
      %v2301 = vrot.slane %v2300, 2
      %v2302 = vadd.f32 %v2300, %v2301
      %v2303 = vrot.slane %v2302, 1
      %v2304 = vadd.f32 %v2302, %v2303
      %2305 = vst [vmem:[%s409] sm:$0x1] %v2304
      %v2306 = vmul.f32 %v2228, %v2228
      %v2307 = vmul.f32 %v2229, %v2229
      %v2308 = vmul.f32 %v2230, %v2230
      %v2309 = vmul.f32 %v2231, %v2231
      %v2310 = vmul.f32 %v2232, %v2232
      %v2311 = vmul.f32 %v2233, %v2233
      %v2312 = vmul.f32 %v2234, %v2234
      %v2313 = vmul.f32 %v2235, %v2235
      %v2314 = vmul.f32 %v2236, %v2236
      %v2315 = vmul.f32 %v2237, %v2237
      %v2316 = vmul.f32 %v2238, %v2238
      %v2317 = vmul.f32 %v2239, %v2239
      %v2318 = vmul.f32 %v2240, %v2240
      %v2319 = vmul.f32 %v2241, %v2241
      %v2320 = vmul.f32 %v2242, %v2242
      %v2321 = vmul.f32 %v2243, %v2243
      %v2322 = vmul.f32 %v2244, %v2244
      %v2323 = vmul.f32 %v2245, %v2245
      %v2324 = vmul.f32 %v2246, %v2246
      %v2325 = vmul.f32 %v2247, %v2247
      %v2326 = vmul.f32 %v2248, %v2248
      %v2327 = vmul.f32 %v2249, %v2249
      %v2328 = vmul.f32 %v2250, %v2250
      %v2329 = vmul.f32 %v2251, %v2251
      %v2330 = vmul.f32 %v2252, %v2252
      %v2331 = vmul.f32 %v2253, %v2253
      %v2332 = vmul.f32 %v2254, %v2254
      %v2333 = vmul.f32 %v2255, %v2255
      %v2334 = vmul.f32 %v2256, %v2256
      %v2335 = vmul.f32 %v2257, %v2257
      %v2336 = vmul.f32 %v2258, %v2258
      %v2337 = vmul.f32 %v2259, %v2259
      %v2338 = vmul.f32 %v2260, %v2260
      %v2339 = vmul.f32 %v2261, %v2261
      %v2340 = vmul.f32 %v2262, %v2262
      %v2341 = vmul.f32 %v2263, %v2263
      %v2342 = vadd.f32 %v2306, %v2307
      %v2343 = vadd.f32 %v2342, %v2308
      %v2344 = vadd.f32 %v2343, %v2309
      %v2345 = vadd.f32 %v2344, %v2310
      %v2346 = vadd.f32 %v2345, %v2311
      %v2347 = vadd.f32 %v2346, %v2312
      %v2348 = vadd.f32 %v2347, %v2313
      %v2349 = vadd.f32 %v2348, %v2314
      %v2350 = vadd.f32 %v2349, %v2315
      %v2351 = vadd.f32 %v2350, %v2316
      %v2352 = vadd.f32 %v2351, %v2317
      %v2353 = vadd.f32 %v2352, %v2318
      %v2354 = vadd.f32 %v2353, %v2319
      %v2355 = vadd.f32 %v2354, %v2320
      %v2356 = vadd.f32 %v2355, %v2321
      %v2357 = vadd.f32 %v2356, %v2322
      %v2358 = vadd.f32 %v2357, %v2323
      %v2359 = vadd.f32 %v2358, %v2324
      %v2360 = vadd.f32 %v2359, %v2325
      %v2361 = vadd.f32 %v2360, %v2326
      %v2362 = vadd.f32 %v2361, %v2327
      %v2363 = vadd.f32 %v2362, %v2328
      %v2364 = vadd.f32 %v2363, %v2329
      %v2365 = vadd.f32 %v2364, %v2330
      %v2366 = vadd.f32 %v2365, %v2331
      %v2367 = vadd.f32 %v2366, %v2332
      %v2368 = vadd.f32 %v2367, %v2333
      %v2369 = vadd.f32 %v2368, %v2334
      %v2370 = vadd.f32 %v2369, %v2335
      %v2371 = vadd.f32 %v2370, %v2336
      %v2372 = vadd.f32 %v2371, %v2337
      %v2373 = vadd.f32 %v2372, %v2338
      %v2374 = vadd.f32 %v2373, %v2339
      %v2375 = vadd.f32 %v2374, %v2340
      %v2376 = vadd.f32 %v2375, %v2341
      %v2377 = vrot.slane %v2376, 4
      %v2378 = vadd.f32 %v2376, %v2377
      %v2379 = vrot.slane %v2378, 2
      %v2380 = vadd.f32 %v2378, %v2379
      %v2381 = vrot.slane %v2380, 1
      %v2382 = vadd.f32 %v2380, %v2381
      %2383 = vst [vmem:[%s415] sm:$0x1] %v2382
      %v2384 = vpack.c.bf16 %v1873, %v1870
      %v2385 = vpack.c.bf16 %v1881, %v1878
      %v2386 = vpack.c.bf16 %v1889, %v1886
      %v2387 = vpack.c.bf16 %v1897, %v1894
      %v2388 = vpack.c.bf16 %v1905, %v1902
      %v2389 = vpack.c.bf16 %v1913, %v1910
      %v2390 = vpack.c.bf16 %v1921, %v1918
      %v2391 = vpack.c.bf16 %v1929, %v1926
      %v2392 = vpack.c.bf16 %v1937, %v1934
      %v2393 = vpack.c.bf16 %v1945, %v1942
      %v2394 = vpack.c.bf16 %v1953, %v1950
      %v2395 = vpack.c.bf16 %v1961, %v1958
      %v2396 = vpack.c.bf16 %v1969, %v1966
      %v2397 = vpack.c.bf16 %v1977, %v1974
      %v2398 = vpack.c.bf16 %v1985, %v1982
      %v2399 = vpack.c.bf16 %v1993, %v1990
      %v2400 = vpack.c.bf16 %v2001, %v1998
      %v2401 = vpack.c.bf16 %v2009, %v2006
      %v2420 = vunpack.c.l.b16 %v2384
      %v2421 = vunpack.c.h.b16 %v2384
      %v2422 = vunpack.c.l.b16 %v2385
      %v2423 = vunpack.c.h.b16 %v2385
      %v2424 = vunpack.c.l.b16 %v2386
      %v2425 = vunpack.c.h.b16 %v2386
      %v2426 = vunpack.c.l.b16 %v2387
      %v2427 = vunpack.c.h.b16 %v2387
      %v2428 = vunpack.c.l.b16 %v2388
      %v2429 = vunpack.c.h.b16 %v2388
      %v2430 = vunpack.c.l.b16 %v2389
      %v2431 = vunpack.c.h.b16 %v2389
      %v2432 = vunpack.c.l.b16 %v2390
      %v2433 = vunpack.c.h.b16 %v2390
      %v2434 = vunpack.c.l.b16 %v2391
      %v2435 = vunpack.c.h.b16 %v2391
      %v2436 = vunpack.c.l.b16 %v2392
      %v2437 = vunpack.c.h.b16 %v2392
      %v2438 = vunpack.c.l.b16 %v2393
      %v2439 = vunpack.c.h.b16 %v2393
      %v2440 = vunpack.c.l.b16 %v2394
      %v2441 = vunpack.c.h.b16 %v2394
      %v2442 = vunpack.c.l.b16 %v2395
      %v2443 = vunpack.c.h.b16 %v2395
      %v2444 = vunpack.c.l.b16 %v2396
      %v2445 = vunpack.c.h.b16 %v2396
      %v2446 = vunpack.c.l.b16 %v2397
      %v2447 = vunpack.c.h.b16 %v2397
      %v2448 = vunpack.c.l.b16 %v2398
      %v2449 = vunpack.c.h.b16 %v2398
      %v2450 = vunpack.c.l.b16 %v2399
      %v2451 = vunpack.c.h.b16 %v2399
      %v2452 = vunpack.c.l.b16 %v2400
      %v2453 = vunpack.c.h.b16 %v2400
      %v2454 = vunpack.c.l.b16 %v2401
      %v2455 = vunpack.c.h.b16 %v2401
      %v2456 = vpack.c.b16 %v2420, %v2420
      %v2457 = vpack.c.b16 %v2421, %v2421
      %v2458 = vpack.c.b16 %v2422, %v2422
      %v2459 = vpack.c.b16 %v2423, %v2423
      %v2460 = vpack.c.b16 %v2424, %v2424
      %v2461 = vpack.c.b16 %v2425, %v2425
      %v2462 = vpack.c.b16 %v2426, %v2426
      %v2463 = vpack.c.b16 %v2427, %v2427
      %v2464 = vpack.c.b16 %v2428, %v2428
      %v2465 = vpack.c.b16 %v2429, %v2429
      %v2466 = vpack.c.b16 %v2430, %v2430
      %v2467 = vpack.c.b16 %v2431, %v2431
      %v2468 = vpack.c.b16 %v2432, %v2432
      %v2469 = vpack.c.b16 %v2433, %v2433
      %v2470 = vpack.c.b16 %v2434, %v2434
      %v2471 = vpack.c.b16 %v2435, %v2435
      %v2472 = vpack.c.b16 %v2436, %v2436
      %v2473 = vpack.c.b16 %v2437, %v2437
      %v2474 = vpack.c.b16 %v2438, %v2438
      %v2475 = vpack.c.b16 %v2439, %v2439
      %v2476 = vpack.c.b16 %v2440, %v2440
      %v2477 = vpack.c.b16 %v2441, %v2441
      %v2478 = vpack.c.b16 %v2442, %v2442
      %v2479 = vpack.c.b16 %v2443, %v2443
      %v2480 = vpack.c.b16 %v2444, %v2444
      %v2481 = vpack.c.b16 %v2445, %v2445
      %v2482 = vpack.c.b16 %v2446, %v2446
      %v2483 = vpack.c.b16 %v2447, %v2447
      %v2484 = vpack.c.b16 %v2448, %v2448
      %v2485 = vpack.c.b16 %v2449, %v2449
      %v2486 = vpack.c.b16 %v2450, %v2450
      %v2487 = vpack.c.b16 %v2451, %v2451
      %v2488 = vpack.c.b16 %v2452, %v2452
      %v2489 = vpack.c.b16 %v2453, %v2453
      %v2490 = vpack.c.b16 %v2454, %v2454
      %v2491 = vpack.c.b16 %v2455, %v2455
      %2528 = vst [vmem:[%s402] sm:$0xf] %v2456
      %2529 = vst [vmem:[%s402 + $0x4] sm:$0xf] %v2457
      %2530 = vst [vmem:[%s402 + $0x8] sm:$0xf] %v2458
      %2531 = vst [vmem:[%s402 + $0xc] sm:$0xf] %v2459
      %2532 = vst [vmem:[%s402 + $0x10] sm:$0xf] %v2460
      %2533 = vst [vmem:[%s402 + $0x14] sm:$0xf] %v2461
      %2534 = vst [vmem:[%s402 + $0x18] sm:$0xf] %v2462
      %2535 = vst [vmem:[%s402 + $0x1c] sm:$0xf] %v2463
      %2536 = vst [vmem:[%s402 + $0x20] sm:$0xf] %v2464
      %2537 = vst [vmem:[%s402 + $0x24] sm:$0xf] %v2465
      %2538 = vst [vmem:[%s402 + $0x28] sm:$0xf] %v2466
      %2539 = vst [vmem:[%s402 + $0x2c] sm:$0xf] %v2467
      %2540 = vst [vmem:[%s402 + $0x30] sm:$0xf] %v2468
      %2541 = vst [vmem:[%s402 + $0x34] sm:$0xf] %v2469
      %2542 = vst [vmem:[%s402 + $0x38] sm:$0xf] %v2470
      %2543 = vst [vmem:[%s402 + $0x3c] sm:$0xf] %v2471
      %2544 = vst [vmem:[%s402 + $0x40] sm:$0xf] %v2472
      %2545 = vst [vmem:[%s402 + $0x44] sm:$0xf] %v2473
      %2546 = vst [vmem:[%s402 + $0x48] sm:$0xf] %v2474
      %2547 = vst [vmem:[%s402 + $0x4c] sm:$0xf] %v2475
      %2548 = vst [vmem:[%s402 + $0x50] sm:$0xf] %v2476
      %2549 = vst [vmem:[%s402 + $0x54] sm:$0xf] %v2477
      %2550 = vst [vmem:[%s402 + $0x58] sm:$0xf] %v2478
      %2551 = vst [vmem:[%s402 + $0x5c] sm:$0xf] %v2479
      %2552 = vst [vmem:[%s402 + $0x60] sm:$0xf] %v2480
      %2553 = vst [vmem:[%s402 + $0x64] sm:$0xf] %v2481
      %2554 = vst [vmem:[%s402 + $0x68] sm:$0xf] %v2482
      %2555 = vst [vmem:[%s402 + $0x6c] sm:$0xf] %v2483
      %2556 = vst [vmem:[%s402 + $0x70] sm:$0xf] %v2484
      %2557 = vst [vmem:[%s402 + $0x74] sm:$0xf] %v2485
      %2558 = vst [vmem:[%s402 + $0x78] sm:$0xf] %v2486
      %2559 = vst [vmem:[%s402 + $0x7c] sm:$0xf] %v2487
      %2560 = vst [vmem:[%s402 + $0x80] sm:$0xf] %v2488
      %2561 = vst [vmem:[%s402 + $0x84] sm:$0xf] %v2489
      %2562 = vst [vmem:[%s402 + $0x88] sm:$0xf] %v2490
      %2563 = vst [vmem:[%s402 + $0x8c] sm:$0xf] %v2491
      %s2564 = smul.u32 36, %s23
      %p2565 = scmp.lt.s32.totalorder %s22, 1
      %s2566 = scalar_select %p2565, %s22, 1
      %p2567 = scmp.lt.s32.totalorder %s2564, 35
      %s2568 = scalar_select %p2567, %s2564, 35
      %s2569 = smul.addr %s2566, 36
      %s2570 = sadd.s32 %s2568, %s2569
      %s2571 = smul.addr %s2570, 4
      %s2572 = scalar_lea.vmem %s4, %s2571
      %p2573 = scmp.lt.s32.totalorder %s22, 1
      %s2574 = scalar_select %p2573, %s22, 1
      %p2575 = scmp.lt.s32.totalorder %s23, 0
      %s2576 = scalar_select %p2575, %s23, 0
      %s2577 = sadd.s32 %s2576, %s2574
      %s2578 = scalar_lea.vmem %s5, %s2577
      %p2579 = scmp.lt.s32.totalorder %s22, 1
      %s2580 = scalar_select %p2579, %s22, 1
      %p2581 = scmp.lt.s32.totalorder %s23, 0
      %s2582 = scalar_select %p2581, %s23, 0
      %s2583 = sadd.s32 %s2582, %s2580
      %s2584 = scalar_lea.vmem %s6, %s2583
      // Predicated region
      $region37: #{conv_block_forward.2} parent=35 // pred_check
        %p2585 = pneg %p157
      $region38: #{conv_block_forward.2} parent=35 // pred_check_branch
        %2587 = sbr.rel (%p2585) target = $region40
      $region39: #{conv_block_forward.2} parent=35 // pred_region
        %s2588 = smul.u32 36, %s23
      $region40: #{conv_block_forward.2} parent=35 // pred_fallthru
        _
      // Predicated region
      $region41: #{conv_block_forward.2} parent=35 // pred_check
        %p2589 = pneg %p185
      $region42: #{conv_block_forward.2} parent=35 // pred_check_branch
        %2591 = sbr.rel (%p2589) target = $region44
      $region43: #{conv_block_forward.2} parent=35 // pred_region
        _
      $region44: #{conv_block_forward.2} parent=35 // pred_fallthru
        _
      // Predicated region
      $region45: #{conv_block_forward.2} parent=35 // pred_check
        %p2592 = pneg %p213
      $region46: #{conv_block_forward.2} parent=35 // pred_check_branch
        %2594 = sbr.rel (%p2592) target = $region48
      $region47: #{conv_block_forward.2} parent=35 // pred_region
        _
      $region48: #{conv_block_forward.2} parent=35 // pred_fallthru
        _
    $region36: #{conv_block_forward.2} parent=5 // pred_fallthru
      _
    %p2595 = scmp.le.s32.totalorder 2, %s13
    // Predicated region
    $region49: #{conv_block_forward.2} parent=5 // pred_check
      %p2596 = pneg %p2595
    $region50: #{conv_block_forward.2} parent=5 // pred_check_branch
      %2598 = sbr.rel (%p2596) target = $region52
    $region51: #{conv_block_forward.2} parent=5 // pred_region
      %s2599 = ssub.s32 %s13, 2
      // Predicated region
      $region53: #{conv_block_forward.2} parent=51 // pred_check
        %p2600 = pneg %p163
      $region54: #{conv_block_forward.2} parent=51 // pred_check_branch
        %2602 = sbr.rel (%p2600) target = $region56
      $region55: #{conv_block_forward.2} parent=51 // pred_region
        %s2603 = smul.u32 36, %s25
        %p2604 = scmp.lt.s32.totalorder %s24, 1
        %s2605 = scalar_select %p2604, %s24, 1
        %p2606 = scmp.lt.s32.totalorder %s2603, 35
        %s2607 = scalar_select %p2606, %s2603, 35
        %s2608 = smul.addr %s2605, 36
        %s2609 = sadd.s32 %s2607, %s2608
        %s2610 = smul.addr %s2609, 4
        %s2611 = scalar_lea.vmem %s4, %s2610
      $region56: #{conv_block_forward.2} parent=51 // pred_fallthru
        _
      // Predicated region
      $region57: #{conv_block_forward.2} parent=51 // pred_check
        %p2612 = pneg %p191
      $region58: #{conv_block_forward.2} parent=51 // pred_check_branch
        %2614 = sbr.rel (%p2612) target = $region60
      $region59: #{conv_block_forward.2} parent=51 // pred_region
        %p2615 = scmp.lt.s32.totalorder %s24, 1
        %s2616 = scalar_select %p2615, %s24, 1
        %p2617 = scmp.lt.s32.totalorder %s25, 0
        %s2618 = scalar_select %p2617, %s25, 0
        %s2619 = sadd.s32 %s2618, %s2616
        %s2620 = scalar_lea.vmem %s5, %s2619
      $region60: #{conv_block_forward.2} parent=51 // pred_fallthru
        _
      // Predicated region
      $region61: #{conv_block_forward.2} parent=51 // pred_check
        %p2621 = pneg %p219
      $region62: #{conv_block_forward.2} parent=51 // pred_check_branch
        %2623 = sbr.rel (%p2621) target = $region64
      $region63: #{conv_block_forward.2} parent=51 // pred_region
        %p2624 = scmp.lt.s32.totalorder %s24, 1
        %s2625 = scalar_select %p2624, %s24, 1
        %p2626 = scmp.lt.s32.totalorder %s25, 0
        %s2627 = scalar_select %p2626, %s25, 0
        %s2628 = sadd.s32 %s2627, %s2625
        %s2629 = scalar_lea.vmem %s6, %s2628
      $region64: #{conv_block_forward.2} parent=51 // pred_fallthru
        _
    $region52: #{conv_block_forward.2} parent=5 // pred_fallthru
      _
  $region6: #{conv_block_forward.2} parent=0 // loop_footer
    %s17 = sadd.s32 1, %s13
  $region7: #{conv_block_forward.2} parent=0 // loop_footer_branch
    %12 = sbr.rel target = $region3
  $region8: #{conv_block_forward.2} parent=0 // loop_exit
    _

</llo_original>
